<compile_context>
chip_gen: v7x
topology: tpu7x:2x2x1
jax: 0.10.0
libtpu: 0.0.40
codegen_flags: <defaults>
</compile_context>

<pallas_src>
import jax
import jax.numpy as jnp
from jax.experimental import pallas as pl
from jax.experimental.pallas import tpu as pltpu

NUM_CLASS = 7
DIM = 256
STEPS = (2, 3, 4)
WIDTHS = tuple(DIM * s for s in STEPS)   # (512, 768, 1024) -- prefix widths of x
NUM_HEADS = len(WIDTHS)
HMAX = max(WIDTHS)                       # 1024
TK = 256                                 # fc1 K-chunk rows per DMA (divides every width)
KMAX = HMAX // TK                        # 4 chunks for the widest head
CP8 = 8                                  # classes padded 7 -> 8 (de-padded vs previous 128)
_INV_SQRT2 = 0.7071067811865475


def _head_body(x_ref, w1_hbm, b1_ref, w2t_ref, b2_ref, o_ref, wbuf, sems, width):
    """One classifier head: fc1 (K-chunks streamed from HBM) -> GELU -> fc2.

    `width` is a static Python int, so every slice / DMA shape below is static
    and the chunk loop is fully unrolled.
    """
    nk = width // TK

    # Fire every fc1 K-chunk DMA for this head back-to-back; the DMA engine
    # streams them contiguously while the MXU consumes earlier chunks.
    copies = []
    for k in range(nk):
        cp = pltpu.make_async_copy(
            w1_hbm.at[pl.ds(k * TK, TK), :],   # (TK, width) dense rows in HBM
            wbuf.at[k],                        # (TK, width) VMEM staging slot
            sems.at[k])
        cp.start()
        copies.append(cp)

    B = x_ref.shape[0]
    acc = jnp.zeros((B, width), jnp.float32)
    for k in range(nk):
        copies[k].wait()
        xk = x_ref[:, k * TK:(k + 1) * TK]                    # (B, TK) bf16
        acc = acc + jnp.dot(xk, wbuf[k],
                            preferred_element_type=jnp.float32)

    # bias + exact (erf) GELU in f32  (torch.nn.GELU default)
    pre = acc + b1_ref[0, :, :width]                          # (B, width) f32
    act = 0.5 * pre * (1.0 + jax.lax.erf(pre * _INV_SQRT2))

    # fc2: contract the hidden dim against the transposed, de-padded w2.
    w2t = w2t_ref[0, :, :width]                               # (CP8, width) bf16
    out = jax.lax.dot_general(
        act.astype(w2t.dtype), w2t,
        dimension_numbers=(((1,), (1,)), ((), ())),
        preferred_element_type=jnp.float32)                   # (B, CP8) f32
    out = out + b2_ref[0]                                     # (1, CP8) f32 broadcast
    o_ref[0] = out.astype(o_ref.dtype)


def _msc_kernel(x_ref, w1h0_hbm, w1h1_hbm, w1h2_hbm, b1_ref, w2t_ref, b2_ref,
                o_ref, wbuf0, wbuf1, wbuf2, sems):
    h = pl.program_id(0)          # head index (parallel across cores on v7x)

    def run_head(idx, w1_hbm, wbuf, width):
        @pl.when(h == idx)
        def _():
            _head_body(x_ref, w1_hbm, b1_ref, w2t_ref, b2_ref, o_ref,
                       wbuf, sems, width)

    run_head(0, w1h0_hbm, wbuf0, WIDTHS[0])
    run_head(1, w1h1_hbm, wbuf1, WIDTHS[1])
    run_head(2, w1h2_hbm, wbuf2, WIDTHS[2])


def init_msc_params(key, dtype=jnp.float32):
    """Deterministic synthetic init for the three classifiers (step=2,3,4)."""
    params = []
    for step in STEPS:
        hidden = DIM * step
        key, k1, k2, k3, k4 = jax.random.split(key, 5)
        scale = 1.0 / jnp.sqrt(jnp.float32(hidden))
        w1 = (jax.random.normal(k1, (hidden, hidden), jnp.float32) * scale).astype(dtype)
        b1 = (jax.random.normal(k2, (hidden,), jnp.float32) * scale).astype(dtype)
        w2 = (jax.random.normal(k3, (hidden, NUM_CLASS), jnp.float32) * scale).astype(dtype)
        b2 = (jax.random.normal(k4, (NUM_CLASS,), jnp.float32) * scale).astype(dtype)
        params.append((w1, b1, w2, b2))
    return params


def pack_msc_params(params, weight_dtype=jnp.bfloat16):
    """Pack the 3 heads for the kernel.

      * w1_{i}: (width, width) weight_dtype, DENSE (no zero-padded columns).
      * b1    : (3, 1, HMAX)   f32, zero beyond each head's width (never read there).
      * w2t   : (3, CP8, HMAX) weight_dtype, transposed fc2 (classes 7->8, hidden
                padded to HMAX with zeros; padded region is never read).
      * b2    : (3, 1, CP8)    f32, class-7 entry zero.
    """
    packed = {}
    b1_rows, w2t_rows, b2_rows = [], [], []
    for i, ((w1, b1, w2, b2), width) in enumerate(zip(params, WIDTHS)):
        assert w1.shape == (width, width) and w2.shape == (width, NUM_CLASS)
        packed[f"w1_{i}"] = w1.astype(weight_dtype)
        b1_rows.append(jnp.zeros((1, 1, HMAX), jnp.float32)
                       .at[0, 0, :width].set(b1.reshape(-1).astype(jnp.float32)))
        w2t_rows.append(jnp.zeros((1, CP8, HMAX), weight_dtype)
                        .at[0, :NUM_CLASS, :width].set(w2.T.astype(weight_dtype)))
        b2_rows.append(jnp.zeros((1, 1, CP8), jnp.float32)
                       .at[0, 0, :NUM_CLASS].set(b2.reshape(-1).astype(jnp.float32)))
    packed["b1"] = jnp.concatenate(b1_rows, axis=0)    # (3, 1, 1024) f32
    packed["w2t"] = jnp.concatenate(w2t_rows, axis=0)  # (3, 8, 1024) bf16
    packed["b2"] = jnp.concatenate(b2_rows, axis=0)    # (3, 1, 8)    f32
    return packed


def msc_forward(x, packed):
    """Msc.forward: one fused pallas_call, grid=(3,) -- one step per head.

    x : (B, 1024) full input; each head consumes the prefix x[:, :width] via
    in-kernel K-chunking (no host-side slicing of x).
    Returns a list of three (B, NUM_CLASS) float32 arrays.
    """
    B, D = x.shape
    assert D == HMAX, (D, HMAX)
    xb = x.astype(jnp.bfloat16)          # halve x traffic; no per-chunk cast in-kernel

    head_map = lambda h: (h, 0, 0)

    flops = sum(2 * B * w * w + 2 * B * w * NUM_CLASS for w in WIDTHS)
    transcendentals = B * sum(WIDTHS)
    wbytes = sum(int(packed[n].size) * packed[n].dtype.itemsize
                 for n in ("w1_0", "w1_1", "w1_2", "w2t", "b1", "b2"))
    bytes_accessed = (wbytes + int(xb.size) * xb.dtype.itemsize
                      + NUM_HEADS * B * CP8 * 4)

    out = pl.pallas_call(
        _msc_kernel,
        out_shape=jax.ShapeDtypeStruct((NUM_HEADS, B, CP8), jnp.float32),
        grid_spec=pltpu.PrefetchScalarGridSpec(
            num_scalar_prefetch=0,
            grid=(NUM_HEADS,),
            in_specs=[
                pl.BlockSpec((B, HMAX), lambda h: (0, 0)),   # x (bf16), resident
                pl.BlockSpec(memory_space=pl.ANY),           # w1 head0 (512,512)  in HBM
                pl.BlockSpec(memory_space=pl.ANY),           # w1 head1 (768,768)  in HBM
                pl.BlockSpec(memory_space=pl.ANY),           # w1 head2 (1024,1024) in HBM
                pl.BlockSpec((1, 1, HMAX), head_map),        # b1  (per head, f32)
                pl.BlockSpec((1, CP8, HMAX), head_map),      # w2^T (per head, bf16)
                pl.BlockSpec((1, 1, CP8), head_map),         # b2  (per head, f32)
            ],
            out_specs=pl.BlockSpec((1, B, CP8), head_map),
            scratch_shapes=[
                # per-head fc1 staging buffers (dense width, all chunks resident):
                pltpu.VMEM((WIDTHS[0] // TK, TK, WIDTHS[0]), jnp.bfloat16),  # 0.25 MiB
                pltpu.VMEM((WIDTHS[1] // TK, TK, WIDTHS[1]), jnp.bfloat16),  # 0.56 MiB
                pltpu.VMEM((WIDTHS[2] // TK, TK, WIDTHS[2]), jnp.bfloat16),  # 1.00 MiB
                pltpu.SemaphoreType.DMA((KMAX,)),
            ]),
        compiler_params=pltpu.CompilerParams(
            # One step per head; v7x megacore shards heads across its 2 TCs
            # (~1.6 MiB vs ~2.0 MiB of weight stream), no-op on v5e/v6e.
            dimension_semantics=("parallel",)),
        cost_estimate=pl.CostEstimate(
            flops=flops, transcendentals=transcendentals,
            bytes_accessed=bytes_accessed),
    )(xb, packed["w1_0"], packed["w1_1"], packed["w1_2"],
      packed["b1"], packed["w2t"], packed["b2"])

    return [out[i, :, :NUM_CLASS] for i in range(NUM_HEADS)]


def msc_reference(x, params, weight_dtype=jnp.bfloat16):
    """Pure-JAX reference mirroring the kernel's dtype handling."""
    outs = []
    for (w1, b1, w2, b2), width in zip(params, WIDTHS):
        xi = x[:, :width].astype(weight_dtype)
        h = jnp.dot(xi, w1.astype(weight_dtype), preferred_element_type=jnp.float32)
        h = h + b1.astype(jnp.float32)[None, :]
        h = 0.5 * h * (1.0 + jax.lax.erf(h * _INV_SQRT2))
        o = jnp.dot(h.astype(weight_dtype), w2.astype(weight_dtype),
                    preferred_element_type=jnp.float32)
        o = o + b2.astype(jnp.float32)[None, :]
        outs.append(o)
    return outs


if __name__ == "__main__":
    key = jax.random.PRNGKey(0)
    kx, kp = jax.random.split(key)

    B = 8                                     # batch (multiple of 8 sublanes)
    x = jax.random.normal(kx, (B, HMAX), jnp.float32)

    params = init_msc_params(kp)              # f32 "PyTorch" parameters
    packed = pack_msc_params(params, weight_dtype=jnp.bfloat16)

    fwd = jax.jit(msc_forward)
    outs = fwd(x, packed)
    outs = [jax.block_until_ready(o) for o in outs]

    assert len(outs) == NUM_HEADS
    for o in outs:
        assert o.shape == (B, NUM_CLASS), o.shape

    # numerical check vs. a pure-JAX reference with identical dtype handling
    refs = msc_reference(x, params)
    for o, r in zip(outs, refs):
        err = float(jnp.max(jnp.abs(o - r)))
        assert err < 1e-2, f"max abs err {err}"

    print("KERNEL_OK")
</pallas_src>

<mosaic_0001>
module attributes {stable_mosaic.version = 11 : i64} {
  func.func @_msc_kernel(%arg0: i32, %arg1: memref<8x1024xbf16, #tpu.memory_space<vmem>>, %arg2: memref<512x512xbf16, #tpu.memory_space<any>>, %arg3: memref<768x768xbf16, #tpu.memory_space<any>>, %arg4: memref<1024x1024xbf16, #tpu.memory_space<any>>, %arg5: memref<1x1x1024xf32, #tpu.memory_space<vmem>>, %arg6: memref<1x8x1024xbf16, #tpu.memory_space<vmem>>, %arg7: memref<1x1x8xf32, #tpu.memory_space<vmem>>, %arg8: memref<1x8x8xf32, #tpu.memory_space<vmem>>, %arg9: memref<2x256x512xbf16, #tpu.memory_space<vmem>>, %arg10: memref<3x256x768xbf16, #tpu.memory_space<vmem>>, %arg11: memref<4x256x1024xbf16, #tpu.memory_space<vmem>>, %arg12: memref<4x!tpu.dma_semaphore, #tpu.memory_space<semaphore_mem>>) attributes {dimension_semantics = [#tpu.dimension_semantics<parallel>], iteration_bounds = array<i64: 3>, scalar_prefetch = 0 : i64, scratch_operands = 4 : i64, tpu.core_type = #tpu.core_type<tc>, window_params = [{pipeline_mode = #tpu.pipeline_mode<synchronous>, transform_indices = @transform_0, window_bounds = array<i64: 8, 1024>}, {}, {}, {}, {transform_indices = @transform_4, window_bounds = array<i64: 1, 1, 1024>}, {transform_indices = @transform_5, window_bounds = array<i64: 1, 8, 1024>}, {transform_indices = @transform_6, window_bounds = array<i64: 1, 1, 8>}, {transform_indices = @transform_7, window_bounds = array<i64: 1, 8, 8>}]} {
    %c0_i32 = arith.constant 0 : i32
    %0 = arith.cmpi eq, %arg0, %c0_i32 : i32
    %1 = arith.extui %0 : i1 to i32
    %c0_i32_0 = arith.constant 0 : i32
    %2 = arith.cmpi ne, %1, %c0_i32_0 : i32
    scf.if %2 {
      %c0_i32_3 = arith.constant 0 : i32
      %c0_i32_4 = arith.constant 0 : i32
      %c0_i32_5 = arith.constant 0 : i32
      %c0_i32_6 = arith.constant 0 : i32
      %9 = tpu.memref_slice %arg2[%c0_i32_5, %c0_i32_6] : memref<512x512xbf16, #tpu.memory_space<any>> -> memref<256x512xbf16, #tpu.memory_space<any>>
      %c0_i32_7 = arith.constant 0 : i32
      %c0_i32_8 = arith.constant 0 : i32
      %10 = tpu.memref_slice %arg9[%c0_i32_3, %c0_i32_7, %c0_i32_8] : memref<2x256x512xbf16, #tpu.memory_space<vmem>> -> memref<1x256x512xbf16, #tpu.memory_space<vmem>>
      %11 = tpu.memref_squeeze %10 : memref<1x256x512xbf16, #tpu.memory_space<vmem>> -> memref<256x512xbf16, #tpu.memory_space<vmem>>
      %12 = tpu.memref_slice %arg12[%c0_i32_4] : memref<4x!tpu.dma_semaphore, #tpu.memory_space<semaphore_mem>> -> memref<1x!tpu.dma_semaphore, #tpu.memory_space<semaphore_mem>>
      %13 = tpu.memref_squeeze %12 : memref<1x!tpu.dma_semaphore, #tpu.memory_space<semaphore_mem>> -> memref<!tpu.dma_semaphore, #tpu.memory_space<semaphore_mem>>
      tpu.enqueue_dma source(%9 : memref<256x512xbf16, #tpu.memory_space<any>>) target(%11 : memref<256x512xbf16, #tpu.memory_space<vmem>>) target_semaphore(%13 : memref<!tpu.dma_semaphore, #tpu.memory_space<semaphore_mem>>)
      %c1_i32_9 = arith.constant 1 : i32
      %c1_i32_10 = arith.constant 1 : i32
      %c256_i32 = arith.constant 256 : i32
      %c0_i32_11 = arith.constant 0 : i32
      %14 = tpu.memref_slice %arg2[%c256_i32, %c0_i32_11] : memref<512x512xbf16, #tpu.memory_space<any>> -> memref<256x512xbf16, #tpu.memory_space<any>>
      %c0_i32_12 = arith.constant 0 : i32
      %c0_i32_13 = arith.constant 0 : i32
      %15 = tpu.memref_slice %arg9[%c1_i32_9, %c0_i32_12, %c0_i32_13] : memref<2x256x512xbf16, #tpu.memory_space<vmem>> -> memref<1x256x512xbf16, #tpu.memory_space<vmem>>
      %16 = tpu.memref_squeeze %15 : memref<1x256x512xbf16, #tpu.memory_space<vmem>> -> memref<256x512xbf16, #tpu.memory_space<vmem>>
      %17 = tpu.memref_slice %arg12[%c1_i32_10] : memref<4x!tpu.dma_semaphore, #tpu.memory_space<semaphore_mem>> -> memref<1x!tpu.dma_semaphore, #tpu.memory_space<semaphore_mem>>
      %18 = tpu.memref_squeeze %17 : memref<1x!tpu.dma_semaphore, #tpu.memory_space<semaphore_mem>> -> memref<!tpu.dma_semaphore, #tpu.memory_space<semaphore_mem>>
      tpu.enqueue_dma source(%14 : memref<256x512xbf16, #tpu.memory_space<any>>) target(%16 : memref<256x512xbf16, #tpu.memory_space<vmem>>) target_semaphore(%18 : memref<!tpu.dma_semaphore, #tpu.memory_space<semaphore_mem>>)
      %cst = arith.constant 0.000000e+00 : f32
      %19 = vector.broadcast %cst : f32 to vector<8x512xf32>
      %c0_i32_14 = arith.constant 0 : i32
      %c0_i32_15 = arith.constant 0 : i32
      %c0_i32_16 = arith.constant 0 : i32
      %c0_i32_17 = arith.constant 0 : i32
      %20 = tpu.memref_slice %arg2[%c0_i32_16, %c0_i32_17] : memref<512x512xbf16, #tpu.memory_space<any>> -> memref<256x512xbf16, #tpu.memory_space<any>>
      %c0_i32_18 = arith.constant 0 : i32
      %c0_i32_19 = arith.constant 0 : i32
      %21 = tpu.memref_slice %arg9[%c0_i32_14, %c0_i32_18, %c0_i32_19] : memref<2x256x512xbf16, #tpu.memory_space<vmem>> -> memref<1x256x512xbf16, #tpu.memory_space<vmem>>
      %22 = tpu.memref_squeeze %21 : memref<1x256x512xbf16, #tpu.memory_space<vmem>> -> memref<256x512xbf16, #tpu.memory_space<vmem>>
      %23 = tpu.memref_slice %arg12[%c0_i32_15] : memref<4x!tpu.dma_semaphore, #tpu.memory_space<semaphore_mem>> -> memref<1x!tpu.dma_semaphore, #tpu.memory_space<semaphore_mem>>
      %24 = tpu.memref_squeeze %23 : memref<1x!tpu.dma_semaphore, #tpu.memory_space<semaphore_mem>> -> memref<!tpu.dma_semaphore, #tpu.memory_space<semaphore_mem>>
      tpu.wait_dma2 semaphore(%24 : memref<!tpu.dma_semaphore, #tpu.memory_space<semaphore_mem>>) src(%20 : memref<256x512xbf16, #tpu.memory_space<any>>) dst(%22 : memref<256x512xbf16, #tpu.memory_space<vmem>>)
      %c0 = arith.constant 0 : index
      %c0_20 = arith.constant 0 : index
      %25 = vector.load %arg1[%c0, %c0_20] : memref<8x1024xbf16, #tpu.memory_space<vmem>>, vector<8x256xbf16>
      %c0_21 = arith.constant 0 : index
      %c0_22 = arith.constant 0 : index
      %c0_23 = arith.constant 0 : index
      %26 = vector.load %arg9[%c0_21, %c0_22, %c0_23] : memref<2x256x512xbf16, #tpu.memory_space<vmem>>, vector<1x256x512xbf16>
      %27 = vector.shape_cast %26 : vector<1x256x512xbf16> to vector<256x512xbf16>
      %cst_24 = arith.constant dense<0.000000e+00> : vector<8x512xf32>
      %28 = tpu.matmul %25, %27, %cst_24 {dimension_numbers = #tpu.dot_dimension_numbers<[1], [0], [0], [1], [0, 0, 1, 1], [], []>} : vector<8x256xbf16>, vector<256x512xbf16>, vector<8x512xf32> -> vector<8x512xf32>
      %29 = arith.addf %19, %28 : vector<8x512xf32>
      %c1_i32_25 = arith.constant 1 : i32
      %c1_i32_26 = arith.constant 1 : i32
      %c256_i32_27 = arith.constant 256 : i32
      %c0_i32_28 = arith.constant 0 : i32
      %30 = tpu.memref_slice %arg2[%c256_i32_27, %c0_i32_28] : memref<512x512xbf16, #tpu.memory_space<any>> -> memref<256x512xbf16, #tpu.memory_space<any>>
      %c0_i32_29 = arith.constant 0 : i32
      %c0_i32_30 = arith.constant 0 : i32
      %31 = tpu.memref_slice %arg9[%c1_i32_25, %c0_i32_29, %c0_i32_30] : memref<2x256x512xbf16, #tpu.memory_space<vmem>> -> memref<1x256x512xbf16, #tpu.memory_space<vmem>>
      %32 = tpu.memref_squeeze %31 : memref<1x256x512xbf16, #tpu.memory_space<vmem>> -> memref<256x512xbf16, #tpu.memory_space<vmem>>
      %33 = tpu.memref_slice %arg12[%c1_i32_26] : memref<4x!tpu.dma_semaphore, #tpu.memory_space<semaphore_mem>> -> memref<1x!tpu.dma_semaphore, #tpu.memory_space<semaphore_mem>>
      %34 = tpu.memref_squeeze %33 : memref<1x!tpu.dma_semaphore, #tpu.memory_space<semaphore_mem>> -> memref<!tpu.dma_semaphore, #tpu.memory_space<semaphore_mem>>
      tpu.wait_dma2 semaphore(%34 : memref<!tpu.dma_semaphore, #tpu.memory_space<semaphore_mem>>) src(%30 : memref<256x512xbf16, #tpu.memory_space<any>>) dst(%32 : memref<256x512xbf16, #tpu.memory_space<vmem>>)
      %c0_31 = arith.constant 0 : index
      %c256 = arith.constant 256 : index
      %35 = vector.load %arg1[%c0_31, %c256] : memref<8x1024xbf16, #tpu.memory_space<vmem>>, vector<8x256xbf16>
      %c1 = arith.constant 1 : index
      %c0_32 = arith.constant 0 : index
      %c0_33 = arith.constant 0 : index
      %36 = vector.load %arg9[%c1, %c0_32, %c0_33] : memref<2x256x512xbf16, #tpu.memory_space<vmem>>, vector<1x256x512xbf16>
      %37 = vector.shape_cast %36 : vector<1x256x512xbf16> to vector<256x512xbf16>
      %cst_34 = arith.constant dense<0.000000e+00> : vector<8x512xf32>
      %38 = tpu.matmul %35, %37, %cst_34 {dimension_numbers = #tpu.dot_dimension_numbers<[1], [0], [0], [1], [0, 0, 1, 1], [], []>} : vector<8x256xbf16>, vector<256x512xbf16>, vector<8x512xf32> -> vector<8x512xf32>
      %39 = arith.addf %29, %38 : vector<8x512xf32>
      %c0_35 = arith.constant 0 : index
      %c0_36 = arith.constant 0 : index
      %c0_37 = arith.constant 0 : index
      %40 = vector.load %arg5[%c0_35, %c0_36, %c0_37] : memref<1x1x1024xf32, #tpu.memory_space<vmem>>, vector<1x1x512xf32>
      %41 = vector.shape_cast %40 : vector<1x1x512xf32> to vector<1x512xf32>
      %42 = vector.broadcast %41 : vector<1x512xf32> to vector<8x512xf32>
      %43 = arith.addf %39, %42 : vector<8x512xf32>
      %cst_38 = arith.constant 5.000000e-01 : f32
      %44 = vector.broadcast %cst_38 : f32 to vector<8x512xf32>
      %45 = arith.mulf %44, %43 : vector<8x512xf32>
      %cst_39 = arith.constant 0.707106769 : f32
      %46 = vector.broadcast %cst_39 : f32 to vector<8x512xf32>
      %47 = arith.mulf %43, %46 : vector<8x512xf32>
      %48 = math.erf %47 : vector<8x512xf32>
      %cst_40 = arith.constant 1.000000e+00 : f32
      %49 = vector.broadcast %cst_40 : f32 to vector<8x512xf32>
      %50 = arith.addf %49, %48 : vector<8x512xf32>
      %51 = arith.mulf %45, %50 : vector<8x512xf32>
      %c0_41 = arith.constant 0 : index
      %c0_42 = arith.constant 0 : index
      %c0_43 = arith.constant 0 : index
      %52 = vector.load %arg6[%c0_41, %c0_42, %c0_43] : memref<1x8x1024xbf16, #tpu.memory_space<vmem>>, vector<1x8x512xbf16>
      %53 = vector.shape_cast %52 : vector<1x8x512xbf16> to vector<8x512xbf16>
      %54 = arith.truncf %51 : vector<8x512xf32> to vector<8x512xbf16>
      %cst_44 = arith.constant dense<0.000000e+00> : vector<8x8xf32>
      %55 = tpu.matmul %54, %53, %cst_44 {dimension_numbers = #tpu.dot_dimension_numbers<[1], [1], [0], [0], [0, 0, 1, 0], [], []>} : vector<8x512xbf16>, vector<8x512xbf16>, vector<8x8xf32> -> vector<8x8xf32>
      %c0_45 = arith.constant 0 : index
      %c0_46 = arith.constant 0 : index
      %c0_47 = arith.constant 0 : index
      %56 = vector.load %arg7[%c0_45, %c0_46, %c0_47] : memref<1x1x8xf32, #tpu.memory_space<vmem>>, vector<1x1x8xf32>
      %57 = vector.shape_cast %56 : vector<1x1x8xf32> to vector<1x8xf32>
      %58 = vector.broadcast %57 : vector<1x8xf32> to vector<8x8xf32>
      %59 = arith.addf %55, %58 : vector<8x8xf32>
      %c0_48 = arith.constant 0 : index
      %c0_49 = arith.constant 0 : index
      %c0_50 = arith.constant 0 : index
      %60 = vector.load %arg8[%c0_48, %c0_49, %c0_50] : memref<1x8x8xf32, #tpu.memory_space<vmem>>, vector<1x8x8xf32>
      %61 = vector.shape_cast %60 : vector<1x8x8xf32> to vector<8x8xf32>
      %62 = vector.shape_cast %59 : vector<8x8xf32> to vector<1x8x8xf32>
      tpu.vector_store %arg8[%c0_48, %c0_49, %c0_50], %62 {strides = array<i32>} : memref<1x8x8xf32, #tpu.memory_space<vmem>>, vector<1x8x8xf32>,
    } else {
    }
    %c1_i32 = arith.constant 1 : i32
    %3 = arith.cmpi eq, %arg0, %c1_i32 : i32
    %4 = arith.extui %3 : i1 to i32
    %c0_i32_1 = arith.constant 0 : i32
    %5 = arith.cmpi ne, %4, %c0_i32_1 : i32
    scf.if %5 {
      %c0_i32_3 = arith.constant 0 : i32
      %c0_i32_4 = arith.constant 0 : i32
      %c0_i32_5 = arith.constant 0 : i32
      %c0_i32_6 = arith.constant 0 : i32
      %9 = tpu.memref_slice %arg3[%c0_i32_5, %c0_i32_6] : memref<768x768xbf16, #tpu.memory_space<any>> -> memref<256x768xbf16, #tpu.memory_space<any>>
      %c0_i32_7 = arith.constant 0 : i32
      %c0_i32_8 = arith.constant 0 : i32
      %10 = tpu.memref_slice %arg10[%c0_i32_3, %c0_i32_7, %c0_i32_8] : memref<3x256x768xbf16, #tpu.memory_space<vmem>> -> memref<1x256x768xbf16, #tpu.memory_space<vmem>>
      %11 = tpu.memref_squeeze %10 : memref<1x256x768xbf16, #tpu.memory_space<vmem>> -> memref<256x768xbf16, #tpu.memory_space<vmem>>
      %12 = tpu.memref_slice %arg12[%c0_i32_4] : memref<4x!tpu.dma_semaphore, #tpu.memory_space<semaphore_mem>> -> memref<1x!tpu.dma_semaphore, #tpu.memory_space<semaphore_mem>>
      %13 = tpu.memref_squeeze %12 : memref<1x!tpu.dma_semaphore, #tpu.memory_space<semaphore_mem>> -> memref<!tpu.dma_semaphore, #tpu.memory_space<semaphore_mem>>
      tpu.enqueue_dma source(%9 : memref<256x768xbf16, #tpu.memory_space<any>>) target(%11 : memref<256x768xbf16, #tpu.memory_space<vmem>>) target_semaphore(%13 : memref<!tpu.dma_semaphore, #tpu.memory_space<semaphore_mem>>)
      %c1_i32_9 = arith.constant 1 : i32
      %c1_i32_10 = arith.constant 1 : i32
      %c256_i32 = arith.constant 256 : i32
      %c0_i32_11 = arith.constant 0 : i32
      %14 = tpu.memref_slice %arg3[%c256_i32, %c0_i32_11] : memref<768x768xbf16, #tpu.memory_space<any>> -> memref<256x768xbf16, #tpu.memory_space<any>>
      %c0_i32_12 = arith.constant 0 : i32
      %c0_i32_13 = arith.constant 0 : i32
      %15 = tpu.memref_slice %arg10[%c1_i32_9, %c0_i32_12, %c0_i32_13] : memref<3x256x768xbf16, #tpu.memory_space<vmem>> -> memref<1x256x768xbf16, #tpu.memory_space<vmem>>
      %16 = tpu.memref_squeeze %15 : memref<1x256x768xbf16, #tpu.memory_space<vmem>> -> memref<256x768xbf16, #tpu.memory_space<vmem>>
      %17 = tpu.memref_slice %arg12[%c1_i32_10] : memref<4x!tpu.dma_semaphore, #tpu.memory_space<semaphore_mem>> -> memref<1x!tpu.dma_semaphore, #tpu.memory_space<semaphore_mem>>
      %18 = tpu.memref_squeeze %17 : memref<1x!tpu.dma_semaphore, #tpu.memory_space<semaphore_mem>> -> memref<!tpu.dma_semaphore, #tpu.memory_space<semaphore_mem>>
      tpu.enqueue_dma source(%14 : memref<256x768xbf16, #tpu.memory_space<any>>) target(%16 : memref<256x768xbf16, #tpu.memory_space<vmem>>) target_semaphore(%18 : memref<!tpu.dma_semaphore, #tpu.memory_space<semaphore_mem>>)
      %c2_i32_14 = arith.constant 2 : i32
      %c2_i32_15 = arith.constant 2 : i32
      %c512_i32 = arith.constant 512 : i32
      %c0_i32_16 = arith.constant 0 : i32
      %19 = tpu.memref_slice %arg3[%c512_i32, %c0_i32_16] : memref<768x768xbf16, #tpu.memory_space<any>> -> memref<256x768xbf16, #tpu.memory_space<any>>
      %c0_i32_17 = arith.constant 0 : i32
      %c0_i32_18 = arith.constant 0 : i32
      %20 = tpu.memref_slice %arg10[%c2_i32_14, %c0_i32_17, %c0_i32_18] : memref<3x256x768xbf16, #tpu.memory_space<vmem>> -> memref<1x256x768xbf16, #tpu.memory_space<vmem>>
      %21 = tpu.memref_squeeze %20 : memref<1x256x768xbf16, #tpu.memory_space<vmem>> -> memref<256x768xbf16, #tpu.memory_space<vmem>>
      %22 = tpu.memref_slice %arg12[%c2_i32_15] : memref<4x!tpu.dma_semaphore, #tpu.memory_space<semaphore_mem>> -> memref<1x!tpu.dma_semaphore, #tpu.memory_space<semaphore_mem>>
      %23 = tpu.memref_squeeze %22 : memref<1x!tpu.dma_semaphore, #tpu.memory_space<semaphore_mem>> -> memref<!tpu.dma_semaphore, #tpu.memory_space<semaphore_mem>>
      tpu.enqueue_dma source(%19 : memref<256x768xbf16, #tpu.memory_space<any>>) target(%21 : memref<256x768xbf16, #tpu.memory_space<vmem>>) target_semaphore(%23 : memref<!tpu.dma_semaphore, #tpu.memory_space<semaphore_mem>>)
      %cst = arith.constant 0.000000e+00 : f32
      %24 = vector.broadcast %cst : f32 to vector<8x768xf32>
      %c0_i32_19 = arith.constant 0 : i32
      %c0_i32_20 = arith.constant 0 : i32
      %c0_i32_21 = arith.constant 0 : i32
      %c0_i32_22 = arith.constant 0 : i32
      %25 = tpu.memref_slice %arg3[%c0_i32_21, %c0_i32_22] : memref<768x768xbf16, #tpu.memory_space<any>> -> memref<256x768xbf16, #tpu.memory_space<any>>
      %c0_i32_23 = arith.constant 0 : i32
      %c0_i32_24 = arith.constant 0 : i32
      %26 = tpu.memref_slice %arg10[%c0_i32_19, %c0_i32_23, %c0_i32_24] : memref<3x256x768xbf16, #tpu.memory_space<vmem>> -> memref<1x256x768xbf16, #tpu.memory_space<vmem>>
      %27 = tpu.memref_squeeze %26 : memref<1x256x768xbf16, #tpu.memory_space<vmem>> -> memref<256x768xbf16, #tpu.memory_space<vmem>>
      %28 = tpu.memref_slice %arg12[%c0_i32_20] : memref<4x!tpu.dma_semaphore, #tpu.memory_space<semaphore_mem>> -> memref<1x!tpu.dma_semaphore, #tpu.memory_space<semaphore_mem>>
      %29 = tpu.memref_squeeze %28 : memref<1x!tpu.dma_semaphore, #tpu.memory_space<semaphore_mem>> -> memref<!tpu.dma_semaphore, #tpu.memory_space<semaphore_mem>>
      tpu.wait_dma2 semaphore(%29 : memref<!tpu.dma_semaphore, #tpu.memory_space<semaphore_mem>>) src(%25 : memref<256x768xbf16, #tpu.memory_space<any>>) dst(%27 : memref<256x768xbf16, #tpu.memory_space<vmem>>)
      %c0 = arith.constant 0 : index
      %c0_25 = arith.constant 0 : index
      %30 = vector.load %arg1[%c0, %c0_25] : memref<8x1024xbf16, #tpu.memory_space<vmem>>, vector<8x256xbf16>
      %c0_26 = arith.constant 0 : index
      %c0_27 = arith.constant 0 : index
      %c0_28 = arith.constant 0 : index
      %31 = vector.load %arg10[%c0_26, %c0_27, %c0_28] : memref<3x256x768xbf16, #tpu.memory_space<vmem>>, vector<1x256x768xbf16>
      %32 = vector.shape_cast %31 : vector<1x256x768xbf16> to vector<256x768xbf16>
      %cst_29 = arith.constant dense<0.000000e+00> : vector<8x768xf32>
      %33 = tpu.matmul %30, %32, %cst_29 {dimension_numbers = #tpu.dot_dimension_numbers<[1], [0], [0], [1], [0, 0, 1, 1], [], []>} : vector<8x256xbf16>, vector<256x768xbf16>, vector<8x768xf32> -> vector<8x768xf32>
      %34 = arith.addf %24, %33 : vector<8x768xf32>
      %c1_i32_30 = arith.constant 1 : i32
      %c1_i32_31 = arith.constant 1 : i32
      %c256_i32_32 = arith.constant 256 : i32
      %c0_i32_33 = arith.constant 0 : i32
      %35 = tpu.memref_slice %arg3[%c256_i32_32, %c0_i32_33] : memref<768x768xbf16, #tpu.memory_space<any>> -> memref<256x768xbf16, #tpu.memory_space<any>>
      %c0_i32_34 = arith.constant 0 : i32
      %c0_i32_35 = arith.constant 0 : i32
      %36 = tpu.memref_slice %arg10[%c1_i32_30, %c0_i32_34, %c0_i32_35] : memref<3x256x768xbf16, #tpu.memory_space<vmem>> -> memref<1x256x768xbf16, #tpu.memory_space<vmem>>
      %37 = tpu.memref_squeeze %36 : memref<1x256x768xbf16, #tpu.memory_space<vmem>> -> memref<256x768xbf16, #tpu.memory_space<vmem>>
      %38 = tpu.memref_slice %arg12[%c1_i32_31] : memref<4x!tpu.dma_semaphore, #tpu.memory_space<semaphore_mem>> -> memref<1x!tpu.dma_semaphore, #tpu.memory_space<semaphore_mem>>
      %39 = tpu.memref_squeeze %38 : memref<1x!tpu.dma_semaphore, #tpu.memory_space<semaphore_mem>> -> memref<!tpu.dma_semaphore, #tpu.memory_space<semaphore_mem>>
      tpu.wait_dma2 semaphore(%39 : memref<!tpu.dma_semaphore, #tpu.memory_space<semaphore_mem>>) src(%35 : memref<256x768xbf16, #tpu.memory_space<any>>) dst(%37 : memref<256x768xbf16, #tpu.memory_space<vmem>>)
      %c0_36 = arith.constant 0 : index
      %c256 = arith.constant 256 : index
      %40 = vector.load %arg1[%c0_36, %c256] : memref<8x1024xbf16, #tpu.memory_space<vmem>>, vector<8x256xbf16>
      %c1 = arith.constant 1 : index
      %c0_37 = arith.constant 0 : index
      %c0_38 = arith.constant 0 : index
      %41 = vector.load %arg10[%c1, %c0_37, %c0_38] : memref<3x256x768xbf16, #tpu.memory_space<vmem>>, vector<1x256x768xbf16>
      %42 = vector.shape_cast %41 : vector<1x256x768xbf16> to vector<256x768xbf16>
      %cst_39 = arith.constant dense<0.000000e+00> : vector<8x768xf32>
      %43 = tpu.matmul %40, %42, %cst_39 {dimension_numbers = #tpu.dot_dimension_numbers<[1], [0], [0], [1], [0, 0, 1, 1], [], []>} : vector<8x256xbf16>, vector<256x768xbf16>, vector<8x768xf32> -> vector<8x768xf32>
      %44 = arith.addf %34, %43 : vector<8x768xf32>
      %c2_i32_40 = arith.constant 2 : i32
      %c2_i32_41 = arith.constant 2 : i32
      %c512_i32_42 = arith.constant 512 : i32
      %c0_i32_43 = arith.constant 0 : i32
      %45 = tpu.memref_slice %arg3[%c512_i32_42, %c0_i32_43] : memref<768x768xbf16, #tpu.memory_space<any>> -> memref<256x768xbf16, #tpu.memory_space<any>>
      %c0_i32_44 = arith.constant 0 : i32
      %c0_i32_45 = arith.constant 0 : i32
      %46 = tpu.memref_slice %arg10[%c2_i32_40, %c0_i32_44, %c0_i32_45] : memref<3x256x768xbf16, #tpu.memory_space<vmem>> -> memref<1x256x768xbf16, #tpu.memory_space<vmem>>
      %47 = tpu.memref_squeeze %46 : memref<1x256x768xbf16, #tpu.memory_space<vmem>> -> memref<256x768xbf16, #tpu.memory_space<vmem>>
      %48 = tpu.memref_slice %arg12[%c2_i32_41] : memref<4x!tpu.dma_semaphore, #tpu.memory_space<semaphore_mem>> -> memref<1x!tpu.dma_semaphore, #tpu.memory_space<semaphore_mem>>
      %49 = tpu.memref_squeeze %48 : memref<1x!tpu.dma_semaphore, #tpu.memory_space<semaphore_mem>> -> memref<!tpu.dma_semaphore, #tpu.memory_space<semaphore_mem>>
      tpu.wait_dma2 semaphore(%49 : memref<!tpu.dma_semaphore, #tpu.memory_space<semaphore_mem>>) src(%45 : memref<256x768xbf16, #tpu.memory_space<any>>) dst(%47 : memref<256x768xbf16, #tpu.memory_space<vmem>>)
      %c0_46 = arith.constant 0 : index
      %c512 = arith.constant 512 : index
      %50 = vector.load %arg1[%c0_46, %c512] : memref<8x1024xbf16, #tpu.memory_space<vmem>>, vector<8x256xbf16>
      %c2 = arith.constant 2 : index
      %c0_47 = arith.constant 0 : index
      %c0_48 = arith.constant 0 : index
      %51 = vector.load %arg10[%c2, %c0_47, %c0_48] : memref<3x256x768xbf16, #tpu.memory_space<vmem>>, vector<1x256x768xbf16>
      %52 = vector.shape_cast %51 : vector<1x256x768xbf16> to vector<256x768xbf16>
      %cst_49 = arith.constant dense<0.000000e+00> : vector<8x768xf32>
      %53 = tpu.matmul %50, %52, %cst_49 {dimension_numbers = #tpu.dot_dimension_numbers<[1], [0], [0], [1], [0, 0, 1, 1], [], []>} : vector<8x256xbf16>, vector<256x768xbf16>, vector<8x768xf32> -> vector<8x768xf32>
      %54 = arith.addf %44, %53 : vector<8x768xf32>
      %c0_50 = arith.constant 0 : index
      %c0_51 = arith.constant 0 : index
      %c0_52 = arith.constant 0 : index
      %55 = vector.load %arg5[%c0_50, %c0_51, %c0_52] : memref<1x1x1024xf32, #tpu.memory_space<vmem>>, vector<1x1x768xf32>
      %56 = vector.shape_cast %55 : vector<1x1x768xf32> to vector<1x768xf32>
      %57 = vector.broadcast %56 : vector<1x768xf32> to vector<8x768xf32>
      %58 = arith.addf %54, %57 : vector<8x768xf32>
      %cst_53 = arith.constant 5.000000e-01 : f32
      %59 = vector.broadcast %cst_53 : f32 to vector<8x768xf32>
      %60 = arith.mulf %59, %58 : vector<8x768xf32>
      %cst_54 = arith.constant 0.707106769 : f32
      %61 = vector.broadcast %cst_54 : f32 to vector<8x768xf32>
      %62 = arith.mulf %58, %61 : vector<8x768xf32>
      %63 = math.erf %62 : vector<8x768xf32>
      %cst_55 = arith.constant 1.000000e+00 : f32
      %64 = vector.broadcast %cst_55 : f32 to vector<8x768xf32>
      %65 = arith.addf %64, %63 : vector<8x768xf32>
      %66 = arith.mulf %60, %65 : vector<8x768xf32>
      %c0_56 = arith.constant 0 : index
      %c0_57 = arith.constant 0 : index
      %c0_58 = arith.constant 0 : index
      %67 = vector.load %arg6[%c0_56, %c0_57, %c0_58] : memref<1x8x1024xbf16, #tpu.memory_space<vmem>>, vector<1x8x768xbf16>
      %68 = vector.shape_cast %67 : vector<1x8x768xbf16> to vector<8x768xbf16>
      %69 = arith.truncf %66 : vector<8x768xf32> to vector<8x768xbf16>
      %cst_59 = arith.constant dense<0.000000e+00> : vector<8x8xf32>
      %70 = tpu.matmul %69, %68, %cst_59 {dimension_numbers = #tpu.dot_dimension_numbers<[1], [1], [0], [0], [0, 0, 1, 0], [], []>} : vector<8x768xbf16>, vector<8x768xbf16>, vector<8x8xf32> -> vector<8x8xf32>
      %c0_60 = arith.constant 0 : index
      %c0_61 = arith.constant 0 : index
      %c0_62 = arith.constant 0 : index
      %71 = vector.load %arg7[%c0_60, %c0_61, %c0_62] : memref<1x1x8xf32, #tpu.memory_space<vmem>>, vector<1x1x8xf32>
      %72 = vector.shape_cast %71 : vector<1x1x8xf32> to vector<1x8xf32>
      %73 = vector.broadcast %72 : vector<1x8xf32> to vector<8x8xf32>
      %74 = arith.addf %70, %73 : vector<8x8xf32>
      %c0_63 = arith.constant 0 : index
      %c0_64 = arith.constant 0 : index
      %c0_65 = arith.constant 0 : index
      %75 = vector.load %arg8[%c0_63, %c0_64, %c0_65] : memref<1x8x8xf32, #tpu.memory_space<vmem>>, vector<1x8x8xf32>
      %76 = vector.shape_cast %75 : vector<1x8x8xf32> to vector<8x8xf32>
      %77 = vector.shape_cast %74 : vector<8x8xf32> to vector<1x8x8xf32>
      tpu.vector_store %arg8[%c0_63, %c0_64, %c0_65], %77 {strides = array<i32>} : memref<1x8x8xf32, #tpu.memory_space<vmem>>, vector<1x8x8xf32>,
    } else {
    }
    %c2_i32 = arith.constant 2 : i32
    %6 = arith.cmpi eq, %arg0, %c2_i32 : i32
    %7 = arith.extui %6 : i1 to i32
    %c0_i32_2 = arith.constant 0 : i32
    %8 = arith.cmpi ne, %7, %c0_i32_2 : i32
    scf.if %8 {
      %c0_i32_3 = arith.constant 0 : i32
      %c0_i32_4 = arith.constant 0 : i32
      %c0_i32_5 = arith.constant 0 : i32
      %c0_i32_6 = arith.constant 0 : i32
      %9 = tpu.memref_slice %arg4[%c0_i32_5, %c0_i32_6] : memref<1024x1024xbf16, #tpu.memory_space<any>> -> memref<256x1024xbf16, #tpu.memory_space<any>>
      %c0_i32_7 = arith.constant 0 : i32
      %c0_i32_8 = arith.constant 0 : i32
      %10 = tpu.memref_slice %arg11[%c0_i32_3, %c0_i32_7, %c0_i32_8] : memref<4x256x1024xbf16, #tpu.memory_space<vmem>> -> memref<1x256x1024xbf16, #tpu.memory_space<vmem>>
      %11 = tpu.memref_squeeze %10 : memref<1x256x1024xbf16, #tpu.memory_space<vmem>> -> memref<256x1024xbf16, #tpu.memory_space<vmem>>
      %12 = tpu.memref_slice %arg12[%c0_i32_4] : memref<4x!tpu.dma_semaphore, #tpu.memory_space<semaphore_mem>> -> memref<1x!tpu.dma_semaphore, #tpu.memory_space<semaphore_mem>>
      %13 = tpu.memref_squeeze %12 : memref<1x!tpu.dma_semaphore, #tpu.memory_space<semaphore_mem>> -> memref<!tpu.dma_semaphore, #tpu.memory_space<semaphore_mem>>
      tpu.enqueue_dma source(%9 : memref<256x1024xbf16, #tpu.memory_space<any>>) target(%11 : memref<256x1024xbf16, #tpu.memory_space<vmem>>) target_semaphore(%13 : memref<!tpu.dma_semaphore, #tpu.memory_space<semaphore_mem>>)
      %c1_i32_9 = arith.constant 1 : i32
      %c1_i32_10 = arith.constant 1 : i32
      %c256_i32 = arith.constant 256 : i32
      %c0_i32_11 = arith.constant 0 : i32
      %14 = tpu.memref_slice %arg4[%c256_i32, %c0_i32_11] : memref<1024x1024xbf16, #tpu.memory_space<any>> -> memref<256x1024xbf16, #tpu.memory_space<any>>
      %c0_i32_12 = arith.constant 0 : i32
      %c0_i32_13 = arith.constant 0 : i32
      %15 = tpu.memref_slice %arg11[%c1_i32_9, %c0_i32_12, %c0_i32_13] : memref<4x256x1024xbf16, #tpu.memory_space<vmem>> -> memref<1x256x1024xbf16, #tpu.memory_space<vmem>>
      %16 = tpu.memref_squeeze %15 : memref<1x256x1024xbf16, #tpu.memory_space<vmem>> -> memref<256x1024xbf16, #tpu.memory_space<vmem>>
      %17 = tpu.memref_slice %arg12[%c1_i32_10] : memref<4x!tpu.dma_semaphore, #tpu.memory_space<semaphore_mem>> -> memref<1x!tpu.dma_semaphore, #tpu.memory_space<semaphore_mem>>
      %18 = tpu.memref_squeeze %17 : memref<1x!tpu.dma_semaphore, #tpu.memory_space<semaphore_mem>> -> memref<!tpu.dma_semaphore, #tpu.memory_space<semaphore_mem>>
      tpu.enqueue_dma source(%14 : memref<256x1024xbf16, #tpu.memory_space<any>>) target(%16 : memref<256x1024xbf16, #tpu.memory_space<vmem>>) target_semaphore(%18 : memref<!tpu.dma_semaphore, #tpu.memory_space<semaphore_mem>>)
      %c2_i32_14 = arith.constant 2 : i32
      %c2_i32_15 = arith.constant 2 : i32
      %c512_i32 = arith.constant 512 : i32
      %c0_i32_16 = arith.constant 0 : i32
      %19 = tpu.memref_slice %arg4[%c512_i32, %c0_i32_16] : memref<1024x1024xbf16, #tpu.memory_space<any>> -> memref<256x1024xbf16, #tpu.memory_space<any>>
      %c0_i32_17 = arith.constant 0 : i32
      %c0_i32_18 = arith.constant 0 : i32
      %20 = tpu.memref_slice %arg11[%c2_i32_14, %c0_i32_17, %c0_i32_18] : memref<4x256x1024xbf16, #tpu.memory_space<vmem>> -> memref<1x256x1024xbf16, #tpu.memory_space<vmem>>
      %21 = tpu.memref_squeeze %20 : memref<1x256x1024xbf16, #tpu.memory_space<vmem>> -> memref<256x1024xbf16, #tpu.memory_space<vmem>>
      %22 = tpu.memref_slice %arg12[%c2_i32_15] : memref<4x!tpu.dma_semaphore, #tpu.memory_space<semaphore_mem>> -> memref<1x!tpu.dma_semaphore, #tpu.memory_space<semaphore_mem>>
      %23 = tpu.memref_squeeze %22 : memref<1x!tpu.dma_semaphore, #tpu.memory_space<semaphore_mem>> -> memref<!tpu.dma_semaphore, #tpu.memory_space<semaphore_mem>>
      tpu.enqueue_dma source(%19 : memref<256x1024xbf16, #tpu.memory_space<any>>) target(%21 : memref<256x1024xbf16, #tpu.memory_space<vmem>>) target_semaphore(%23 : memref<!tpu.dma_semaphore, #tpu.memory_space<semaphore_mem>>)
      %c3_i32 = arith.constant 3 : i32
      %c3_i32_19 = arith.constant 3 : i32
      %c768_i32 = arith.constant 768 : i32
      %c0_i32_20 = arith.constant 0 : i32
      %24 = tpu.memref_slice %arg4[%c768_i32, %c0_i32_20] : memref<1024x1024xbf16, #tpu.memory_space<any>> -> memref<256x1024xbf16, #tpu.memory_space<any>>
      %c0_i32_21 = arith.constant 0 : i32
      %c0_i32_22 = arith.constant 0 : i32
      %25 = tpu.memref_slice %arg11[%c3_i32, %c0_i32_21, %c0_i32_22] : memref<4x256x1024xbf16, #tpu.memory_space<vmem>> -> memref<1x256x1024xbf16, #tpu.memory_space<vmem>>
      %26 = tpu.memref_squeeze %25 : memref<1x256x1024xbf16, #tpu.memory_space<vmem>> -> memref<256x1024xbf16, #tpu.memory_space<vmem>>
      %27 = tpu.memref_slice %arg12[%c3_i32_19] : memref<4x!tpu.dma_semaphore, #tpu.memory_space<semaphore_mem>> -> memref<1x!tpu.dma_semaphore, #tpu.memory_space<semaphore_mem>>
      %28 = tpu.memref_squeeze %27 : memref<1x!tpu.dma_semaphore, #tpu.memory_space<semaphore_mem>> -> memref<!tpu.dma_semaphore, #tpu.memory_space<semaphore_mem>>
      tpu.enqueue_dma source(%24 : memref<256x1024xbf16, #tpu.memory_space<any>>) target(%26 : memref<256x1024xbf16, #tpu.memory_space<vmem>>) target_semaphore(%28 : memref<!tpu.dma_semaphore, #tpu.memory_space<semaphore_mem>>)
      %cst = arith.constant 0.000000e+00 : f32
      %29 = vector.broadcast %cst : f32 to vector<8x1024xf32>
      %c0_i32_23 = arith.constant 0 : i32
      %c0_i32_24 = arith.constant 0 : i32
      %c0_i32_25 = arith.constant 0 : i32
      %c0_i32_26 = arith.constant 0 : i32
      %30 = tpu.memref_slice %arg4[%c0_i32_25, %c0_i32_26] : memref<1024x1024xbf16, #tpu.memory_space<any>> -> memref<256x1024xbf16, #tpu.memory_space<any>>
      %c0_i32_27 = arith.constant 0 : i32
      %c0_i32_28 = arith.constant 0 : i32
      %31 = tpu.memref_slice %arg11[%c0_i32_23, %c0_i32_27, %c0_i32_28] : memref<4x256x1024xbf16, #tpu.memory_space<vmem>> -> memref<1x256x1024xbf16, #tpu.memory_space<vmem>>
      %32 = tpu.memref_squeeze %31 : memref<1x256x1024xbf16, #tpu.memory_space<vmem>> -> memref<256x1024xbf16, #tpu.memory_space<vmem>>
      %33 = tpu.memref_slice %arg12[%c0_i32_24] : memref<4x!tpu.dma_semaphore, #tpu.memory_space<semaphore_mem>> -> memref<1x!tpu.dma_semaphore, #tpu.memory_space<semaphore_mem>>
      %34 = tpu.memref_squeeze %33 : memref<1x!tpu.dma_semaphore, #tpu.memory_space<semaphore_mem>> -> memref<!tpu.dma_semaphore, #tpu.memory_space<semaphore_mem>>
      tpu.wait_dma2 semaphore(%34 : memref<!tpu.dma_semaphore, #tpu.memory_space<semaphore_mem>>) src(%30 : memref<256x1024xbf16, #tpu.memory_space<any>>) dst(%32 : memref<256x1024xbf16, #tpu.memory_space<vmem>>)
      %c0 = arith.constant 0 : index
      %c0_29 = arith.constant 0 : index
      %35 = vector.load %arg1[%c0, %c0_29] : memref<8x1024xbf16, #tpu.memory_space<vmem>>, vector<8x256xbf16>
      %c0_30 = arith.constant 0 : index
      %c0_31 = arith.constant 0 : index
      %c0_32 = arith.constant 0 : index
      %36 = vector.load %arg11[%c0_30, %c0_31, %c0_32] : memref<4x256x1024xbf16, #tpu.memory_space<vmem>>, vector<1x256x1024xbf16>
      %37 = vector.shape_cast %36 : vector<1x256x1024xbf16> to vector<256x1024xbf16>
      %cst_33 = arith.constant dense<0.000000e+00> : vector<8x1024xf32>
      %38 = tpu.matmul %35, %37, %cst_33 {dimension_numbers = #tpu.dot_dimension_numbers<[1], [0], [0], [1], [0, 0, 1, 1], [], []>} : vector<8x256xbf16>, vector<256x1024xbf16>, vector<8x1024xf32> -> vector<8x1024xf32>
      %39 = arith.addf %29, %38 : vector<8x1024xf32>
      %c1_i32_34 = arith.constant 1 : i32
      %c1_i32_35 = arith.constant 1 : i32
      %c256_i32_36 = arith.constant 256 : i32
      %c0_i32_37 = arith.constant 0 : i32
      %40 = tpu.memref_slice %arg4[%c256_i32_36, %c0_i32_37] : memref<1024x1024xbf16, #tpu.memory_space<any>> -> memref<256x1024xbf16, #tpu.memory_space<any>>
      %c0_i32_38 = arith.constant 0 : i32
      %c0_i32_39 = arith.constant 0 : i32
      %41 = tpu.memref_slice %arg11[%c1_i32_34, %c0_i32_38, %c0_i32_39] : memref<4x256x1024xbf16, #tpu.memory_space<vmem>> -> memref<1x256x1024xbf16, #tpu.memory_space<vmem>>
      %42 = tpu.memref_squeeze %41 : memref<1x256x1024xbf16, #tpu.memory_space<vmem>> -> memref<256x1024xbf16, #tpu.memory_space<vmem>>
      %43 = tpu.memref_slice %arg12[%c1_i32_35] : memref<4x!tpu.dma_semaphore, #tpu.memory_space<semaphore_mem>> -> memref<1x!tpu.dma_semaphore, #tpu.memory_space<semaphore_mem>>
      %44 = tpu.memref_squeeze %43 : memref<1x!tpu.dma_semaphore, #tpu.memory_space<semaphore_mem>> -> memref<!tpu.dma_semaphore, #tpu.memory_space<semaphore_mem>>
      tpu.wait_dma2 semaphore(%44 : memref<!tpu.dma_semaphore, #tpu.memory_space<semaphore_mem>>) src(%40 : memref<256x1024xbf16, #tpu.memory_space<any>>) dst(%42 : memref<256x1024xbf16, #tpu.memory_space<vmem>>)
      %c0_40 = arith.constant 0 : index
      %c256 = arith.constant 256 : index
      %45 = vector.load %arg1[%c0_40, %c256] : memref<8x1024xbf16, #tpu.memory_space<vmem>>, vector<8x256xbf16>
      %c1 = arith.constant 1 : index
      %c0_41 = arith.constant 0 : index
      %c0_42 = arith.constant 0 : index
      %46 = vector.load %arg11[%c1, %c0_41, %c0_42] : memref<4x256x1024xbf16, #tpu.memory_space<vmem>>, vector<1x256x1024xbf16>
      %47 = vector.shape_cast %46 : vector<1x256x1024xbf16> to vector<256x1024xbf16>
      %cst_43 = arith.constant dense<0.000000e+00> : vector<8x1024xf32>
      %48 = tpu.matmul %45, %47, %cst_43 {dimension_numbers = #tpu.dot_dimension_numbers<[1], [0], [0], [1], [0, 0, 1, 1], [], []>} : vector<8x256xbf16>, vector<256x1024xbf16>, vector<8x1024xf32> -> vector<8x1024xf32>
      %49 = arith.addf %39, %48 : vector<8x1024xf32>
      %c2_i32_44 = arith.constant 2 : i32
      %c2_i32_45 = arith.constant 2 : i32
      %c512_i32_46 = arith.constant 512 : i32
      %c0_i32_47 = arith.constant 0 : i32
      %50 = tpu.memref_slice %arg4[%c512_i32_46, %c0_i32_47] : memref<1024x1024xbf16, #tpu.memory_space<any>> -> memref<256x1024xbf16, #tpu.memory_space<any>>
      %c0_i32_48 = arith.constant 0 : i32
      %c0_i32_49 = arith.constant 0 : i32
      %51 = tpu.memref_slice %arg11[%c2_i32_44, %c0_i32_48, %c0_i32_49] : memref<4x256x1024xbf16, #tpu.memory_space<vmem>> -> memref<1x256x1024xbf16, #tpu.memory_space<vmem>>
      %52 = tpu.memref_squeeze %51 : memref<1x256x1024xbf16, #tpu.memory_space<vmem>> -> memref<256x1024xbf16, #tpu.memory_space<vmem>>
      %53 = tpu.memref_slice %arg12[%c2_i32_45] : memref<4x!tpu.dma_semaphore, #tpu.memory_space<semaphore_mem>> -> memref<1x!tpu.dma_semaphore, #tpu.memory_space<semaphore_mem>>
      %54 = tpu.memref_squeeze %53 : memref<1x!tpu.dma_semaphore, #tpu.memory_space<semaphore_mem>> -> memref<!tpu.dma_semaphore, #tpu.memory_space<semaphore_mem>>
      tpu.wait_dma2 semaphore(%54 : memref<!tpu.dma_semaphore, #tpu.memory_space<semaphore_mem>>) src(%50 : memref<256x1024xbf16, #tpu.memory_space<any>>) dst(%52 : memref<256x1024xbf16, #tpu.memory_space<vmem>>)
      %c0_50 = arith.constant 0 : index
      %c512 = arith.constant 512 : index
      %55 = vector.load %arg1[%c0_50, %c512] : memref<8x1024xbf16, #tpu.memory_space<vmem>>, vector<8x256xbf16>
      %c2 = arith.constant 2 : index
      %c0_51 = arith.constant 0 : index
      %c0_52 = arith.constant 0 : index
      %56 = vector.load %arg11[%c2, %c0_51, %c0_52] : memref<4x256x1024xbf16, #tpu.memory_space<vmem>>, vector<1x256x1024xbf16>
      %57 = vector.shape_cast %56 : vector<1x256x1024xbf16> to vector<256x1024xbf16>
      %cst_53 = arith.constant dense<0.000000e+00> : vector<8x1024xf32>
      %58 = tpu.matmul %55, %57, %cst_53 {dimension_numbers = #tpu.dot_dimension_numbers<[1], [0], [0], [1], [0, 0, 1, 1], [], []>} : vector<8x256xbf16>, vector<256x1024xbf16>, vector<8x1024xf32> -> vector<8x1024xf32>
      %59 = arith.addf %49, %58 : vector<8x1024xf32>
      %c3_i32_54 = arith.constant 3 : i32
      %c3_i32_55 = arith.constant 3 : i32
      %c768_i32_56 = arith.constant 768 : i32
      %c0_i32_57 = arith.constant 0 : i32
      %60 = tpu.memref_slice %arg4[%c768_i32_56, %c0_i32_57] : memref<1024x1024xbf16, #tpu.memory_space<any>> -> memref<256x1024xbf16, #tpu.memory_space<any>>
      %c0_i32_58 = arith.constant 0 : i32
      %c0_i32_59 = arith.constant 0 : i32
      %61 = tpu.memref_slice %arg11[%c3_i32_54, %c0_i32_58, %c0_i32_59] : memref<4x256x1024xbf16, #tpu.memory_space<vmem>> -> memref<1x256x1024xbf16, #tpu.memory_space<vmem>>
      %62 = tpu.memref_squeeze %61 : memref<1x256x1024xbf16, #tpu.memory_space<vmem>> -> memref<256x1024xbf16, #tpu.memory_space<vmem>>
      %63 = tpu.memref_slice %arg12[%c3_i32_55] : memref<4x!tpu.dma_semaphore, #tpu.memory_space<semaphore_mem>> -> memref<1x!tpu.dma_semaphore, #tpu.memory_space<semaphore_mem>>
      %64 = tpu.memref_squeeze %63 : memref<1x!tpu.dma_semaphore, #tpu.memory_space<semaphore_mem>> -> memref<!tpu.dma_semaphore, #tpu.memory_space<semaphore_mem>>
      tpu.wait_dma2 semaphore(%64 : memref<!tpu.dma_semaphore, #tpu.memory_space<semaphore_mem>>) src(%60 : memref<256x1024xbf16, #tpu.memory_space<any>>) dst(%62 : memref<256x1024xbf16, #tpu.memory_space<vmem>>)
      %c0_60 = arith.constant 0 : index
      %c768 = arith.constant 768 : index
      %65 = vector.load %arg1[%c0_60, %c768] : memref<8x1024xbf16, #tpu.memory_space<vmem>>, vector<8x256xbf16>
      %c3 = arith.constant 3 : index
      %c0_61 = arith.constant 0 : index
      %c0_62 = arith.constant 0 : index
      %66 = vector.load %arg11[%c3, %c0_61, %c0_62] : memref<4x256x1024xbf16, #tpu.memory_space<vmem>>, vector<1x256x1024xbf16>
      %67 = vector.shape_cast %66 : vector<1x256x1024xbf16> to vector<256x1024xbf16>
      %cst_63 = arith.constant dense<0.000000e+00> : vector<8x1024xf32>
      %68 = tpu.matmul %65, %67, %cst_63 {dimension_numbers = #tpu.dot_dimension_numbers<[1], [0], [0], [1], [0, 0, 1, 1], [], []>} : vector<8x256xbf16>, vector<256x1024xbf16>, vector<8x1024xf32> -> vector<8x1024xf32>
      %69 = arith.addf %59, %68 : vector<8x1024xf32>
      %c0_64 = arith.constant 0 : index
      %c0_65 = arith.constant 0 : index
      %c0_66 = arith.constant 0 : index
      %70 = vector.load %arg5[%c0_64, %c0_65, %c0_66] : memref<1x1x1024xf32, #tpu.memory_space<vmem>>, vector<1x1x1024xf32>
      %71 = vector.shape_cast %70 : vector<1x1x1024xf32> to vector<1x1024xf32>
      %72 = vector.broadcast %71 : vector<1x1024xf32> to vector<8x1024xf32>
      %73 = arith.addf %69, %72 : vector<8x1024xf32>
      %cst_67 = arith.constant 5.000000e-01 : f32
      %74 = vector.broadcast %cst_67 : f32 to vector<8x1024xf32>
      %75 = arith.mulf %74, %73 : vector<8x1024xf32>
      %cst_68 = arith.constant 0.707106769 : f32
      %76 = vector.broadcast %cst_68 : f32 to vector<8x1024xf32>
      %77 = arith.mulf %73, %76 : vector<8x1024xf32>
      %78 = math.erf %77 : vector<8x1024xf32>
      %cst_69 = arith.constant 1.000000e+00 : f32
      %79 = vector.broadcast %cst_69 : f32 to vector<8x1024xf32>
      %80 = arith.addf %79, %78 : vector<8x1024xf32>
      %81 = arith.mulf %75, %80 : vector<8x1024xf32>
      %c0_70 = arith.constant 0 : index
      %c0_71 = arith.constant 0 : index
      %c0_72 = arith.constant 0 : index
      %82 = vector.load %arg6[%c0_70, %c0_71, %c0_72] : memref<1x8x1024xbf16, #tpu.memory_space<vmem>>, vector<1x8x1024xbf16>
      %83 = vector.shape_cast %82 : vector<1x8x1024xbf16> to vector<8x1024xbf16>
      %84 = arith.truncf %81 : vector<8x1024xf32> to vector<8x1024xbf16>
      %cst_73 = arith.constant dense<0.000000e+00> : vector<8x8xf32>
      %85 = tpu.matmul %84, %83, %cst_73 {dimension_numbers = #tpu.dot_dimension_numbers<[1], [1], [0], [0], [0, 0, 1, 0], [], []>} : vector<8x1024xbf16>, vector<8x1024xbf16>, vector<8x8xf32> -> vector<8x8xf32>
      %c0_74 = arith.constant 0 : index
      %c0_75 = arith.constant 0 : index
      %c0_76 = arith.constant 0 : index
      %86 = vector.load %arg7[%c0_74, %c0_75, %c0_76] : memref<1x1x8xf32, #tpu.memory_space<vmem>>, vector<1x1x8xf32>
      %87 = vector.shape_cast %86 : vector<1x1x8xf32> to vector<1x8xf32>
      %88 = vector.broadcast %87 : vector<1x8xf32> to vector<8x8xf32>
      %89 = arith.addf %85, %88 : vector<8x8xf32>
      %c0_77 = arith.constant 0 : index
      %c0_78 = arith.constant 0 : index
      %c0_79 = arith.constant 0 : index
      %90 = vector.load %arg8[%c0_77, %c0_78, %c0_79] : memref<1x8x8xf32, #tpu.memory_space<vmem>>, vector<1x8x8xf32>
      %91 = vector.shape_cast %90 : vector<1x8x8xf32> to vector<8x8xf32>
      %92 = vector.shape_cast %89 : vector<8x8xf32> to vector<1x8x8xf32>
      tpu.vector_store %arg8[%c0_77, %c0_78, %c0_79], %92 {strides = array<i32>} : memref<1x8x8xf32, #tpu.memory_space<vmem>>, vector<1x8x8xf32>,
    } else {
    }
    return
  }
  func.func @transform_0(%arg0: i32) -> (i32, i32) {
    %c0_i32 = arith.constant 0 : i32
    %c0_i32_0 = arith.constant 0 : i32
    %c0_i32_1 = arith.constant 0 : i32
    return %c0_i32, %c0_i32_0 : i32, i32
  }
  func.func @transform_4(%arg0: i32) -> (i32, i32, i32) {
    %c0_i32 = arith.constant 0 : i32
    %c0_i32_0 = arith.constant 0 : i32
    %c0_i32_1 = arith.constant 0 : i32
    return %arg0, %c0_i32, %c0_i32_0 : i32, i32, i32
  }
  func.func @transform_5(%arg0: i32) -> (i32, i32, i32) {
    %c0_i32 = arith.constant 0 : i32
    %c0_i32_0 = arith.constant 0 : i32
    %c0_i32_1 = arith.constant 0 : i32
    return %arg0, %c0_i32, %c0_i32_0 : i32, i32, i32
  }
  func.func @transform_6(%arg0: i32) -> (i32, i32, i32) {
    %c0_i32 = arith.constant 0 : i32
    %c0_i32_0 = arith.constant 0 : i32
    %c0_i32_1 = arith.constant 0 : i32
    return %arg0, %c0_i32, %c0_i32_0 : i32, i32, i32
  }
  func.func @transform_7(%arg0: i32) -> (i32, i32, i32) {
    %c0_i32 = arith.constant 0 : i32
    %c0_i32_0 = arith.constant 0 : i32
    %c0_i32_1 = arith.constant 0 : i32
    return %arg0, %c0_i32, %c0_i32_0 : i32, i32, i32
  }
}

</mosaic_0001>

<llo_original>
// kernel: msc_forward.1
$region0: #{msc_forward.1}
  #allocation0 [shape = 'u32[]', space=smem, size = 0x4, offset = 0x4, fixed_abs, tag = 'smem constant byte address 0x4 - core index']
  #allocation1 [shape = 'u32[144,128]{1,0:T(1,128)}', space=vmem, size = 0x12000, scoped, tag = 'internal scratch']
  #allocation2 [shape = 'bf16[2,256,512]{2,1,0:T(16,128)(2,1)}', space=vmem, size = 0x80000, scoped, tag = 'scratch operand']
  #allocation3 [shape = 'bf16[3,256,768]{2,1,0:T(16,128)(2,1)}', space=vmem, size = 0x120000, scoped, tag = 'scratch operand']
  #allocation4 [shape = 'bf16[4,256,1024]{2,1,0:T(16,128)(2,1)}', space=vmem, size = 0x200000, scoped, tag = 'scratch operand']
  #allocation5 [shape = 's32[4]{0}', space=sflag, size = 0x10, scoped, tag = 'scratch operand']
  #allocation11 [shape = 's32[]', space=sflag, size = 0x4, offset = 0, fixed_abs, tag = 'sflag constant byte address 0x0 - dummy sync flag']
  #allocation13 [shape = 's32[]', space=sflag, size = 0x4, offset = 0, fixed_abs, tag = 'sflag constant byte address 0x0 - dummy sync flag']
  #allocation15 [shape = 's32[]', space=sflag, size = 0x4, offset = 0, fixed_abs, tag = 'sflag constant byte address 0x0 - dummy sync flag']
  #allocation17 [shape = 's32[]', space=sflag, size = 0x4, offset = 0, fixed_abs, tag = 'sflag constant byte address 0x0 - dummy sync flag']
  #allocation19 [shape = 's32[]', space=sflag, size = 0x4, offset = 0, fixed_abs, tag = 'sflag constant byte address 0x0 - dummy sync flag']
  #allocation21 [shape = 's32[]', space=sflag, size = 0x4, offset = 0, fixed_abs, tag = 'sflag constant byte address 0x0 - dummy sync flag']
  #allocation23 [shape = 's32[]', space=sflag, size = 0x4, offset = 0, fixed_abs, tag = 'sflag constant byte address 0x0 - dummy sync flag']
  #allocation25 [shape = 's32[]', space=sflag, size = 0x4, offset = 0, fixed_abs, tag = 'sflag constant byte address 0x0 - dummy sync flag']
  #allocation27 [shape = 's32[]', space=sflag, size = 0x4, offset = 0, fixed_abs, tag = 'sflag constant byte address 0x0 - dummy sync flag']
  %s0 = inlined_call_operand.vmem [shape: bf16[8,1024], index: 0, kind: input, shape index: {}]
  %s1 = inlined_call_operand.hbm [shape: bf16[512,512], index: 1, kind: input, shape index: {}]
  %s2 = inlined_call_operand.hbm [shape: bf16[768,768], index: 2, kind: input, shape index: {}]
  %s3 = inlined_call_operand.hbm [shape: bf16[1024,1024], index: 3, kind: input, shape index: {}]
  %s4 = inlined_call_operand.hbm [shape: f32[3,1,1024], index: 4, kind: input, shape index: {}]
  %s5 = inlined_call_operand.hbm [shape: bf16[3,8,1024], index: 5, kind: input, shape index: {}]
  %s6 = inlined_call_operand.hbm [shape: f32[3,1,8], index: 6, kind: input, shape index: {}]
  %s7 = inlined_call_operand.vmem [shape: f32[3,8,8], index: 7, kind: output, shape index: {}]
  %s8 = sld [smem:[#allocation0]]
  $region73: #{msc_forward.1} parent=0
    _
  %s10 = ssub.s32 1, %s8
  %s11 = scalar_select 0, %s10, %s8
  $region1: #{msc_forward.1} parent=0
    #allocation6 [shape = 'u8[8192]{0}', space=vmem, size = 0x2000, scoped, tag = 'input window, operand 4']
    #allocation7 [shape = 's32[2]{0}', space=sflag, size = 0x8, scoped, tag = 'scoped memory for msc_forward.1']
    #allocation8 [shape = 'u8[32768]{0}', space=vmem, size = 0x8000, scoped, tag = 'input window, operand 5']
    #allocation9 [shape = 's32[2]{0}', space=sflag, size = 0x8, scoped, tag = 'scoped memory for msc_forward.1']
    #allocation10 [shape = 'u8[1024]{0}', space=vmem, size = 0x400, scoped, tag = 'input window, operand 6']
    %12 = vsyncpa [#allocation7], 0
    %s13 = scalar_lea.sflag [#allocation7], 1
    %14 = vsyncpa %s13, 0
    %15 = vsyncpa [#allocation9], 0
    %s16 = scalar_lea.sflag [#allocation9], 1
    %17 = vsyncpa %s16, 0
    loop: start=0, step=1, limit=5
    $region2: #{msc_forward.1} parent=1 // loop_pre_header
      _
    $region3: #{msc_forward.1} parent=1 // loop_header
      %s19 = sphi 0, %s23
      %p20 = scmp.ge.s32.totalorder %s19, 5
      %s27 = sphi 0, %s27
      %s29 = sphi 0, %s27
      %s30 = sphi 0, %s29
      %s44 = sphi 0, %s30
      %s50 = sphi 0, %s52
      %s53 = sphi 0, %s50
      %s54 = sphi 0, %s53
      %s70 = sphi 0, %s54
      %s76 = sphi 0, %s78
      %s79 = sphi 0, %s76
      %s80 = sphi 0, %s79
      %s96 = sphi 0, %s80
      %s102 = sphi 0, %s104
      %s105 = sphi 0, %s102
      %s106 = sphi 0, %s105
      %s122 = sphi 0, %s106
      %s128 = sphi 0, %s130
      %s131 = sphi 0, %s128
      %s132 = sphi 0, %s131
      %s148 = sphi 0, %s132
    $region4: #{msc_forward.1} parent=1 // loop_header_branch
      %22 = sbr.rel (%p20) target = $region8
    $region5: #{msc_forward.1} parent=1 // loop_body
      %s24 = ssub.s32 %s19, 1
      %s25 = ssub.s32 %s19, 2
      %s26 = sadd.s32 %s19, 1
      %s28 = sadd.s32 %s27, 1
      %p31 = scmp.eq.s32.totalorder %s19, 2
      %p32 = scmp.ne.s32.totalorder %s27, %s29
      %p33 = scmp.eq.s32.totalorder %s19, 0
      %p34 = por %p32, %p33
      %p35 = scmp.ne.s32.totalorder %s27, %s29
      %p36 = scmp.eq.s32.totalorder %s24, 2
      %p37 = por %p35, %p36
      %p38 = scmp.ne.s32.totalorder %s29, %s30
      %p39 = scmp.eq.s32.totalorder %s24, 0
      %p40 = por %p38, %p39
      %p41 = scmp.ne.s32.totalorder %s29, %s30
      %p42 = scmp.eq.s32.totalorder %s25, 2
      %p43 = por %p41, %p42
      %p45 = scmp.ne.s32.totalorder %s30, %s44
      %p46 = scmp.eq.s32.totalorder %s25, 0
      %p47 = por %p45, %p46
      %s48 = ssub.s32 %s19, %s26
      %p49 = scmp.eq.s32.totalorder %s48, 0
      %s51 = sadd.s32 %s50, 1
      %s52 = scalar_select %p49, %s50, %s51
      %p55 = pneg %p49
      %p56 = scmp.eq.s32.totalorder %s19, 2
      %p57 = por %p55, %p56
      %p58 = scmp.ne.s32.totalorder %s50, %s53
      %p59 = scmp.eq.s32.totalorder %s19, 0
      %p60 = por %p58, %p59
      %p61 = scmp.ne.s32.totalorder %s50, %s53
      %p62 = scmp.eq.s32.totalorder %s24, 2
      %p63 = por %p61, %p62
      %p64 = scmp.ne.s32.totalorder %s53, %s54
      %p65 = scmp.eq.s32.totalorder %s24, 0
      %p66 = por %p64, %p65
      %p67 = scmp.ne.s32.totalorder %s53, %s54
      %p68 = scmp.eq.s32.totalorder %s25, 2
      %p69 = por %p67, %p68
      %p71 = scmp.ne.s32.totalorder %s54, %s70
      %p72 = scmp.eq.s32.totalorder %s25, 0
      %p73 = por %p71, %p72
      %s74 = ssub.s32 %s19, %s26
      %p75 = scmp.eq.s32.totalorder %s74, 0
      %s77 = sadd.s32 %s76, 1
      %s78 = scalar_select %p75, %s76, %s77
      %p81 = pneg %p75
      %p82 = scmp.eq.s32.totalorder %s19, 2
      %p83 = por %p81, %p82
      %p84 = scmp.ne.s32.totalorder %s76, %s79
      %p85 = scmp.eq.s32.totalorder %s19, 0
      %p86 = por %p84, %p85
      %p87 = scmp.ne.s32.totalorder %s76, %s79
      %p88 = scmp.eq.s32.totalorder %s24, 2
      %p89 = por %p87, %p88
      %p90 = scmp.ne.s32.totalorder %s79, %s80
      %p91 = scmp.eq.s32.totalorder %s24, 0
      %p92 = por %p90, %p91
      %p93 = scmp.ne.s32.totalorder %s79, %s80
      %p94 = scmp.eq.s32.totalorder %s25, 2
      %p95 = por %p93, %p94
      %p97 = scmp.ne.s32.totalorder %s80, %s96
      %p98 = scmp.eq.s32.totalorder %s25, 0
      %p99 = por %p97, %p98
      %s100 = ssub.s32 %s19, %s26
      %p101 = scmp.eq.s32.totalorder %s100, 0
      %s103 = sadd.s32 %s102, 1
      %s104 = scalar_select %p101, %s102, %s103
      %p107 = pneg %p101
      %p108 = scmp.eq.s32.totalorder %s19, 2
      %p109 = por %p107, %p108
      %p110 = scmp.ne.s32.totalorder %s102, %s105
      %p111 = scmp.eq.s32.totalorder %s19, 0
      %p112 = por %p110, %p111
      %p113 = scmp.ne.s32.totalorder %s102, %s105
      %p114 = scmp.eq.s32.totalorder %s24, 2
      %p115 = por %p113, %p114
      %p116 = scmp.ne.s32.totalorder %s105, %s106
      %p117 = scmp.eq.s32.totalorder %s24, 0
      %p118 = por %p116, %p117
      %p119 = scmp.ne.s32.totalorder %s105, %s106
      %p120 = scmp.eq.s32.totalorder %s25, 2
      %p121 = por %p119, %p120
      %p123 = scmp.ne.s32.totalorder %s106, %s122
      %p124 = scmp.eq.s32.totalorder %s25, 0
      %p125 = por %p123, %p124
      %s126 = ssub.s32 %s19, %s26
      %p127 = scmp.eq.s32.totalorder %s126, 0
      %s129 = sadd.s32 %s128, 1
      %s130 = scalar_select %p127, %s128, %s129
      %p133 = pneg %p127
      %p134 = scmp.eq.s32.totalorder %s19, 2
      %p135 = por %p133, %p134
      %p136 = scmp.ne.s32.totalorder %s128, %s131
      %p137 = scmp.eq.s32.totalorder %s19, 0
      %p138 = por %p136, %p137
      %p139 = scmp.ne.s32.totalorder %s128, %s131
      %p140 = scmp.eq.s32.totalorder %s24, 2
      %p141 = por %p139, %p140
      %p142 = scmp.ne.s32.totalorder %s131, %s132
      %p143 = scmp.eq.s32.totalorder %s24, 0
      %p144 = por %p142, %p143
      %p145 = scmp.ne.s32.totalorder %s131, %s132
      %p146 = scmp.eq.s32.totalorder %s25, 2
      %p147 = por %p145, %p146
      %p149 = scmp.ne.s32.totalorder %s132, %s148
      %p150 = scmp.eq.s32.totalorder %s25, 0
      %p151 = por %p149, %p150
      %p152 = scmp.le.s32.totalorder 1, %s19
      %p153 = scmp.lt.s32.totalorder %s19, 4
      %p154 = pnand %p152, %p153
      %p155 = pneg %p154
      // Predicated region
      $region9: #{msc_forward.1} parent=5 // pred_check
        _
      $region10: #{msc_forward.1} parent=5 // pred_check_branch
        %157 = sbr.rel (%p154) target = $region12
      $region11: #{msc_forward.1} parent=5 // pred_region
        %s158 = ssub.s32 %s19, 1
        // Predicated region
        $region13: #{msc_forward.1} parent=11 // pred_check
          %p159 = pneg %p40
        $region14: #{msc_forward.1} parent=11 // pred_check_branch
          %161 = sbr.rel (%p159) target = $region16
        $region15: #{msc_forward.1} parent=11 // pred_region
          _
        $region16: #{msc_forward.1} parent=11 // pred_fallthru
          _
      $region12: #{msc_forward.1} parent=5 // pred_fallthru
        _
      %p162 = scmp.lt.s32.totalorder %s19, 3
      // Predicated region
      $region17: #{msc_forward.1} parent=5 // pred_check
        %p163 = pneg %p162
      $region18: #{msc_forward.1} parent=5 // pred_check_branch
        %165 = sbr.rel (%p163) target = $region20
      $region19: #{msc_forward.1} parent=5 // pred_region
        // Predicated region
        $region21: #{msc_forward.1} parent=19 // pred_check
          %p166 = pneg %p60
        $region22: #{msc_forward.1} parent=19 // pred_check_branch
          %168 = sbr.rel (%p166) target = $region24
        $region23: #{msc_forward.1} parent=19 // pred_region
          %s169 = sand.u32 %s50, 1
          %s170 = scalar_lea.sflag [#allocation7], %s169
          %s171 = sand.u32 %s50, 1
          %s172 = smul.addr %s171, 8
          %s173 = scalar_lea.vmem [#allocation6], %s172
          %s175 = ssub.s32 128, 128
          %176 = vsyncadd %s170, %s175
          %s177 = smul.addr %s19, 8
          %s178 = smul.addr %s177, 16
          %s179 = scalar_lea.hbm %s4, %s178
          %s181 = sshll.u32 %s173, 4
          %s182 = int_to_ptr.vmem [resolvable:$true] %s181
          %184 = dma.hbm_to_vmem [thread:$0]  %s179, 128, %s182, %s170
        $region24: #{msc_forward.1} parent=19 // pred_fallthru
          _
        // Predicated region
        $region25: #{msc_forward.1} parent=19 // pred_check
          %p185 = pneg %p86
        $region26: #{msc_forward.1} parent=19 // pred_check_branch
          %187 = sbr.rel (%p185) target = $region28
        $region27: #{msc_forward.1} parent=19 // pred_region
          %s188 = sand.u32 %s19, 1
          %s189 = scalar_lea.sflag [#allocation9], %s188
          %s190 = sand.u32 %s76, 1
          %s191 = smul.addr %s190, 32
          %s192 = scalar_lea.vmem [#allocation8], %s191
          %s194 = ssub.s32 512, 512
          %195 = vsyncadd %s189, %s194
          %s196 = smul.addr %s19, 8
          %s197 = smul.addr %s196, 64
          %s198 = scalar_lea.hbm %s5, %s197
          %s200 = sshll.u32 %s192, 4
          %s201 = int_to_ptr.vmem [resolvable:$true] %s200
          %203 = dma.hbm_to_vmem [thread:$0]  %s198, 512, %s201, %s189
        $region28: #{msc_forward.1} parent=19 // pred_fallthru
          _
        // Predicated region
        $region29: #{msc_forward.1} parent=19 // pred_check
          %p204 = pneg %p112
        $region30: #{msc_forward.1} parent=19 // pred_check_branch
          %206 = sbr.rel (%p204) target = $region32
        $region31: #{msc_forward.1} parent=19 // pred_region
          %s207 = sand.u32 %s19, 1
          %s208 = scalar_lea.sflag [#allocation9], %s207
          %s209 = sand.u32 %s102, 1
          %s210 = scalar_lea.vmem [#allocation10], %s209
          %s212 = ssub.s32 16, 16
          %213 = vsyncadd %s208, %s212
          %s214 = smul.addr %s19, 16
          %s215 = scalar_lea.hbm %s6, %s214
          %s217 = sshll.u32 %s210, 4
          %s218 = int_to_ptr.vmem [resolvable:$true] %s217
          %220 = dma.hbm_to_vmem [thread:$0]  %s215, 16, %s218, %s208
        $region32: #{msc_forward.1} parent=19 // pred_fallthru
          _
      $region20: #{msc_forward.1} parent=5 // pred_fallthru
        _
      %p221 = scmp.le.s32.totalorder 1, %s19
      %p222 = scmp.lt.s32.totalorder %s19, 4
      %p223 = pnand %p221, %p222
      %p224 = pneg %p223
      // Predicated region
      $region33: #{msc_forward.1} parent=5 // pred_check
        _
      $region34: #{msc_forward.1} parent=5 // pred_check_branch
        %226 = sbr.rel (%p223) target = $region36
      $region35: #{msc_forward.1} parent=5 // pred_region
        %s227 = ssub.s32 %s19, 1
        %s228 = sand.u32 %s53, 1
        %s229 = scalar_lea.sflag [#allocation7], %s228
        %s230 = sand.u32 %s53, 1
        %s231 = smul.addr %s230, 8
        %s232 = scalar_lea.vmem [#allocation6], %s231
        // Predicated region
        $region37: #{msc_forward.1} parent=35 // pred_check
          %p233 = pneg %p66
        $region38: #{msc_forward.1} parent=35 // pred_check_branch
          %235 = sbr.rel (%p233) target = $region40
        $region39: #{msc_forward.1} parent=35 // pred_region
          %236 = dma.done %s229, 128
        $region40: #{msc_forward.1} parent=35 // pred_fallthru
          _
        %s237 = sand.u32 %s24, 1
        %s238 = scalar_lea.sflag [#allocation9], %s237
        %s239 = sand.u32 %s79, 1
        %s240 = smul.addr %s239, 32
        %s241 = scalar_lea.vmem [#allocation8], %s240
        // Predicated region
        $region41: #{msc_forward.1} parent=35 // pred_check
          %p242 = pneg %p92
        $region42: #{msc_forward.1} parent=35 // pred_check_branch
          %244 = sbr.rel (%p242) target = $region44
        $region43: #{msc_forward.1} parent=35 // pred_region
          %245 = dma.done %s238, 512
        $region44: #{msc_forward.1} parent=35 // pred_fallthru
          _
        %s246 = sand.u32 %s24, 1
        %s247 = scalar_lea.sflag [#allocation9], %s246
        %s248 = sand.u32 %s105, 1
        %s249 = scalar_lea.vmem [#allocation10], %s248
        // Predicated region
        $region45: #{msc_forward.1} parent=35 // pred_check
          %p250 = pneg %p118
        $region46: #{msc_forward.1} parent=35 // pred_check_branch
          %252 = sbr.rel (%p250) target = $region48
        $region47: #{msc_forward.1} parent=35 // pred_region
          %253 = dma.done %s247, 16
        $region48: #{msc_forward.1} parent=35 // pred_fallthru
          _
        %p254 = pneg %p40
        %p255 = pneg %p37
        %s256 = sand.u32 %s53, 1
        %s257 = scalar_lea.sflag [#allocation7], %s256
        %s258 = sand.u32 %s53, 1
        %s259 = smul.addr %s258, 8
        %s260 = scalar_lea.vmem [#allocation6], %s259
        %p261 = pneg %p66
        %p262 = pneg %p63
        %s263 = sand.u32 %s24, 1
        %s264 = scalar_lea.sflag [#allocation9], %s263
        %s265 = sand.u32 %s79, 1
        %s266 = smul.addr %s265, 32
        %s267 = scalar_lea.vmem [#allocation8], %s266
        %p268 = pneg %p92
        %p269 = pneg %p89
        %s270 = sand.u32 %s24, 1
        %s271 = scalar_lea.sflag [#allocation9], %s270
        %s272 = sand.u32 %s105, 1
        %s273 = scalar_lea.vmem [#allocation10], %s272
        %p274 = pneg %p118
        %p275 = pneg %p115
        %p276 = pneg %p144
        %p277 = pneg %p141
        %p278 = scmp.lt.s32.totalorder %s24, 2
        %s279 = scalar_select %p278, %s24, 2
        %s280 = smul.addr %s279, 8
        %s281 = scalar_lea.vmem %s7, %s280
        %p282 = scmp.lt.s32.totalorder %s24, 2
        %s283 = scalar_select %p282, %s24, 2
        %s284 = smul.addr %s283, 8
        %s285 = scalar_lea.vmem %s7, %s284
        %p287 = scmp.eq.s32.totalorder %s24, 0
        // Predicated region
        $region49: #{msc_forward.1} parent=35 // pred_check
          %p288 = pneg %p287
        $region50: #{msc_forward.1} parent=35 // pred_check_branch
          %290 = sbr.rel (%p288) target = $region52
        $region51: #{msc_forward.1} parent=35 // pred_region
          #allocation12 [shape = 'u32[9]{0}', space=smem, size = 0x24, scoped, tag = 'DMA stride descriptor']
          #allocation14 [shape = 'u32[9]{0}', space=smem, size = 0x24, scoped, tag = 'DMA stride descriptor']
          %s292 = sshll.u32 1, 14
          %s293 = sxor.u32 4294967295, %s292
          %s295 = sld [smem:[#allocation0]]
          %s296 = sadd.s32 2, %s295
          %s298 = sshll.u32 7, 26
          %s299 = sxor.u32 4294967295, %s298
          %s300 = sand.u32 0, %s299
          %s301 = sshll.u32 %s296, 26
          %s302 = sor.u32 %s300, %s301
          %s303 = sshll.u32 [#allocation2], 4
          %s304 = int_to_ptr.vmem [resolvable:$true] %s303
          %307 = sst [smem:[#allocation12]] 512
          %s308 = scalar_lea.smem [#allocation12], 1
          %309 = sst [smem:[%s308]] 512
          %s310 = scalar_lea.smem [#allocation12], 2
          %311 = sst [smem:[%s310]] 4
          %s312 = scalar_lea.smem [#allocation12], 3
          %313 = sst [smem:[%s312]] 64
          %s314 = scalar_lea.smem [#allocation12], 4
          %315 = sst [smem:[%s314]] 128
          %s316 = scalar_lea.smem [#allocation12], 5
          %317 = sst [smem:[%s316]] 2
          %s318 = scalar_lea.smem [#allocation12], 6
          %319 = sst [smem:[%s318]] 256
          %s320 = scalar_lea.smem [#allocation12], 7
          %321 = sst [smem:[%s320]] 64
          %s322 = scalar_lea.smem [#allocation12], 8
          %323 = sst [smem:[%s322]] 4
          %325 = dma.general %s1, 8192, %s304, [#allocation5], [#allocation11], [#allocation12], %s302, 0
          %s326 = scalar_lea.hbm %s1, 8192
          %s327 = scalar_lea.vmem [#allocation2], 512
          %s328 = scalar_lea.sflag [#allocation5], 1
          %s330 = sshll.u32 1, 14
          %s331 = sxor.u32 4294967295, %s330
          %s333 = sadd.s32 2, %s295
          %s335 = sshll.u32 7, 26
          %s336 = sxor.u32 4294967295, %s335
          %s337 = sand.u32 0, %s336
          %s338 = sshll.u32 %s333, 26
          %s339 = sor.u32 %s337, %s338
          %s340 = sshll.u32 %s327, 4
          %s341 = int_to_ptr.vmem [resolvable:$true] %s340
          %344 = sst [smem:[#allocation14]] 512
          %s345 = scalar_lea.smem [#allocation14], 1
          %346 = sst [smem:[%s345]] 512
          %s347 = scalar_lea.smem [#allocation14], 2
          %348 = sst [smem:[%s347]] 4
          %s349 = scalar_lea.smem [#allocation14], 3
          %350 = sst [smem:[%s349]] 64
          %s351 = scalar_lea.smem [#allocation14], 4
          %352 = sst [smem:[%s351]] 128
          %s353 = scalar_lea.smem [#allocation14], 5
          %354 = sst [smem:[%s353]] 2
          %s355 = scalar_lea.smem [#allocation14], 6
          %356 = sst [smem:[%s355]] 256
          %s357 = scalar_lea.smem [#allocation14], 7
          %358 = sst [smem:[%s357]] 64
          %s359 = scalar_lea.smem [#allocation14], 8
          %360 = sst [smem:[%s359]] 4
          %362 = dma.general %s326, 8192, %s341, %s328, [#allocation13], [#allocation14], %s339, 0
          %s363 = smul.u32 4, 32
          %s364 = smul.u32 %s363, 4
          %s365 = sshll.u32 %s364, 4
          %366 = dma.done [#allocation5], %s365
          %v367 = vld [vmem:[%s0] sm:$0xff]
          %v368 = vld [vmem:[#allocation2] sm:$0xff]
          %v369 = vld [vmem:[#allocation2 + $0x8] sm:$0xff]
          %v370 = vld [vmem:[#allocation2 + $0x10] sm:$0xff]
          %v371 = vld [vmem:[#allocation2 + $0x18] sm:$0xff]
          %v372 = vld [vmem:[#allocation2 + $0x20] sm:$0xff]
          %v373 = vld [vmem:[#allocation2 + $0x28] sm:$0xff]
          %v374 = vld [vmem:[#allocation2 + $0x30] sm:$0xff]
          %v375 = vld [vmem:[#allocation2 + $0x38] sm:$0xff]
          %v376 = vld [vmem:[#allocation2 + $0x40] sm:$0xff]
          %v377 = vld [vmem:[#allocation2 + $0x48] sm:$0xff]
          %v378 = vld [vmem:[#allocation2 + $0x50] sm:$0xff]
          %v379 = vld [vmem:[#allocation2 + $0x58] sm:$0xff]
          %v380 = vld [vmem:[#allocation2 + $0x60] sm:$0xff]
          %v381 = vld [vmem:[#allocation2 + $0x68] sm:$0xff]
          %v382 = vld [vmem:[#allocation2 + $0x70] sm:$0xff]
          %v383 = vld [vmem:[#allocation2 + $0x78] sm:$0xff]
          %v384 = vld [vmem:[#allocation2 + $0x80] sm:$0xff]
          %v385 = vld [vmem:[#allocation2 + $0x88] sm:$0xff]
          %v386 = vld [vmem:[#allocation2 + $0x90] sm:$0xff]
          %v387 = vld [vmem:[#allocation2 + $0x98] sm:$0xff]
          %v388 = vld [vmem:[#allocation2 + $0xa0] sm:$0xff]
          %v389 = vld [vmem:[#allocation2 + $0xa8] sm:$0xff]
          %v390 = vld [vmem:[#allocation2 + $0xb0] sm:$0xff]
          %v391 = vld [vmem:[#allocation2 + $0xb8] sm:$0xff]
          %v392 = vld [vmem:[#allocation2 + $0xc0] sm:$0xff]
          %v393 = vld [vmem:[#allocation2 + $0xc8] sm:$0xff]
          %v394 = vld [vmem:[#allocation2 + $0xd0] sm:$0xff]
          %v395 = vld [vmem:[#allocation2 + $0xd8] sm:$0xff]
          %v396 = vld [vmem:[#allocation2 + $0xe0] sm:$0xff]
          %v397 = vld [vmem:[#allocation2 + $0xe8] sm:$0xff]
          %v398 = vld [vmem:[#allocation2 + $0xf0] sm:$0xff]
          %v399 = vld [vmem:[#allocation2 + $0xf8] sm:$0xff]
          %v400 = vld [vmem:[#allocation2 + $0x100] sm:$0xff]
          %v401 = vld [vmem:[#allocation2 + $0x108] sm:$0xff]
          %v402 = vld [vmem:[#allocation2 + $0x110] sm:$0xff]
          %v403 = vld [vmem:[#allocation2 + $0x118] sm:$0xff]
          %v404 = vld [vmem:[#allocation2 + $0x120] sm:$0xff]
          %v405 = vld [vmem:[#allocation2 + $0x128] sm:$0xff]
          %v406 = vld [vmem:[#allocation2 + $0x130] sm:$0xff]
          %v407 = vld [vmem:[#allocation2 + $0x138] sm:$0xff]
          %v408 = vld [vmem:[#allocation2 + $0x140] sm:$0xff]
          %v409 = vld [vmem:[#allocation2 + $0x148] sm:$0xff]
          %v410 = vld [vmem:[#allocation2 + $0x150] sm:$0xff]
          %v411 = vld [vmem:[#allocation2 + $0x158] sm:$0xff]
          %v412 = vld [vmem:[#allocation2 + $0x160] sm:$0xff]
          %v413 = vld [vmem:[#allocation2 + $0x168] sm:$0xff]
          %v414 = vld [vmem:[#allocation2 + $0x170] sm:$0xff]
          %v415 = vld [vmem:[#allocation2 + $0x178] sm:$0xff]
          %v416 = vld [vmem:[#allocation2 + $0x180] sm:$0xff]
          %v417 = vld [vmem:[#allocation2 + $0x188] sm:$0xff]
          %v418 = vld [vmem:[#allocation2 + $0x190] sm:$0xff]
          %v419 = vld [vmem:[#allocation2 + $0x198] sm:$0xff]
          %v420 = vld [vmem:[#allocation2 + $0x1a0] sm:$0xff]
          %v421 = vld [vmem:[#allocation2 + $0x1a8] sm:$0xff]
          %v422 = vld [vmem:[#allocation2 + $0x1b0] sm:$0xff]
          %v423 = vld [vmem:[#allocation2 + $0x1b8] sm:$0xff]
          %v424 = vld [vmem:[#allocation2 + $0x1c0] sm:$0xff]
          %v425 = vld [vmem:[#allocation2 + $0x1c8] sm:$0xff]
          %v426 = vld [vmem:[#allocation2 + $0x1d0] sm:$0xff]
          %v427 = vld [vmem:[#allocation2 + $0x1d8] sm:$0xff]
          %v428 = vld [vmem:[#allocation2 + $0x1e0] sm:$0xff]
          %v429 = vld [vmem:[#allocation2 + $0x1e8] sm:$0xff]
          %v430 = vld [vmem:[#allocation2 + $0x1f0] sm:$0xff]
          %v431 = vld [vmem:[#allocation2 + $0x1f8] sm:$0xff]
          %s432 = sshll.u32 %s364, 4
          %433 = dma.done %s328, %s432
          %v434 = vld [vmem:[%s0 + $0x8] sm:$0xff]
          %v435 = vld [vmem:[%s327] sm:$0xff]
          %v436 = vld [vmem:[%s327 + $0x8] sm:$0xff]
          %v437 = vld [vmem:[%s327 + $0x10] sm:$0xff]
          %v438 = vld [vmem:[%s327 + $0x18] sm:$0xff]
          %v439 = vld [vmem:[%s327 + $0x20] sm:$0xff]
          %v440 = vld [vmem:[%s327 + $0x28] sm:$0xff]
          %v441 = vld [vmem:[%s327 + $0x30] sm:$0xff]
          %v442 = vld [vmem:[%s327 + $0x38] sm:$0xff]
          %v443 = vld [vmem:[%s327 + $0x40] sm:$0xff]
          %v444 = vld [vmem:[%s327 + $0x48] sm:$0xff]
          %v445 = vld [vmem:[%s327 + $0x50] sm:$0xff]
          %v446 = vld [vmem:[%s327 + $0x58] sm:$0xff]
          %v447 = vld [vmem:[%s327 + $0x60] sm:$0xff]
          %v448 = vld [vmem:[%s327 + $0x68] sm:$0xff]
          %v449 = vld [vmem:[%s327 + $0x70] sm:$0xff]
          %v450 = vld [vmem:[%s327 + $0x78] sm:$0xff]
          %v451 = vld [vmem:[%s327 + $0x80] sm:$0xff]
          %v452 = vld [vmem:[%s327 + $0x88] sm:$0xff]
          %v453 = vld [vmem:[%s327 + $0x90] sm:$0xff]
          %v454 = vld [vmem:[%s327 + $0x98] sm:$0xff]
          %v455 = vld [vmem:[%s327 + $0xa0] sm:$0xff]
          %v456 = vld [vmem:[%s327 + $0xa8] sm:$0xff]
          %v457 = vld [vmem:[%s327 + $0xb0] sm:$0xff]
          %v458 = vld [vmem:[%s327 + $0xb8] sm:$0xff]
          %v459 = vld [vmem:[%s327 + $0xc0] sm:$0xff]
          %v460 = vld [vmem:[%s327 + $0xc8] sm:$0xff]
          %v461 = vld [vmem:[%s327 + $0xd0] sm:$0xff]
          %v462 = vld [vmem:[%s327 + $0xd8] sm:$0xff]
          %v463 = vld [vmem:[%s327 + $0xe0] sm:$0xff]
          %v464 = vld [vmem:[%s327 + $0xe8] sm:$0xff]
          %v465 = vld [vmem:[%s327 + $0xf0] sm:$0xff]
          %v466 = vld [vmem:[%s327 + $0xf8] sm:$0xff]
          %v467 = vld [vmem:[%s327 + $0x100] sm:$0xff]
          %v468 = vld [vmem:[%s327 + $0x108] sm:$0xff]
          %v469 = vld [vmem:[%s327 + $0x110] sm:$0xff]
          %v470 = vld [vmem:[%s327 + $0x118] sm:$0xff]
          %v471 = vld [vmem:[%s327 + $0x120] sm:$0xff]
          %v472 = vld [vmem:[%s327 + $0x128] sm:$0xff]
          %v473 = vld [vmem:[%s327 + $0x130] sm:$0xff]
          %v474 = vld [vmem:[%s327 + $0x138] sm:$0xff]
          %v475 = vld [vmem:[%s327 + $0x140] sm:$0xff]
          %v476 = vld [vmem:[%s327 + $0x148] sm:$0xff]
          %v477 = vld [vmem:[%s327 + $0x150] sm:$0xff]
          %v478 = vld [vmem:[%s327 + $0x158] sm:$0xff]
          %v479 = vld [vmem:[%s327 + $0x160] sm:$0xff]
          %v480 = vld [vmem:[%s327 + $0x168] sm:$0xff]
          %v481 = vld [vmem:[%s327 + $0x170] sm:$0xff]
          %v482 = vld [vmem:[%s327 + $0x178] sm:$0xff]
          %v483 = vld [vmem:[%s327 + $0x180] sm:$0xff]
          %v484 = vld [vmem:[%s327 + $0x188] sm:$0xff]
          %v485 = vld [vmem:[%s327 + $0x190] sm:$0xff]
          %v486 = vld [vmem:[%s327 + $0x198] sm:$0xff]
          %v487 = vld [vmem:[%s327 + $0x1a0] sm:$0xff]
          %v488 = vld [vmem:[%s327 + $0x1a8] sm:$0xff]
          %v489 = vld [vmem:[%s327 + $0x1b0] sm:$0xff]
          %v490 = vld [vmem:[%s327 + $0x1b8] sm:$0xff]
          %v491 = vld [vmem:[%s327 + $0x1c0] sm:$0xff]
          %v492 = vld [vmem:[%s327 + $0x1c8] sm:$0xff]
          %v493 = vld [vmem:[%s327 + $0x1d0] sm:$0xff]
          %v494 = vld [vmem:[%s327 + $0x1d8] sm:$0xff]
          %v495 = vld [vmem:[%s327 + $0x1e0] sm:$0xff]
          %v496 = vld [vmem:[%s327 + $0x1e8] sm:$0xff]
          %v497 = vld [vmem:[%s327 + $0x1f0] sm:$0xff]
          %v498 = vld [vmem:[%s327 + $0x1f8] sm:$0xff]
          %v500 = vunpack.c.l.b16 %v434
          %v501 = vunpack.c.h.b16 %v434
          %v502 = vpack.c.b16 %v500, %v500
          %v503 = vpack.c.b16 %v501, %v501
          %506 = vmatprep.subr.bf16.mxu0 %v436
          %507 = vmatpush1.bf16.msra.mxu0 %v435
          %508 = vmatprep.subr.bf16.mxu0 %v440
          %509 = vmatpush1.bf16.msra.mxu0 %v439
          %510 = vmatprep.subr.bf16.mxu0 %v444
          %511 = vmatpush1.bf16.msra.mxu0 %v443
          %512 = vmatprep.subr.bf16.mxu0 %v448
          %513 = vmatpush1.bf16.msra.mxu0 %v447
          %514 = vmatprep.subr.bf16.mxu0 %v452
          %515 = vmatpush1.bf16.msra.mxu0 %v451
          %516 = vmatprep.subr.bf16.mxu0 %v456
          %517 = vmatpush1.bf16.msra.mxu0 %v455
          %518 = vmatprep.subr.bf16.mxu0 %v460
          %519 = vmatpush1.bf16.msra.mxu0 %v459
          %520 = vmatprep.subr.bf16.mxu0 %v464
          %521 = vmatpush1.bf16.msra.mxu0 %v463
          %522 = vmatprep.subr.bf16.mxu0 %v468
          %523 = vmatpush1.bf16.msra.mxu0 %v467
          %524 = vmatprep.subr.bf16.mxu0 %v472
          %525 = vmatpush1.bf16.msra.mxu0 %v471
          %526 = vmatprep.subr.bf16.mxu0 %v476
          %527 = vmatpush1.bf16.msra.mxu0 %v475
          %528 = vmatprep.subr.bf16.mxu0 %v480
          %529 = vmatpush1.bf16.msra.mxu0 %v479
          %530 = vmatprep.subr.bf16.mxu0 %v484
          %531 = vmatpush1.bf16.msra.mxu0 %v483
          %532 = vmatprep.subr.bf16.mxu0 %v488
          %533 = vmatpush1.bf16.msra.mxu0 %v487
          %534 = vmatprep.subr.bf16.mxu0 %v492
          %535 = vmatpush1.bf16.msra.mxu0 %v491
          %536 = vmatprep.subr.bf16.mxu0 %v496
          %537 = vmatpush1.bf16.msra.mxu0 %v495
          %538 = vmatprep.mubr.bf16.mxu0 %v503
          %539 = vmatmul.mubr.bf16.gmra.mrb[0].mxu0 %v502
          %v540 = vpop.f32.mrb[0].mxu0
          %v541 = vadd.f32 0.0, %v540
          %v542 = vpop.f32.mrb[0].mxu0
          %v543 = vadd.f32 0.0, %v542
          %v544 = vpop.f32.mrb[0].mxu0
          %v545 = vpop.f32.mrb[0].mxu0
          %546 = vdwg.mxu0
          %547 = vmatprep.subr.bf16.mxu0 %v438
          %548 = vmatpush1.bf16.msra.mxu0 %v437
          %549 = vmatprep.subr.bf16.mxu0 %v442
          %550 = vmatpush1.bf16.msra.mxu0 %v441
          %551 = vmatprep.subr.bf16.mxu0 %v446
          %552 = vmatpush1.bf16.msra.mxu0 %v445
          %553 = vmatprep.subr.bf16.mxu0 %v450
          %554 = vmatpush1.bf16.msra.mxu0 %v449
          %555 = vmatprep.subr.bf16.mxu0 %v454
          %556 = vmatpush1.bf16.msra.mxu0 %v453
          %557 = vmatprep.subr.bf16.mxu0 %v458
          %558 = vmatpush1.bf16.msra.mxu0 %v457
          %559 = vmatprep.subr.bf16.mxu0 %v462
          %560 = vmatpush1.bf16.msra.mxu0 %v461
          %561 = vmatprep.subr.bf16.mxu0 %v466
          %562 = vmatpush1.bf16.msra.mxu0 %v465
          %563 = vmatprep.subr.bf16.mxu0 %v470
          %564 = vmatpush1.bf16.msra.mxu0 %v469
          %565 = vmatprep.subr.bf16.mxu0 %v474
          %566 = vmatpush1.bf16.msra.mxu0 %v473
          %567 = vmatprep.subr.bf16.mxu0 %v478
          %568 = vmatpush1.bf16.msra.mxu0 %v477
          %569 = vmatprep.subr.bf16.mxu0 %v482
          %570 = vmatpush1.bf16.msra.mxu0 %v481
          %571 = vmatprep.subr.bf16.mxu0 %v486
          %572 = vmatpush1.bf16.msra.mxu0 %v485
          %573 = vmatprep.subr.bf16.mxu0 %v490
          %574 = vmatpush1.bf16.msra.mxu0 %v489
          %575 = vmatprep.subr.bf16.mxu0 %v494
          %576 = vmatpush1.bf16.msra.mxu0 %v493
          %577 = vmatprep.subr.bf16.mxu0 %v498
          %578 = vmatpush1.bf16.msra.mxu0 %v497
          %579 = vmatprep.mubr.bf16.mxu0 %v503
          %580 = vmatmul.mubr.bf16.gmra.mrb[0].mxu0 %v502
          %v581 = vpop.f32.mrb[0].mxu0
          %v582 = vadd.f32 0.0, %v581
          %v583 = vpop.f32.mrb[0].mxu0
          %v584 = vadd.f32 0.0, %v583
          %v585 = vpop.f32.mrb[0].mxu0
          %v586 = vpop.f32.mrb[0].mxu0
          %587 = vdwg.mxu0
          %v589 = vunpack.c.l.b16 %v367
          %v590 = vunpack.c.h.b16 %v367
          %v591 = vpack.c.b16 %v589, %v589
          %v592 = vpack.c.b16 %v590, %v590
          %595 = vmatprep.subr.bf16.mxu0 %v369
          %596 = vmatpush1.bf16.msra.mxu0 %v368
          %597 = vmatprep.subr.bf16.mxu0 %v373
          %598 = vmatpush1.bf16.msra.mxu0 %v372
          %599 = vmatprep.subr.bf16.mxu0 %v377
          %600 = vmatpush1.bf16.msra.mxu0 %v376
          %601 = vmatprep.subr.bf16.mxu0 %v381
          %602 = vmatpush1.bf16.msra.mxu0 %v380
          %603 = vmatprep.subr.bf16.mxu0 %v385
          %604 = vmatpush1.bf16.msra.mxu0 %v384
          %605 = vmatprep.subr.bf16.mxu0 %v389
          %606 = vmatpush1.bf16.msra.mxu0 %v388
          %607 = vmatprep.subr.bf16.mxu0 %v393
          %608 = vmatpush1.bf16.msra.mxu0 %v392
          %609 = vmatprep.subr.bf16.mxu0 %v397
          %610 = vmatpush1.bf16.msra.mxu0 %v396
          %611 = vmatprep.subr.bf16.mxu0 %v401
          %612 = vmatpush1.bf16.msra.mxu0 %v400
          %613 = vmatprep.subr.bf16.mxu0 %v405
          %614 = vmatpush1.bf16.msra.mxu0 %v404
          %615 = vmatprep.subr.bf16.mxu0 %v409
          %616 = vmatpush1.bf16.msra.mxu0 %v408
          %617 = vmatprep.subr.bf16.mxu0 %v413
          %618 = vmatpush1.bf16.msra.mxu0 %v412
          %619 = vmatprep.subr.bf16.mxu0 %v417
          %620 = vmatpush1.bf16.msra.mxu0 %v416
          %621 = vmatprep.subr.bf16.mxu0 %v421
          %622 = vmatpush1.bf16.msra.mxu0 %v420
          %623 = vmatprep.subr.bf16.mxu0 %v425
          %624 = vmatpush1.bf16.msra.mxu0 %v424
          %625 = vmatprep.subr.bf16.mxu0 %v429
          %626 = vmatpush1.bf16.msra.mxu0 %v428
          %627 = vmatprep.mubr.bf16.mxu0 %v592
          %628 = vmatmul.mubr.bf16.gmra.mrb[0].mxu0 %v591
          %v629 = vpop.f32.mrb[0].mxu0
          %v630 = vadd.f32 %v541, %v629
          %v631 = vpop.f32.mrb[0].mxu0
          %v632 = vadd.f32 %v543, %v631
          %v633 = vpop.f32.mrb[0].mxu0
          %v634 = vpop.f32.mrb[0].mxu0
          %635 = vdwg.mxu0
          %636 = vmatprep.subr.bf16.mxu0 %v371
          %637 = vmatpush1.bf16.msra.mxu0 %v370
          %638 = vmatprep.subr.bf16.mxu0 %v375
          %639 = vmatpush1.bf16.msra.mxu0 %v374
          %640 = vmatprep.subr.bf16.mxu0 %v379
          %641 = vmatpush1.bf16.msra.mxu0 %v378
          %642 = vmatprep.subr.bf16.mxu0 %v383
          %643 = vmatpush1.bf16.msra.mxu0 %v382
          %644 = vmatprep.subr.bf16.mxu0 %v387
          %645 = vmatpush1.bf16.msra.mxu0 %v386
          %646 = vmatprep.subr.bf16.mxu0 %v391
          %647 = vmatpush1.bf16.msra.mxu0 %v390
          %648 = vmatprep.subr.bf16.mxu0 %v395
          %649 = vmatpush1.bf16.msra.mxu0 %v394
          %650 = vmatprep.subr.bf16.mxu0 %v399
          %651 = vmatpush1.bf16.msra.mxu0 %v398
          %652 = vmatprep.subr.bf16.mxu0 %v403
          %653 = vmatpush1.bf16.msra.mxu0 %v402
          %654 = vmatprep.subr.bf16.mxu0 %v407
          %655 = vmatpush1.bf16.msra.mxu0 %v406
          %656 = vmatprep.subr.bf16.mxu0 %v411
          %657 = vmatpush1.bf16.msra.mxu0 %v410
          %658 = vmatprep.subr.bf16.mxu0 %v415
          %659 = vmatpush1.bf16.msra.mxu0 %v414
          %660 = vmatprep.subr.bf16.mxu0 %v419
          %661 = vmatpush1.bf16.msra.mxu0 %v418
          %662 = vmatprep.subr.bf16.mxu0 %v423
          %663 = vmatpush1.bf16.msra.mxu0 %v422
          %664 = vmatprep.subr.bf16.mxu0 %v427
          %665 = vmatpush1.bf16.msra.mxu0 %v426
          %666 = vmatprep.subr.bf16.mxu0 %v431
          %667 = vmatpush1.bf16.msra.mxu0 %v430
          %668 = vmatprep.mubr.bf16.mxu0 %v592
          %669 = vmatmul.mubr.bf16.gmra.mrb[0].mxu0 %v591
          %v670 = vpop.f32.mrb[0].mxu0
          %v671 = vadd.f32 %v582, %v670
          %v672 = vpop.f32.mrb[0].mxu0
          %v673 = vadd.f32 %v584, %v672
          %v674 = vpop.f32.mrb[0].mxu0
          %v675 = vpop.f32.mrb[0].mxu0
          %676 = vdwg.mxu0
          %v677 = vld [vmem:[%s232] sm:$0xf]
          %v679 = vlaneseq
          %v680 = vshrl.u32 %v679, 7
          %v681 = vsub.s32 0, %v680
          %v682 = vrot.slane %v677, %v681
          %v683 = vlaneseq
          %v684 = vshrl.u32 %v683, 7
          %v685 = vsub.s32 1, %v684
          %v686 = vrot.slane %v677, %v685
          %v687 = vlaneseq
          %v688 = vshrl.u32 %v687, 7
          %v689 = vsub.s32 2, %v688
          %v690 = vrot.slane %v677, %v689
          %v691 = vlaneseq
          %v692 = vshrl.u32 %v691, 7
          %v693 = vsub.s32 3, %v692
          %v694 = vrot.slane %v677, %v693
          %v699 = vadd.f32 %v630, %v682
          %v700 = vadd.f32 %v632, %v686
          %v701 = vadd.f32 %v671, %v690
          %v702 = vadd.f32 %v673, %v694
          %v703 = vmul.f32 %v699, 0.5
          %v704 = vmul.f32 %v700, 0.5
          %v705 = vmul.f32 %v701, 0.5
          %v706 = vmul.f32 %v702, 0.5
          %v707 = vmul.f32 %v699, 0.70710677
          %v708 = vmul.f32 %v700, 0.70710677
          %v709 = vmul.f32 %v701, 0.70710677
          %v710 = vmul.f32 %v702, 0.70710677
          %v711 = verf.f32.pop %v707
          %v712 = verf.f32.pop %v708
          %v713 = verf.f32.pop %v709
          %v714 = verf.f32.pop %v710
          %v715 = vadd.f32 %v711, 1.0
          %v716 = vadd.f32 %v712, 1.0
          %v717 = vadd.f32 %v713, 1.0
          %v718 = vadd.f32 %v714, 1.0
          %v719 = vmul.f32 %v703, %v715
          %v720 = vmul.f32 %v704, %v716
          %v721 = vmul.f32 %v705, %v717
          %v722 = vmul.f32 %v706, %v718
          %v723 = vld [vmem:[%s241] sm:$0xff]
          %v724 = vld [vmem:[%s241 + $0x8] sm:$0xff]
          %v725 = vpack.c.bf16 %v719, %v719
          %v726 = vpack.c.bf16 %v720, %v720
          %v727 = vpack.c.bf16 %v721, %v721
          %v728 = vpack.c.bf16 %v722, %v722
          %v729 = vld [vmem:[%s249] sm:$0x1]
          %v731 = vlaneseq
          %v732 = vshrl.u32 %v731, 7
          %v733 = vsub.s32 0, %v732
          %v734 = vrot.slane %v729, %v733
          %v738 = vunpack.c.l.b16 %v723
          %v739 = vunpack.c.h.b16 %v723
          %v740 = vunpack.c.l.b16 %v724
          %v741 = vunpack.c.h.b16 %v724
          %v742 = vpack.c.b16 %v738, %v738
          %v743 = vpack.c.b16 %v739, %v739
          %v744 = vpack.c.b16 %v740, %v740
          %v745 = vpack.c.b16 %v741, %v741
          %750 = vmatprep.subr.bf16.mxu0 %v743
          %751 = vmatpush1.bf16.xpose.msra.mxu0 %v742
          %752 = vmatprep.subr.bf16.mxu0 0
          %753 = vmatpush1.bf16.xpose.msra.mxu0 0
          %754 = vmatprep.subr.bf16.mxu0 0
          %755 = vmatpush1.bf16.xpose.msra.mxu0 0
          %756 = vmatprep.subr.bf16.mxu0 0
          %757 = vmatpush1.bf16.xpose.msra.mxu0 0
          %758 = vmatprep.subr.bf16.mxu0 0
          %759 = vmatpush1.bf16.xpose.msra.mxu0 0
          %760 = vmatprep.subr.bf16.mxu0 0
          %761 = vmatpush1.bf16.xpose.msra.mxu0 0
          %762 = vmatprep.subr.bf16.mxu0 0
          %763 = vmatpush1.bf16.xpose.msra.mxu0 0
          %764 = vmatprep.subr.bf16.mxu0 0
          %765 = vmatpush1.bf16.xpose.msra.mxu0 0
          %766 = vmatprep.subr.bf16.mxu0 0
          %767 = vmatpush1.bf16.xpose.msra.mxu0 0
          %768 = vmatprep.subr.bf16.mxu0 0
          %769 = vmatpush1.bf16.xpose.msra.mxu0 0
          %770 = vmatprep.subr.bf16.mxu0 0
          %771 = vmatpush1.bf16.xpose.msra.mxu0 0
          %772 = vmatprep.subr.bf16.mxu0 0
          %773 = vmatpush1.bf16.xpose.msra.mxu0 0
          %774 = vmatprep.subr.bf16.mxu0 0
          %775 = vmatpush1.bf16.xpose.msra.mxu0 0
          %776 = vmatprep.subr.bf16.mxu0 0
          %777 = vmatpush1.bf16.xpose.msra.mxu0 0
          %778 = vmatprep.subr.bf16.mxu0 0
          %779 = vmatpush1.bf16.xpose.msra.mxu0 0
          %780 = vmatprep.subr.bf16.mxu0 0
          %781 = vmatpush1.bf16.xpose.msra.mxu0 0
          %782 = vmatprep.mubr.bf16.mxu0 %v726
          %783 = vmatmul.mubr.bf16.gmra.mrb[0].mxu0 %v725
          %v784 = vpop.f32.mrb[0].mxu0
          %v785 = vadd.f32 %v734, %v784
          %v786 = vpop.f32.mrb[0].mxu0
          %v787 = vpop.f32.mrb[0].mxu0
          %v788 = vpop.f32.mrb[0].mxu0
          %789 = vdwg.mxu0
          %790 = vmatprep.subr.bf16.mxu0 %v745
          %791 = vmatpush1.bf16.xpose.msra.mxu0 %v744
          %792 = vmatprep.subr.bf16.mxu0 0
          %793 = vmatpush1.bf16.xpose.msra.mxu0 0
          %794 = vmatprep.subr.bf16.mxu0 0
          %795 = vmatpush1.bf16.xpose.msra.mxu0 0
          %796 = vmatprep.subr.bf16.mxu0 0
          %797 = vmatpush1.bf16.xpose.msra.mxu0 0
          %798 = vmatprep.subr.bf16.mxu0 0
          %799 = vmatpush1.bf16.xpose.msra.mxu0 0
          %800 = vmatprep.subr.bf16.mxu0 0
          %801 = vmatpush1.bf16.xpose.msra.mxu0 0
          %802 = vmatprep.subr.bf16.mxu0 0
          %803 = vmatpush1.bf16.xpose.msra.mxu0 0
          %804 = vmatprep.subr.bf16.mxu0 0
          %805 = vmatpush1.bf16.xpose.msra.mxu0 0
          %806 = vmatprep.subr.bf16.mxu0 0
          %807 = vmatpush1.bf16.xpose.msra.mxu0 0
          %808 = vmatprep.subr.bf16.mxu0 0
          %809 = vmatpush1.bf16.xpose.msra.mxu0 0
          %810 = vmatprep.subr.bf16.mxu0 0
          %811 = vmatpush1.bf16.xpose.msra.mxu0 0
          %812 = vmatprep.subr.bf16.mxu0 0
          %813 = vmatpush1.bf16.xpose.msra.mxu0 0
          %814 = vmatprep.subr.bf16.mxu0 0
          %815 = vmatpush1.bf16.xpose.msra.mxu0 0
          %816 = vmatprep.subr.bf16.mxu0 0
          %817 = vmatpush1.bf16.xpose.msra.mxu0 0
          %818 = vmatprep.subr.bf16.mxu0 0
          %819 = vmatpush1.bf16.xpose.msra.mxu0 0
          %820 = vmatprep.subr.bf16.mxu0 0
          %821 = vmatpush1.bf16.xpose.msra.mxu0 0
          %822 = vmatprep.mubr.bf16.mxu0 %v728
          %823 = vmatmul.mubr.bf16.gmra.mrb[0].mxu0 %v727
          %v824 = vpop.f32.mrb[0].mxu0
          %v825 = vadd.f32 %v785, %v824
          %v826 = vpop.f32.mrb[0].mxu0
          %v827 = vpop.f32.mrb[0].mxu0
          %v828 = vpop.f32.mrb[0].mxu0
          %829 = vdwg.mxu0
          %vm830 = vcmask 64512
          %831 = vst.msk [vmem:[%s285] sm:$0xff] %vm830, %v825
        $region52: #{msc_forward.1} parent=35 // pred_fallthru
          _
        %p832 = scmp.eq.s32.totalorder %s24, 1
        // Predicated region
        $region53: #{msc_forward.1} parent=35 // pred_check
          %p833 = pneg %p832
        $region54: #{msc_forward.1} parent=35 // pred_check_branch
          %835 = sbr.rel (%p833) target = $region56
        $region55: #{msc_forward.1} parent=35 // pred_region
          #allocation16 [shape = 'u32[9]{0}', space=smem, size = 0x24, scoped, tag = 'DMA stride descriptor']
          #allocation18 [shape = 'u32[9]{0}', space=smem, size = 0x24, scoped, tag = 'DMA stride descriptor']
          #allocation20 [shape = 'u32[9]{0}', space=smem, size = 0x24, scoped, tag = 'DMA stride descriptor']
          %s837 = sshll.u32 1, 14
          %s838 = sxor.u32 4294967295, %s837
          %s840 = sld [smem:[#allocation0]]
          %s841 = sadd.s32 2, %s840
          %s843 = sshll.u32 7, 26
          %s844 = sxor.u32 4294967295, %s843
          %s845 = sand.u32 0, %s844
          %s846 = sshll.u32 %s841, 26
          %s847 = sor.u32 %s845, %s846
          %s848 = sshll.u32 [#allocation3], 4
          %s849 = int_to_ptr.vmem [resolvable:$true] %s848
          %852 = sst [smem:[#allocation16]] 768
          %s853 = scalar_lea.smem [#allocation16], 1
          %854 = sst [smem:[%s853]] 768
          %s855 = scalar_lea.smem [#allocation16], 2
          %856 = sst [smem:[%s855]] 6
          %s857 = scalar_lea.smem [#allocation16], 3
          %858 = sst [smem:[%s857]] 64
          %s859 = scalar_lea.smem [#allocation16], 4
          %860 = sst [smem:[%s859]] 128
          %s861 = scalar_lea.smem [#allocation16], 5
          %862 = sst [smem:[%s861]] 2
          %s863 = scalar_lea.smem [#allocation16], 6
          %864 = sst [smem:[%s863]] 384
          %s865 = scalar_lea.smem [#allocation16], 7
          %866 = sst [smem:[%s865]] 64
          %s867 = scalar_lea.smem [#allocation16], 8
          %868 = sst [smem:[%s867]] 4
          %870 = dma.general %s2, 12288, %s849, [#allocation5], [#allocation15], [#allocation16], %s847, 0
          %s871 = scalar_lea.hbm %s2, 12288
          %s872 = scalar_lea.vmem [#allocation3], 768
          %s873 = scalar_lea.sflag [#allocation5], 1
          %s875 = sshll.u32 1, 14
          %s876 = sxor.u32 4294967295, %s875
          %s878 = sadd.s32 2, %s840
          %s880 = sshll.u32 7, 26
          %s881 = sxor.u32 4294967295, %s880
          %s882 = sand.u32 0, %s881
          %s883 = sshll.u32 %s878, 26
          %s884 = sor.u32 %s882, %s883
          %s885 = sshll.u32 %s872, 4
          %s886 = int_to_ptr.vmem [resolvable:$true] %s885
          %889 = sst [smem:[#allocation18]] 768
          %s890 = scalar_lea.smem [#allocation18], 1
          %891 = sst [smem:[%s890]] 768
          %s892 = scalar_lea.smem [#allocation18], 2
          %893 = sst [smem:[%s892]] 6
          %s894 = scalar_lea.smem [#allocation18], 3
          %895 = sst [smem:[%s894]] 64
          %s896 = scalar_lea.smem [#allocation18], 4
          %897 = sst [smem:[%s896]] 128
          %s898 = scalar_lea.smem [#allocation18], 5
          %899 = sst [smem:[%s898]] 2
          %s900 = scalar_lea.smem [#allocation18], 6
          %901 = sst [smem:[%s900]] 384
          %s902 = scalar_lea.smem [#allocation18], 7
          %903 = sst [smem:[%s902]] 64
          %s904 = scalar_lea.smem [#allocation18], 8
          %905 = sst [smem:[%s904]] 4
          %907 = dma.general %s871, 12288, %s886, %s873, [#allocation17], [#allocation18], %s884, 0
          %s908 = scalar_lea.hbm %s2, 24576
          %s909 = scalar_lea.vmem [#allocation3], 1536
          %s910 = scalar_lea.sflag [#allocation5], 2
          %s912 = sshll.u32 1, 14
          %s913 = sxor.u32 4294967295, %s912
          %s915 = sadd.s32 2, %s840
          %s917 = sshll.u32 7, 26
          %s918 = sxor.u32 4294967295, %s917
          %s919 = sand.u32 0, %s918
          %s920 = sshll.u32 %s915, 26
          %s921 = sor.u32 %s919, %s920
          %s922 = sshll.u32 %s909, 4
          %s923 = int_to_ptr.vmem [resolvable:$true] %s922
          %926 = sst [smem:[#allocation20]] 768
          %s927 = scalar_lea.smem [#allocation20], 1
          %928 = sst [smem:[%s927]] 768
          %s929 = scalar_lea.smem [#allocation20], 2
          %930 = sst [smem:[%s929]] 6
          %s931 = scalar_lea.smem [#allocation20], 3
          %932 = sst [smem:[%s931]] 64
          %s933 = scalar_lea.smem [#allocation20], 4
          %934 = sst [smem:[%s933]] 128
          %s935 = scalar_lea.smem [#allocation20], 5
          %936 = sst [smem:[%s935]] 2
          %s937 = scalar_lea.smem [#allocation20], 6
          %938 = sst [smem:[%s937]] 384
          %s939 = scalar_lea.smem [#allocation20], 7
          %940 = sst [smem:[%s939]] 64
          %s941 = scalar_lea.smem [#allocation20], 8
          %942 = sst [smem:[%s941]] 4
          %944 = dma.general %s908, 12288, %s923, %s910, [#allocation19], [#allocation20], %s921, 0
          %s945 = smul.u32 4, 32
          %s946 = smul.u32 %s945, 6
          %s947 = sshll.u32 %s946, 4
          %948 = dma.done [#allocation5], %s947
          %v949 = vld [vmem:[%s0] sm:$0xff]
          %v950 = vld [vmem:[#allocation3] sm:$0xff]
          %v951 = vld [vmem:[#allocation3 + $0x8] sm:$0xff]
          %v952 = vld [vmem:[#allocation3 + $0x10] sm:$0xff]
          %v953 = vld [vmem:[#allocation3 + $0x18] sm:$0xff]
          %v954 = vld [vmem:[#allocation3 + $0x20] sm:$0xff]
          %v955 = vld [vmem:[#allocation3 + $0x28] sm:$0xff]
          %v956 = vld [vmem:[#allocation3 + $0x30] sm:$0xff]
          %v957 = vld [vmem:[#allocation3 + $0x38] sm:$0xff]
          %v958 = vld [vmem:[#allocation3 + $0x40] sm:$0xff]
          %v959 = vld [vmem:[#allocation3 + $0x48] sm:$0xff]
          %v960 = vld [vmem:[#allocation3 + $0x50] sm:$0xff]
          %v961 = vld [vmem:[#allocation3 + $0x58] sm:$0xff]
          %v962 = vld [vmem:[#allocation3 + $0x60] sm:$0xff]
          %v963 = vld [vmem:[#allocation3 + $0x68] sm:$0xff]
          %v964 = vld [vmem:[#allocation3 + $0x70] sm:$0xff]
          %v965 = vld [vmem:[#allocation3 + $0x78] sm:$0xff]
          %v966 = vld [vmem:[#allocation3 + $0x80] sm:$0xff]
          %v967 = vld [vmem:[#allocation3 + $0x88] sm:$0xff]
          %v968 = vld [vmem:[#allocation3 + $0x90] sm:$0xff]
          %v969 = vld [vmem:[#allocation3 + $0x98] sm:$0xff]
          %v970 = vld [vmem:[#allocation3 + $0xa0] sm:$0xff]
          %v971 = vld [vmem:[#allocation3 + $0xa8] sm:$0xff]
          %v972 = vld [vmem:[#allocation3 + $0xb0] sm:$0xff]
          %v973 = vld [vmem:[#allocation3 + $0xb8] sm:$0xff]
          %v974 = vld [vmem:[#allocation3 + $0xc0] sm:$0xff]
          %v975 = vld [vmem:[#allocation3 + $0xc8] sm:$0xff]
          %v976 = vld [vmem:[#allocation3 + $0xd0] sm:$0xff]
          %v977 = vld [vmem:[#allocation3 + $0xd8] sm:$0xff]
          %v978 = vld [vmem:[#allocation3 + $0xe0] sm:$0xff]
          %v979 = vld [vmem:[#allocation3 + $0xe8] sm:$0xff]
          %v980 = vld [vmem:[#allocation3 + $0xf0] sm:$0xff]
          %v981 = vld [vmem:[#allocation3 + $0xf8] sm:$0xff]
          %v982 = vld [vmem:[#allocation3 + $0x100] sm:$0xff]
          %v983 = vld [vmem:[#allocation3 + $0x108] sm:$0xff]
          %v984 = vld [vmem:[#allocation3 + $0x110] sm:$0xff]
          %v985 = vld [vmem:[#allocation3 + $0x118] sm:$0xff]
          %v986 = vld [vmem:[#allocation3 + $0x120] sm:$0xff]
          %v987 = vld [vmem:[#allocation3 + $0x128] sm:$0xff]
          %v988 = vld [vmem:[#allocation3 + $0x130] sm:$0xff]
          %v989 = vld [vmem:[#allocation3 + $0x138] sm:$0xff]
          %v990 = vld [vmem:[#allocation3 + $0x140] sm:$0xff]
          %v991 = vld [vmem:[#allocation3 + $0x148] sm:$0xff]
          %v992 = vld [vmem:[#allocation3 + $0x150] sm:$0xff]
          %v993 = vld [vmem:[#allocation3 + $0x158] sm:$0xff]
          %v994 = vld [vmem:[#allocation3 + $0x160] sm:$0xff]
          %v995 = vld [vmem:[#allocation3 + $0x168] sm:$0xff]
          %v996 = vld [vmem:[#allocation3 + $0x170] sm:$0xff]
          %v997 = vld [vmem:[#allocation3 + $0x178] sm:$0xff]
          %v998 = vld [vmem:[#allocation3 + $0x180] sm:$0xff]
          %v999 = vld [vmem:[#allocation3 + $0x188] sm:$0xff]
          %v1000 = vld [vmem:[#allocation3 + $0x190] sm:$0xff]
          %v1001 = vld [vmem:[#allocation3 + $0x198] sm:$0xff]
          %v1002 = vld [vmem:[#allocation3 + $0x1a0] sm:$0xff]
          %v1003 = vld [vmem:[#allocation3 + $0x1a8] sm:$0xff]
          %v1004 = vld [vmem:[#allocation3 + $0x1b0] sm:$0xff]
          %v1005 = vld [vmem:[#allocation3 + $0x1b8] sm:$0xff]
          %v1006 = vld [vmem:[#allocation3 + $0x1c0] sm:$0xff]
          %v1007 = vld [vmem:[#allocation3 + $0x1c8] sm:$0xff]
          %v1008 = vld [vmem:[#allocation3 + $0x1d0] sm:$0xff]
          %v1009 = vld [vmem:[#allocation3 + $0x1d8] sm:$0xff]
          %v1010 = vld [vmem:[#allocation3 + $0x1e0] sm:$0xff]
          %v1011 = vld [vmem:[#allocation3 + $0x1e8] sm:$0xff]
          %v1012 = vld [vmem:[#allocation3 + $0x1f0] sm:$0xff]
          %v1013 = vld [vmem:[#allocation3 + $0x1f8] sm:$0xff]
          %v1014 = vld [vmem:[#allocation3 + $0x200] sm:$0xff]
          %v1015 = vld [vmem:[#allocation3 + $0x208] sm:$0xff]
          %v1016 = vld [vmem:[#allocation3 + $0x210] sm:$0xff]
          %v1017 = vld [vmem:[#allocation3 + $0x218] sm:$0xff]
          %v1018 = vld [vmem:[#allocation3 + $0x220] sm:$0xff]
          %v1019 = vld [vmem:[#allocation3 + $0x228] sm:$0xff]
          %v1020 = vld [vmem:[#allocation3 + $0x230] sm:$0xff]
          %v1021 = vld [vmem:[#allocation3 + $0x238] sm:$0xff]
          %v1022 = vld [vmem:[#allocation3 + $0x240] sm:$0xff]
          %v1023 = vld [vmem:[#allocation3 + $0x248] sm:$0xff]
          %v1024 = vld [vmem:[#allocation3 + $0x250] sm:$0xff]
          %v1025 = vld [vmem:[#allocation3 + $0x258] sm:$0xff]
          %v1026 = vld [vmem:[#allocation3 + $0x260] sm:$0xff]
          %v1027 = vld [vmem:[#allocation3 + $0x268] sm:$0xff]
          %v1028 = vld [vmem:[#allocation3 + $0x270] sm:$0xff]
          %v1029 = vld [vmem:[#allocation3 + $0x278] sm:$0xff]
          %v1030 = vld [vmem:[#allocation3 + $0x280] sm:$0xff]
          %v1031 = vld [vmem:[#allocation3 + $0x288] sm:$0xff]
          %v1032 = vld [vmem:[#allocation3 + $0x290] sm:$0xff]
          %v1033 = vld [vmem:[#allocation3 + $0x298] sm:$0xff]
          %v1034 = vld [vmem:[#allocation3 + $0x2a0] sm:$0xff]
          %v1035 = vld [vmem:[#allocation3 + $0x2a8] sm:$0xff]
          %v1036 = vld [vmem:[#allocation3 + $0x2b0] sm:$0xff]
          %v1037 = vld [vmem:[#allocation3 + $0x2b8] sm:$0xff]
          %v1038 = vld [vmem:[#allocation3 + $0x2c0] sm:$0xff]
          %v1039 = vld [vmem:[#allocation3 + $0x2c8] sm:$0xff]
          %v1040 = vld [vmem:[#allocation3 + $0x2d0] sm:$0xff]
          %v1041 = vld [vmem:[#allocation3 + $0x2d8] sm:$0xff]
          %v1042 = vld [vmem:[#allocation3 + $0x2e0] sm:$0xff]
          %v1043 = vld [vmem:[#allocation3 + $0x2e8] sm:$0xff]
          %v1044 = vld [vmem:[#allocation3 + $0x2f0] sm:$0xff]
          %v1045 = vld [vmem:[#allocation3 + $0x2f8] sm:$0xff]
          %s1046 = sshll.u32 %s946, 4
          %1047 = dma.done %s873, %s1046
          %v1048 = vld [vmem:[%s0 + $0x8] sm:$0xff]
          %v1049 = vld [vmem:[%s872] sm:$0xff]
          %v1050 = vld [vmem:[%s872 + $0x8] sm:$0xff]
          %v1051 = vld [vmem:[%s872 + $0x10] sm:$0xff]
          %v1052 = vld [vmem:[%s872 + $0x18] sm:$0xff]
          %v1053 = vld [vmem:[%s872 + $0x20] sm:$0xff]
          %v1054 = vld [vmem:[%s872 + $0x28] sm:$0xff]
          %v1055 = vld [vmem:[%s872 + $0x30] sm:$0xff]
          %v1056 = vld [vmem:[%s872 + $0x38] sm:$0xff]
          %v1057 = vld [vmem:[%s872 + $0x40] sm:$0xff]
          %v1058 = vld [vmem:[%s872 + $0x48] sm:$0xff]
          %v1059 = vld [vmem:[%s872 + $0x50] sm:$0xff]
          %v1060 = vld [vmem:[%s872 + $0x58] sm:$0xff]
          %v1061 = vld [vmem:[%s872 + $0x60] sm:$0xff]
          %v1062 = vld [vmem:[%s872 + $0x68] sm:$0xff]
          %v1063 = vld [vmem:[%s872 + $0x70] sm:$0xff]
          %v1064 = vld [vmem:[%s872 + $0x78] sm:$0xff]
          %v1065 = vld [vmem:[%s872 + $0x80] sm:$0xff]
          %v1066 = vld [vmem:[%s872 + $0x88] sm:$0xff]
          %v1067 = vld [vmem:[%s872 + $0x90] sm:$0xff]
          %v1068 = vld [vmem:[%s872 + $0x98] sm:$0xff]
          %v1069 = vld [vmem:[%s872 + $0xa0] sm:$0xff]
          %v1070 = vld [vmem:[%s872 + $0xa8] sm:$0xff]
          %v1071 = vld [vmem:[%s872 + $0xb0] sm:$0xff]
          %v1072 = vld [vmem:[%s872 + $0xb8] sm:$0xff]
          %v1073 = vld [vmem:[%s872 + $0xc0] sm:$0xff]
          %v1074 = vld [vmem:[%s872 + $0xc8] sm:$0xff]
          %v1075 = vld [vmem:[%s872 + $0xd0] sm:$0xff]
          %v1076 = vld [vmem:[%s872 + $0xd8] sm:$0xff]
          %v1077 = vld [vmem:[%s872 + $0xe0] sm:$0xff]
          %v1078 = vld [vmem:[%s872 + $0xe8] sm:$0xff]
          %v1079 = vld [vmem:[%s872 + $0xf0] sm:$0xff]
          %v1080 = vld [vmem:[%s872 + $0xf8] sm:$0xff]
          %v1081 = vld [vmem:[%s872 + $0x100] sm:$0xff]
          %v1082 = vld [vmem:[%s872 + $0x108] sm:$0xff]
          %v1083 = vld [vmem:[%s872 + $0x110] sm:$0xff]
          %v1084 = vld [vmem:[%s872 + $0x118] sm:$0xff]
          %v1085 = vld [vmem:[%s872 + $0x120] sm:$0xff]
          %v1086 = vld [vmem:[%s872 + $0x128] sm:$0xff]
          %v1087 = vld [vmem:[%s872 + $0x130] sm:$0xff]
          %v1088 = vld [vmem:[%s872 + $0x138] sm:$0xff]
          %v1089 = vld [vmem:[%s872 + $0x140] sm:$0xff]
          %v1090 = vld [vmem:[%s872 + $0x148] sm:$0xff]
          %v1091 = vld [vmem:[%s872 + $0x150] sm:$0xff]
          %v1092 = vld [vmem:[%s872 + $0x158] sm:$0xff]
          %v1093 = vld [vmem:[%s872 + $0x160] sm:$0xff]
          %v1094 = vld [vmem:[%s872 + $0x168] sm:$0xff]
          %v1095 = vld [vmem:[%s872 + $0x170] sm:$0xff]
          %v1096 = vld [vmem:[%s872 + $0x178] sm:$0xff]
          %v1097 = vld [vmem:[%s872 + $0x180] sm:$0xff]
          %v1098 = vld [vmem:[%s872 + $0x188] sm:$0xff]
          %v1099 = vld [vmem:[%s872 + $0x190] sm:$0xff]
          %v1100 = vld [vmem:[%s872 + $0x198] sm:$0xff]
          %v1101 = vld [vmem:[%s872 + $0x1a0] sm:$0xff]
          %v1102 = vld [vmem:[%s872 + $0x1a8] sm:$0xff]
          %v1103 = vld [vmem:[%s872 + $0x1b0] sm:$0xff]
          %v1104 = vld [vmem:[%s872 + $0x1b8] sm:$0xff]
          %v1105 = vld [vmem:[%s872 + $0x1c0] sm:$0xff]
          %v1106 = vld [vmem:[%s872 + $0x1c8] sm:$0xff]
          %v1107 = vld [vmem:[%s872 + $0x1d0] sm:$0xff]
          %v1108 = vld [vmem:[%s872 + $0x1d8] sm:$0xff]
          %v1109 = vld [vmem:[%s872 + $0x1e0] sm:$0xff]
          %v1110 = vld [vmem:[%s872 + $0x1e8] sm:$0xff]
          %v1111 = vld [vmem:[%s872 + $0x1f0] sm:$0xff]
          %v1112 = vld [vmem:[%s872 + $0x1f8] sm:$0xff]
          %v1113 = vld [vmem:[%s872 + $0x200] sm:$0xff]
          %v1114 = vld [vmem:[%s872 + $0x208] sm:$0xff]
          %v1115 = vld [vmem:[%s872 + $0x210] sm:$0xff]
          %v1116 = vld [vmem:[%s872 + $0x218] sm:$0xff]
          %v1117 = vld [vmem:[%s872 + $0x220] sm:$0xff]
          %v1118 = vld [vmem:[%s872 + $0x228] sm:$0xff]
          %v1119 = vld [vmem:[%s872 + $0x230] sm:$0xff]
          %v1120 = vld [vmem:[%s872 + $0x238] sm:$0xff]
          %v1121 = vld [vmem:[%s872 + $0x240] sm:$0xff]
          %v1122 = vld [vmem:[%s872 + $0x248] sm:$0xff]
          %v1123 = vld [vmem:[%s872 + $0x250] sm:$0xff]
          %v1124 = vld [vmem:[%s872 + $0x258] sm:$0xff]
          %v1125 = vld [vmem:[%s872 + $0x260] sm:$0xff]
          %v1126 = vld [vmem:[%s872 + $0x268] sm:$0xff]
          %v1127 = vld [vmem:[%s872 + $0x270] sm:$0xff]
          %v1128 = vld [vmem:[%s872 + $0x278] sm:$0xff]
          %v1129 = vld [vmem:[%s872 + $0x280] sm:$0xff]
          %v1130 = vld [vmem:[%s872 + $0x288] sm:$0xff]
          %v1131 = vld [vmem:[%s872 + $0x290] sm:$0xff]
          %v1132 = vld [vmem:[%s872 + $0x298] sm:$0xff]
          %v1133 = vld [vmem:[%s872 + $0x2a0] sm:$0xff]
          %v1134 = vld [vmem:[%s872 + $0x2a8] sm:$0xff]
          %v1135 = vld [vmem:[%s872 + $0x2b0] sm:$0xff]
          %v1136 = vld [vmem:[%s872 + $0x2b8] sm:$0xff]
          %v1137 = vld [vmem:[%s872 + $0x2c0] sm:$0xff]
          %v1138 = vld [vmem:[%s872 + $0x2c8] sm:$0xff]
          %v1139 = vld [vmem:[%s872 + $0x2d0] sm:$0xff]
          %v1140 = vld [vmem:[%s872 + $0x2d8] sm:$0xff]
          %v1141 = vld [vmem:[%s872 + $0x2e0] sm:$0xff]
          %v1142 = vld [vmem:[%s872 + $0x2e8] sm:$0xff]
          %v1143 = vld [vmem:[%s872 + $0x2f0] sm:$0xff]
          %v1144 = vld [vmem:[%s872 + $0x2f8] sm:$0xff]
          %v1146 = vunpack.c.l.b16 %v1048
          %v1147 = vunpack.c.h.b16 %v1048
          %v1148 = vpack.c.b16 %v1146, %v1146
          %v1149 = vpack.c.b16 %v1147, %v1147
          %1152 = vmatprep.subr.bf16.mxu0 %v1050
          %1153 = vmatpush1.bf16.msra.mxu0 %v1049
          %1154 = vmatprep.subr.bf16.mxu0 %v1056
          %1155 = vmatpush1.bf16.msra.mxu0 %v1055
          %1156 = vmatprep.subr.bf16.mxu0 %v1062
          %1157 = vmatpush1.bf16.msra.mxu0 %v1061
          %1158 = vmatprep.subr.bf16.mxu0 %v1068
          %1159 = vmatpush1.bf16.msra.mxu0 %v1067
          %1160 = vmatprep.subr.bf16.mxu0 %v1074
          %1161 = vmatpush1.bf16.msra.mxu0 %v1073
          %1162 = vmatprep.subr.bf16.mxu0 %v1080
          %1163 = vmatpush1.bf16.msra.mxu0 %v1079
          %1164 = vmatprep.subr.bf16.mxu0 %v1086
          %1165 = vmatpush1.bf16.msra.mxu0 %v1085
          %1166 = vmatprep.subr.bf16.mxu0 %v1092
          %1167 = vmatpush1.bf16.msra.mxu0 %v1091
          %1168 = vmatprep.subr.bf16.mxu0 %v1098
          %1169 = vmatpush1.bf16.msra.mxu0 %v1097
          %1170 = vmatprep.subr.bf16.mxu0 %v1104
          %1171 = vmatpush1.bf16.msra.mxu0 %v1103
          %1172 = vmatprep.subr.bf16.mxu0 %v1110
          %1173 = vmatpush1.bf16.msra.mxu0 %v1109
          %1174 = vmatprep.subr.bf16.mxu0 %v1116
          %1175 = vmatpush1.bf16.msra.mxu0 %v1115
          %1176 = vmatprep.subr.bf16.mxu0 %v1122
          %1177 = vmatpush1.bf16.msra.mxu0 %v1121
          %1178 = vmatprep.subr.bf16.mxu0 %v1128
          %1179 = vmatpush1.bf16.msra.mxu0 %v1127
          %1180 = vmatprep.subr.bf16.mxu0 %v1134
          %1181 = vmatpush1.bf16.msra.mxu0 %v1133
          %1182 = vmatprep.subr.bf16.mxu0 %v1140
          %1183 = vmatpush1.bf16.msra.mxu0 %v1139
          %1184 = vmatprep.mubr.bf16.mxu0 %v1149
          %1185 = vmatmul.mubr.bf16.gmra.mrb[0].mxu0 %v1148
          %v1186 = vpop.f32.mrb[0].mxu0
          %v1187 = vadd.f32 0.0, %v1186
          %v1188 = vpop.f32.mrb[0].mxu0
          %v1189 = vadd.f32 0.0, %v1188
          %v1190 = vpop.f32.mrb[0].mxu0
          %v1191 = vpop.f32.mrb[0].mxu0
          %1192 = vdwg.mxu0
          %1193 = vmatprep.subr.bf16.mxu0 %v1052
          %1194 = vmatpush1.bf16.msra.mxu0 %v1051
          %1195 = vmatprep.subr.bf16.mxu0 %v1058
          %1196 = vmatpush1.bf16.msra.mxu0 %v1057
          %1197 = vmatprep.subr.bf16.mxu0 %v1064
          %1198 = vmatpush1.bf16.msra.mxu0 %v1063
          %1199 = vmatprep.subr.bf16.mxu0 %v1070
          %1200 = vmatpush1.bf16.msra.mxu0 %v1069
          %1201 = vmatprep.subr.bf16.mxu0 %v1076
          %1202 = vmatpush1.bf16.msra.mxu0 %v1075
          %1203 = vmatprep.subr.bf16.mxu0 %v1082
          %1204 = vmatpush1.bf16.msra.mxu0 %v1081
          %1205 = vmatprep.subr.bf16.mxu0 %v1088
          %1206 = vmatpush1.bf16.msra.mxu0 %v1087
          %1207 = vmatprep.subr.bf16.mxu0 %v1094
          %1208 = vmatpush1.bf16.msra.mxu0 %v1093
          %1209 = vmatprep.subr.bf16.mxu0 %v1100
          %1210 = vmatpush1.bf16.msra.mxu0 %v1099
          %1211 = vmatprep.subr.bf16.mxu0 %v1106
          %1212 = vmatpush1.bf16.msra.mxu0 %v1105
          %1213 = vmatprep.subr.bf16.mxu0 %v1112
          %1214 = vmatpush1.bf16.msra.mxu0 %v1111
          %1215 = vmatprep.subr.bf16.mxu0 %v1118
          %1216 = vmatpush1.bf16.msra.mxu0 %v1117
          %1217 = vmatprep.subr.bf16.mxu0 %v1124
          %1218 = vmatpush1.bf16.msra.mxu0 %v1123
          %1219 = vmatprep.subr.bf16.mxu0 %v1130
          %1220 = vmatpush1.bf16.msra.mxu0 %v1129
          %1221 = vmatprep.subr.bf16.mxu0 %v1136
          %1222 = vmatpush1.bf16.msra.mxu0 %v1135
          %1223 = vmatprep.subr.bf16.mxu0 %v1142
          %1224 = vmatpush1.bf16.msra.mxu0 %v1141
          %1225 = vmatprep.mubr.bf16.mxu0 %v1149
          %1226 = vmatmul.mubr.bf16.gmra.mrb[0].mxu0 %v1148
          %v1227 = vpop.f32.mrb[0].mxu0
          %v1228 = vadd.f32 0.0, %v1227
          %v1229 = vpop.f32.mrb[0].mxu0
          %v1230 = vadd.f32 0.0, %v1229
          %v1231 = vpop.f32.mrb[0].mxu0
          %v1232 = vpop.f32.mrb[0].mxu0
          %1233 = vdwg.mxu0
          %1234 = vmatprep.subr.bf16.mxu0 %v1054
          %1235 = vmatpush1.bf16.msra.mxu0 %v1053
          %1236 = vmatprep.subr.bf16.mxu0 %v1060
          %1237 = vmatpush1.bf16.msra.mxu0 %v1059
          %1238 = vmatprep.subr.bf16.mxu0 %v1066
          %1239 = vmatpush1.bf16.msra.mxu0 %v1065
          %1240 = vmatprep.subr.bf16.mxu0 %v1072
          %1241 = vmatpush1.bf16.msra.mxu0 %v1071
          %1242 = vmatprep.subr.bf16.mxu0 %v1078
          %1243 = vmatpush1.bf16.msra.mxu0 %v1077
          %1244 = vmatprep.subr.bf16.mxu0 %v1084
          %1245 = vmatpush1.bf16.msra.mxu0 %v1083
          %1246 = vmatprep.subr.bf16.mxu0 %v1090
          %1247 = vmatpush1.bf16.msra.mxu0 %v1089
          %1248 = vmatprep.subr.bf16.mxu0 %v1096
          %1249 = vmatpush1.bf16.msra.mxu0 %v1095
          %1250 = vmatprep.subr.bf16.mxu0 %v1102
          %1251 = vmatpush1.bf16.msra.mxu0 %v1101
          %1252 = vmatprep.subr.bf16.mxu0 %v1108
          %1253 = vmatpush1.bf16.msra.mxu0 %v1107
          %1254 = vmatprep.subr.bf16.mxu0 %v1114
          %1255 = vmatpush1.bf16.msra.mxu0 %v1113
          %1256 = vmatprep.subr.bf16.mxu0 %v1120
          %1257 = vmatpush1.bf16.msra.mxu0 %v1119
          %1258 = vmatprep.subr.bf16.mxu0 %v1126
          %1259 = vmatpush1.bf16.msra.mxu0 %v1125
          %1260 = vmatprep.subr.bf16.mxu0 %v1132
          %1261 = vmatpush1.bf16.msra.mxu0 %v1131
          %1262 = vmatprep.subr.bf16.mxu0 %v1138
          %1263 = vmatpush1.bf16.msra.mxu0 %v1137
          %1264 = vmatprep.subr.bf16.mxu0 %v1144
          %1265 = vmatpush1.bf16.msra.mxu0 %v1143
          %1266 = vmatprep.mubr.bf16.mxu0 %v1149
          %1267 = vmatmul.mubr.bf16.gmra.mrb[0].mxu0 %v1148
          %v1268 = vpop.f32.mrb[0].mxu0
          %v1269 = vadd.f32 0.0, %v1268
          %v1270 = vpop.f32.mrb[0].mxu0
          %v1271 = vadd.f32 0.0, %v1270
          %v1272 = vpop.f32.mrb[0].mxu0
          %v1273 = vpop.f32.mrb[0].mxu0
          %1274 = vdwg.mxu0
          %v1276 = vunpack.c.l.b16 %v949
          %v1277 = vunpack.c.h.b16 %v949
          %v1278 = vpack.c.b16 %v1276, %v1276
          %v1279 = vpack.c.b16 %v1277, %v1277
          %1282 = vmatprep.subr.bf16.mxu0 %v951
          %1283 = vmatpush1.bf16.msra.mxu0 %v950
          %1284 = vmatprep.subr.bf16.mxu0 %v957
          %1285 = vmatpush1.bf16.msra.mxu0 %v956
          %1286 = vmatprep.subr.bf16.mxu0 %v963
          %1287 = vmatpush1.bf16.msra.mxu0 %v962
          %1288 = vmatprep.subr.bf16.mxu0 %v969
          %1289 = vmatpush1.bf16.msra.mxu0 %v968
          %1290 = vmatprep.subr.bf16.mxu0 %v975
          %1291 = vmatpush1.bf16.msra.mxu0 %v974
          %1292 = vmatprep.subr.bf16.mxu0 %v981
          %1293 = vmatpush1.bf16.msra.mxu0 %v980
          %1294 = vmatprep.subr.bf16.mxu0 %v987
          %1295 = vmatpush1.bf16.msra.mxu0 %v986
          %1296 = vmatprep.subr.bf16.mxu0 %v993
          %1297 = vmatpush1.bf16.msra.mxu0 %v992
          %1298 = vmatprep.subr.bf16.mxu0 %v999
          %1299 = vmatpush1.bf16.msra.mxu0 %v998
          %1300 = vmatprep.subr.bf16.mxu0 %v1005
          %1301 = vmatpush1.bf16.msra.mxu0 %v1004
          %1302 = vmatprep.subr.bf16.mxu0 %v1011
          %1303 = vmatpush1.bf16.msra.mxu0 %v1010
          %1304 = vmatprep.subr.bf16.mxu0 %v1017
          %1305 = vmatpush1.bf16.msra.mxu0 %v1016
          %1306 = vmatprep.subr.bf16.mxu0 %v1023
          %1307 = vmatpush1.bf16.msra.mxu0 %v1022
          %1308 = vmatprep.subr.bf16.mxu0 %v1029
          %1309 = vmatpush1.bf16.msra.mxu0 %v1028
          %1310 = vmatprep.subr.bf16.mxu0 %v1035
          %1311 = vmatpush1.bf16.msra.mxu0 %v1034
          %1312 = vmatprep.subr.bf16.mxu0 %v1041
          %1313 = vmatpush1.bf16.msra.mxu0 %v1040
          %1314 = vmatprep.mubr.bf16.mxu0 %v1279
          %1315 = vmatmul.mubr.bf16.gmra.mrb[0].mxu0 %v1278
          %v1316 = vpop.f32.mrb[0].mxu0
          %v1317 = vadd.f32 %v1187, %v1316
          %v1318 = vpop.f32.mrb[0].mxu0
          %v1319 = vadd.f32 %v1189, %v1318
          %v1320 = vpop.f32.mrb[0].mxu0
          %v1321 = vpop.f32.mrb[0].mxu0
          %1322 = vdwg.mxu0
          %1323 = vmatprep.subr.bf16.mxu0 %v953
          %1324 = vmatpush1.bf16.msra.mxu0 %v952
          %1325 = vmatprep.subr.bf16.mxu0 %v959
          %1326 = vmatpush1.bf16.msra.mxu0 %v958
          %1327 = vmatprep.subr.bf16.mxu0 %v965
          %1328 = vmatpush1.bf16.msra.mxu0 %v964
          %1329 = vmatprep.subr.bf16.mxu0 %v971
          %1330 = vmatpush1.bf16.msra.mxu0 %v970
          %1331 = vmatprep.subr.bf16.mxu0 %v977
          %1332 = vmatpush1.bf16.msra.mxu0 %v976
          %1333 = vmatprep.subr.bf16.mxu0 %v983
          %1334 = vmatpush1.bf16.msra.mxu0 %v982
          %1335 = vmatprep.subr.bf16.mxu0 %v989
          %1336 = vmatpush1.bf16.msra.mxu0 %v988
          %1337 = vmatprep.subr.bf16.mxu0 %v995
          %1338 = vmatpush1.bf16.msra.mxu0 %v994
          %1339 = vmatprep.subr.bf16.mxu0 %v1001
          %1340 = vmatpush1.bf16.msra.mxu0 %v1000
          %1341 = vmatprep.subr.bf16.mxu0 %v1007
          %1342 = vmatpush1.bf16.msra.mxu0 %v1006
          %1343 = vmatprep.subr.bf16.mxu0 %v1013
          %1344 = vmatpush1.bf16.msra.mxu0 %v1012
          %1345 = vmatprep.subr.bf16.mxu0 %v1019
          %1346 = vmatpush1.bf16.msra.mxu0 %v1018
          %1347 = vmatprep.subr.bf16.mxu0 %v1025
          %1348 = vmatpush1.bf16.msra.mxu0 %v1024
          %1349 = vmatprep.subr.bf16.mxu0 %v1031
          %1350 = vmatpush1.bf16.msra.mxu0 %v1030
          %1351 = vmatprep.subr.bf16.mxu0 %v1037
          %1352 = vmatpush1.bf16.msra.mxu0 %v1036
          %1353 = vmatprep.subr.bf16.mxu0 %v1043
          %1354 = vmatpush1.bf16.msra.mxu0 %v1042
          %1355 = vmatprep.mubr.bf16.mxu0 %v1279
          %1356 = vmatmul.mubr.bf16.gmra.mrb[0].mxu0 %v1278
          %v1357 = vpop.f32.mrb[0].mxu0
          %v1358 = vadd.f32 %v1228, %v1357
          %v1359 = vpop.f32.mrb[0].mxu0
          %v1360 = vadd.f32 %v1230, %v1359
          %v1361 = vpop.f32.mrb[0].mxu0
          %v1362 = vpop.f32.mrb[0].mxu0
          %1363 = vdwg.mxu0
          %1364 = vmatprep.subr.bf16.mxu0 %v955
          %1365 = vmatpush1.bf16.msra.mxu0 %v954
          %1366 = vmatprep.subr.bf16.mxu0 %v961
          %1367 = vmatpush1.bf16.msra.mxu0 %v960
          %1368 = vmatprep.subr.bf16.mxu0 %v967
          %1369 = vmatpush1.bf16.msra.mxu0 %v966
          %1370 = vmatprep.subr.bf16.mxu0 %v973
          %1371 = vmatpush1.bf16.msra.mxu0 %v972
          %1372 = vmatprep.subr.bf16.mxu0 %v979
          %1373 = vmatpush1.bf16.msra.mxu0 %v978
          %1374 = vmatprep.subr.bf16.mxu0 %v985
          %1375 = vmatpush1.bf16.msra.mxu0 %v984
          %1376 = vmatprep.subr.bf16.mxu0 %v991
          %1377 = vmatpush1.bf16.msra.mxu0 %v990
          %1378 = vmatprep.subr.bf16.mxu0 %v997
          %1379 = vmatpush1.bf16.msra.mxu0 %v996
          %1380 = vmatprep.subr.bf16.mxu0 %v1003
          %1381 = vmatpush1.bf16.msra.mxu0 %v1002
          %1382 = vmatprep.subr.bf16.mxu0 %v1009
          %1383 = vmatpush1.bf16.msra.mxu0 %v1008
          %1384 = vmatprep.subr.bf16.mxu0 %v1015
          %1385 = vmatpush1.bf16.msra.mxu0 %v1014
          %1386 = vmatprep.subr.bf16.mxu0 %v1021
          %1387 = vmatpush1.bf16.msra.mxu0 %v1020
          %1388 = vmatprep.subr.bf16.mxu0 %v1027
          %1389 = vmatpush1.bf16.msra.mxu0 %v1026
          %1390 = vmatprep.subr.bf16.mxu0 %v1033
          %1391 = vmatpush1.bf16.msra.mxu0 %v1032
          %1392 = vmatprep.subr.bf16.mxu0 %v1039
          %1393 = vmatpush1.bf16.msra.mxu0 %v1038
          %1394 = vmatprep.subr.bf16.mxu0 %v1045
          %1395 = vmatpush1.bf16.msra.mxu0 %v1044
          %1396 = vmatprep.mubr.bf16.mxu0 %v1279
          %1397 = vmatmul.mubr.bf16.gmra.mrb[0].mxu0 %v1278
          %v1398 = vpop.f32.mrb[0].mxu0
          %v1399 = vadd.f32 %v1269, %v1398
          %v1400 = vpop.f32.mrb[0].mxu0
          %v1401 = vadd.f32 %v1271, %v1400
          %v1402 = vpop.f32.mrb[0].mxu0
          %v1403 = vpop.f32.mrb[0].mxu0
          %1404 = vdwg.mxu0
          %s1405 = sshll.u32 %s946, 4
          %1406 = dma.done %s910, %s1405
          %v1407 = vld [vmem:[%s0 + $0x10] sm:$0xff]
          %v1408 = vld [vmem:[%s909] sm:$0xff]
          %v1409 = vld [vmem:[%s909 + $0x8] sm:$0xff]
          %v1410 = vld [vmem:[%s909 + $0x10] sm:$0xff]
          %v1411 = vld [vmem:[%s909 + $0x18] sm:$0xff]
          %v1412 = vld [vmem:[%s909 + $0x20] sm:$0xff]
          %v1413 = vld [vmem:[%s909 + $0x28] sm:$0xff]
          %v1414 = vld [vmem:[%s909 + $0x30] sm:$0xff]
          %v1415 = vld [vmem:[%s909 + $0x38] sm:$0xff]
          %v1416 = vld [vmem:[%s909 + $0x40] sm:$0xff]
          %v1417 = vld [vmem:[%s909 + $0x48] sm:$0xff]
          %v1418 = vld [vmem:[%s909 + $0x50] sm:$0xff]
          %v1419 = vld [vmem:[%s909 + $0x58] sm:$0xff]
          %v1420 = vld [vmem:[%s909 + $0x60] sm:$0xff]
          %v1421 = vld [vmem:[%s909 + $0x68] sm:$0xff]
          %v1422 = vld [vmem:[%s909 + $0x70] sm:$0xff]
          %v1423 = vld [vmem:[%s909 + $0x78] sm:$0xff]
          %v1424 = vld [vmem:[%s909 + $0x80] sm:$0xff]
          %v1425 = vld [vmem:[%s909 + $0x88] sm:$0xff]
          %v1426 = vld [vmem:[%s909 + $0x90] sm:$0xff]
          %v1427 = vld [vmem:[%s909 + $0x98] sm:$0xff]
          %v1428 = vld [vmem:[%s909 + $0xa0] sm:$0xff]
          %v1429 = vld [vmem:[%s909 + $0xa8] sm:$0xff]
          %v1430 = vld [vmem:[%s909 + $0xb0] sm:$0xff]
          %v1431 = vld [vmem:[%s909 + $0xb8] sm:$0xff]
          %v1432 = vld [vmem:[%s909 + $0xc0] sm:$0xff]
          %v1433 = vld [vmem:[%s909 + $0xc8] sm:$0xff]
          %v1434 = vld [vmem:[%s909 + $0xd0] sm:$0xff]
          %v1435 = vld [vmem:[%s909 + $0xd8] sm:$0xff]
          %v1436 = vld [vmem:[%s909 + $0xe0] sm:$0xff]
          %v1437 = vld [vmem:[%s909 + $0xe8] sm:$0xff]
          %v1438 = vld [vmem:[%s909 + $0xf0] sm:$0xff]
          %v1439 = vld [vmem:[%s909 + $0xf8] sm:$0xff]
          %v1440 = vld [vmem:[%s909 + $0x100] sm:$0xff]
          %v1441 = vld [vmem:[%s909 + $0x108] sm:$0xff]
          %v1442 = vld [vmem:[%s909 + $0x110] sm:$0xff]
          %v1443 = vld [vmem:[%s909 + $0x118] sm:$0xff]
          %v1444 = vld [vmem:[%s909 + $0x120] sm:$0xff]
          %v1445 = vld [vmem:[%s909 + $0x128] sm:$0xff]
          %v1446 = vld [vmem:[%s909 + $0x130] sm:$0xff]
          %v1447 = vld [vmem:[%s909 + $0x138] sm:$0xff]
          %v1448 = vld [vmem:[%s909 + $0x140] sm:$0xff]
          %v1449 = vld [vmem:[%s909 + $0x148] sm:$0xff]
          %v1450 = vld [vmem:[%s909 + $0x150] sm:$0xff]
          %v1451 = vld [vmem:[%s909 + $0x158] sm:$0xff]
          %v1452 = vld [vmem:[%s909 + $0x160] sm:$0xff]
          %v1453 = vld [vmem:[%s909 + $0x168] sm:$0xff]
          %v1454 = vld [vmem:[%s909 + $0x170] sm:$0xff]
          %v1455 = vld [vmem:[%s909 + $0x178] sm:$0xff]
          %v1456 = vld [vmem:[%s909 + $0x180] sm:$0xff]
          %v1457 = vld [vmem:[%s909 + $0x188] sm:$0xff]
          %v1458 = vld [vmem:[%s909 + $0x190] sm:$0xff]
          %v1459 = vld [vmem:[%s909 + $0x198] sm:$0xff]
          %v1460 = vld [vmem:[%s909 + $0x1a0] sm:$0xff]
          %v1461 = vld [vmem:[%s909 + $0x1a8] sm:$0xff]
          %v1462 = vld [vmem:[%s909 + $0x1b0] sm:$0xff]
          %v1463 = vld [vmem:[%s909 + $0x1b8] sm:$0xff]
          %v1464 = vld [vmem:[%s909 + $0x1c0] sm:$0xff]
          %v1465 = vld [vmem:[%s909 + $0x1c8] sm:$0xff]
          %v1466 = vld [vmem:[%s909 + $0x1d0] sm:$0xff]
          %v1467 = vld [vmem:[%s909 + $0x1d8] sm:$0xff]
          %v1468 = vld [vmem:[%s909 + $0x1e0] sm:$0xff]
          %v1469 = vld [vmem:[%s909 + $0x1e8] sm:$0xff]
          %v1470 = vld [vmem:[%s909 + $0x1f0] sm:$0xff]
          %v1471 = vld [vmem:[%s909 + $0x1f8] sm:$0xff]
          %v1472 = vld [vmem:[%s909 + $0x200] sm:$0xff]
          %v1473 = vld [vmem:[%s909 + $0x208] sm:$0xff]
          %v1474 = vld [vmem:[%s909 + $0x210] sm:$0xff]
          %v1475 = vld [vmem:[%s909 + $0x218] sm:$0xff]
          %v1476 = vld [vmem:[%s909 + $0x220] sm:$0xff]
          %v1477 = vld [vmem:[%s909 + $0x228] sm:$0xff]
          %v1478 = vld [vmem:[%s909 + $0x230] sm:$0xff]
          %v1479 = vld [vmem:[%s909 + $0x238] sm:$0xff]
          %v1480 = vld [vmem:[%s909 + $0x240] sm:$0xff]
          %v1481 = vld [vmem:[%s909 + $0x248] sm:$0xff]
          %v1482 = vld [vmem:[%s909 + $0x250] sm:$0xff]
          %v1483 = vld [vmem:[%s909 + $0x258] sm:$0xff]
          %v1484 = vld [vmem:[%s909 + $0x260] sm:$0xff]
          %v1485 = vld [vmem:[%s909 + $0x268] sm:$0xff]
          %v1486 = vld [vmem:[%s909 + $0x270] sm:$0xff]
          %v1487 = vld [vmem:[%s909 + $0x278] sm:$0xff]
          %v1488 = vld [vmem:[%s909 + $0x280] sm:$0xff]
          %v1489 = vld [vmem:[%s909 + $0x288] sm:$0xff]
          %v1490 = vld [vmem:[%s909 + $0x290] sm:$0xff]
          %v1491 = vld [vmem:[%s909 + $0x298] sm:$0xff]
          %v1492 = vld [vmem:[%s909 + $0x2a0] sm:$0xff]
          %v1493 = vld [vmem:[%s909 + $0x2a8] sm:$0xff]
          %v1494 = vld [vmem:[%s909 + $0x2b0] sm:$0xff]
          %v1495 = vld [vmem:[%s909 + $0x2b8] sm:$0xff]
          %v1496 = vld [vmem:[%s909 + $0x2c0] sm:$0xff]
          %v1497 = vld [vmem:[%s909 + $0x2c8] sm:$0xff]
          %v1498 = vld [vmem:[%s909 + $0x2d0] sm:$0xff]
          %v1499 = vld [vmem:[%s909 + $0x2d8] sm:$0xff]
          %v1500 = vld [vmem:[%s909 + $0x2e0] sm:$0xff]
          %v1501 = vld [vmem:[%s909 + $0x2e8] sm:$0xff]
          %v1502 = vld [vmem:[%s909 + $0x2f0] sm:$0xff]
          %v1503 = vld [vmem:[%s909 + $0x2f8] sm:$0xff]
          %v1505 = vunpack.c.l.b16 %v1407
          %v1506 = vunpack.c.h.b16 %v1407
          %v1507 = vpack.c.b16 %v1505, %v1505
          %v1508 = vpack.c.b16 %v1506, %v1506
          %1511 = vmatprep.subr.bf16.mxu0 %v1409
          %1512 = vmatpush1.bf16.msra.mxu0 %v1408
          %1513 = vmatprep.subr.bf16.mxu0 %v1415
          %1514 = vmatpush1.bf16.msra.mxu0 %v1414
          %1515 = vmatprep.subr.bf16.mxu0 %v1421
          %1516 = vmatpush1.bf16.msra.mxu0 %v1420
          %1517 = vmatprep.subr.bf16.mxu0 %v1427
          %1518 = vmatpush1.bf16.msra.mxu0 %v1426
          %1519 = vmatprep.subr.bf16.mxu0 %v1433
          %1520 = vmatpush1.bf16.msra.mxu0 %v1432
          %1521 = vmatprep.subr.bf16.mxu0 %v1439
          %1522 = vmatpush1.bf16.msra.mxu0 %v1438
          %1523 = vmatprep.subr.bf16.mxu0 %v1445
          %1524 = vmatpush1.bf16.msra.mxu0 %v1444
          %1525 = vmatprep.subr.bf16.mxu0 %v1451
          %1526 = vmatpush1.bf16.msra.mxu0 %v1450
          %1527 = vmatprep.subr.bf16.mxu0 %v1457
          %1528 = vmatpush1.bf16.msra.mxu0 %v1456
          %1529 = vmatprep.subr.bf16.mxu0 %v1463
          %1530 = vmatpush1.bf16.msra.mxu0 %v1462
          %1531 = vmatprep.subr.bf16.mxu0 %v1469
          %1532 = vmatpush1.bf16.msra.mxu0 %v1468
          %1533 = vmatprep.subr.bf16.mxu0 %v1475
          %1534 = vmatpush1.bf16.msra.mxu0 %v1474
          %1535 = vmatprep.subr.bf16.mxu0 %v1481
          %1536 = vmatpush1.bf16.msra.mxu0 %v1480
          %1537 = vmatprep.subr.bf16.mxu0 %v1487
          %1538 = vmatpush1.bf16.msra.mxu0 %v1486
          %1539 = vmatprep.subr.bf16.mxu0 %v1493
          %1540 = vmatpush1.bf16.msra.mxu0 %v1492
          %1541 = vmatprep.subr.bf16.mxu0 %v1499
          %1542 = vmatpush1.bf16.msra.mxu0 %v1498
          %1543 = vmatprep.mubr.bf16.mxu0 %v1508
          %1544 = vmatmul.mubr.bf16.gmra.mrb[0].mxu0 %v1507
          %v1545 = vpop.f32.mrb[0].mxu0
          %v1546 = vadd.f32 0.0, %v1545
          %v1547 = vpop.f32.mrb[0].mxu0
          %v1548 = vadd.f32 0.0, %v1547
          %v1549 = vpop.f32.mrb[0].mxu0
          %v1550 = vpop.f32.mrb[0].mxu0
          %1551 = vdwg.mxu0
          %1552 = vmatprep.subr.bf16.mxu0 %v1411
          %1553 = vmatpush1.bf16.msra.mxu0 %v1410
          %1554 = vmatprep.subr.bf16.mxu0 %v1417
          %1555 = vmatpush1.bf16.msra.mxu0 %v1416
          %1556 = vmatprep.subr.bf16.mxu0 %v1423
          %1557 = vmatpush1.bf16.msra.mxu0 %v1422
          %1558 = vmatprep.subr.bf16.mxu0 %v1429
          %1559 = vmatpush1.bf16.msra.mxu0 %v1428
          %1560 = vmatprep.subr.bf16.mxu0 %v1435
          %1561 = vmatpush1.bf16.msra.mxu0 %v1434
          %1562 = vmatprep.subr.bf16.mxu0 %v1441
          %1563 = vmatpush1.bf16.msra.mxu0 %v1440
          %1564 = vmatprep.subr.bf16.mxu0 %v1447
          %1565 = vmatpush1.bf16.msra.mxu0 %v1446
          %1566 = vmatprep.subr.bf16.mxu0 %v1453
          %1567 = vmatpush1.bf16.msra.mxu0 %v1452
          %1568 = vmatprep.subr.bf16.mxu0 %v1459
          %1569 = vmatpush1.bf16.msra.mxu0 %v1458
          %1570 = vmatprep.subr.bf16.mxu0 %v1465
          %1571 = vmatpush1.bf16.msra.mxu0 %v1464
          %1572 = vmatprep.subr.bf16.mxu0 %v1471
          %1573 = vmatpush1.bf16.msra.mxu0 %v1470
          %1574 = vmatprep.subr.bf16.mxu0 %v1477
          %1575 = vmatpush1.bf16.msra.mxu0 %v1476
          %1576 = vmatprep.subr.bf16.mxu0 %v1483
          %1577 = vmatpush1.bf16.msra.mxu0 %v1482
          %1578 = vmatprep.subr.bf16.mxu0 %v1489
          %1579 = vmatpush1.bf16.msra.mxu0 %v1488
          %1580 = vmatprep.subr.bf16.mxu0 %v1495
          %1581 = vmatpush1.bf16.msra.mxu0 %v1494
          %1582 = vmatprep.subr.bf16.mxu0 %v1501
          %1583 = vmatpush1.bf16.msra.mxu0 %v1500
          %1584 = vmatprep.mubr.bf16.mxu0 %v1508
          %1585 = vmatmul.mubr.bf16.gmra.mrb[0].mxu0 %v1507
          %v1586 = vpop.f32.mrb[0].mxu0
          %v1587 = vadd.f32 0.0, %v1586
          %v1588 = vpop.f32.mrb[0].mxu0
          %v1589 = vadd.f32 0.0, %v1588
          %v1590 = vpop.f32.mrb[0].mxu0
          %v1591 = vpop.f32.mrb[0].mxu0
          %1592 = vdwg.mxu0
          %1593 = vmatprep.subr.bf16.mxu0 %v1413
          %1594 = vmatpush1.bf16.msra.mxu0 %v1412
          %1595 = vmatprep.subr.bf16.mxu0 %v1419
          %1596 = vmatpush1.bf16.msra.mxu0 %v1418
          %1597 = vmatprep.subr.bf16.mxu0 %v1425
          %1598 = vmatpush1.bf16.msra.mxu0 %v1424
          %1599 = vmatprep.subr.bf16.mxu0 %v1431
          %1600 = vmatpush1.bf16.msra.mxu0 %v1430
          %1601 = vmatprep.subr.bf16.mxu0 %v1437
          %1602 = vmatpush1.bf16.msra.mxu0 %v1436
          %1603 = vmatprep.subr.bf16.mxu0 %v1443
          %1604 = vmatpush1.bf16.msra.mxu0 %v1442
          %1605 = vmatprep.subr.bf16.mxu0 %v1449
          %1606 = vmatpush1.bf16.msra.mxu0 %v1448
          %1607 = vmatprep.subr.bf16.mxu0 %v1455
          %1608 = vmatpush1.bf16.msra.mxu0 %v1454
          %1609 = vmatprep.subr.bf16.mxu0 %v1461
          %1610 = vmatpush1.bf16.msra.mxu0 %v1460
          %1611 = vmatprep.subr.bf16.mxu0 %v1467
          %1612 = vmatpush1.bf16.msra.mxu0 %v1466
          %1613 = vmatprep.subr.bf16.mxu0 %v1473
          %1614 = vmatpush1.bf16.msra.mxu0 %v1472
          %1615 = vmatprep.subr.bf16.mxu0 %v1479
          %1616 = vmatpush1.bf16.msra.mxu0 %v1478
          %1617 = vmatprep.subr.bf16.mxu0 %v1485
          %1618 = vmatpush1.bf16.msra.mxu0 %v1484
          %1619 = vmatprep.subr.bf16.mxu0 %v1491
          %1620 = vmatpush1.bf16.msra.mxu0 %v1490
          %1621 = vmatprep.subr.bf16.mxu0 %v1497
          %1622 = vmatpush1.bf16.msra.mxu0 %v1496
          %1623 = vmatprep.subr.bf16.mxu0 %v1503
          %1624 = vmatpush1.bf16.msra.mxu0 %v1502
          %1625 = vmatprep.mubr.bf16.mxu0 %v1508
          %1626 = vmatmul.mubr.bf16.gmra.mrb[0].mxu0 %v1507
          %v1627 = vpop.f32.mrb[0].mxu0
          %v1628 = vadd.f32 0.0, %v1627
          %v1629 = vpop.f32.mrb[0].mxu0
          %v1630 = vadd.f32 0.0, %v1629
          %v1631 = vpop.f32.mrb[0].mxu0
          %v1632 = vpop.f32.mrb[0].mxu0
          %1633 = vdwg.mxu0
          %v1634 = vadd.f32 %v1317, %v1546
          %v1635 = vadd.f32 %v1319, %v1548
          %v1636 = vadd.f32 %v1358, %v1587
          %v1637 = vadd.f32 %v1360, %v1589
          %v1638 = vadd.f32 %v1399, %v1628
          %v1639 = vadd.f32 %v1401, %v1630
          %v1640 = vld [vmem:[%s232] sm:$0x3f]
          %v1642 = vlaneseq
          %v1643 = vshrl.u32 %v1642, 7
          %v1644 = vsub.s32 0, %v1643
          %v1645 = vrot.slane %v1640, %v1644
          %v1646 = vlaneseq
          %v1647 = vshrl.u32 %v1646, 7
          %v1648 = vsub.s32 1, %v1647
          %v1649 = vrot.slane %v1640, %v1648
          %v1650 = vlaneseq
          %v1651 = vshrl.u32 %v1650, 7
          %v1652 = vsub.s32 2, %v1651
          %v1653 = vrot.slane %v1640, %v1652
          %v1654 = vlaneseq
          %v1655 = vshrl.u32 %v1654, 7
          %v1656 = vsub.s32 3, %v1655
          %v1657 = vrot.slane %v1640, %v1656
          %v1658 = vlaneseq
          %v1659 = vshrl.u32 %v1658, 7
          %v1660 = vsub.s32 4, %v1659
          %v1661 = vrot.slane %v1640, %v1660
          %v1662 = vlaneseq
          %v1663 = vshrl.u32 %v1662, 7
          %v1664 = vsub.s32 5, %v1663
          %v1665 = vrot.slane %v1640, %v1664
          %v1672 = vadd.f32 %v1634, %v1645
          %v1673 = vadd.f32 %v1635, %v1649
          %v1674 = vadd.f32 %v1636, %v1653
          %v1675 = vadd.f32 %v1637, %v1657
          %v1676 = vadd.f32 %v1638, %v1661
          %v1677 = vadd.f32 %v1639, %v1665
          %v1678 = vmul.f32 %v1672, 0.5
          %v1679 = vmul.f32 %v1673, 0.5
          %v1680 = vmul.f32 %v1674, 0.5
          %v1681 = vmul.f32 %v1675, 0.5
          %v1682 = vmul.f32 %v1676, 0.5
          %v1683 = vmul.f32 %v1677, 0.5
          %v1684 = vmul.f32 %v1672, 0.70710677
          %v1685 = vmul.f32 %v1673, 0.70710677
          %v1686 = vmul.f32 %v1674, 0.70710677
          %v1687 = vmul.f32 %v1675, 0.70710677
          %v1688 = vmul.f32 %v1676, 0.70710677
          %v1689 = vmul.f32 %v1677, 0.70710677
          %v1690 = verf.f32.pop %v1684
          %v1691 = verf.f32.pop %v1685
          %v1692 = verf.f32.pop %v1686
          %v1693 = verf.f32.pop %v1687
          %v1694 = verf.f32.pop %v1688
          %v1695 = verf.f32.pop %v1689
          %v1696 = vadd.f32 %v1690, 1.0
          %v1697 = vadd.f32 %v1691, 1.0
          %v1698 = vadd.f32 %v1692, 1.0
          %v1699 = vadd.f32 %v1693, 1.0
          %v1700 = vadd.f32 %v1694, 1.0
          %v1701 = vadd.f32 %v1695, 1.0
          %v1702 = vmul.f32 %v1678, %v1696
          %v1703 = vmul.f32 %v1679, %v1697
          %v1704 = vmul.f32 %v1680, %v1698
          %v1705 = vmul.f32 %v1681, %v1699
          %v1706 = vmul.f32 %v1682, %v1700
          %v1707 = vmul.f32 %v1683, %v1701
          %v1708 = vld [vmem:[%s241] sm:$0xff]
          %v1709 = vld [vmem:[%s241 + $0x8] sm:$0xff]
          %v1710 = vld [vmem:[%s241 + $0x10] sm:$0xff]
          %v1711 = vpack.c.bf16 %v1702, %v1702
          %v1712 = vpack.c.bf16 %v1703, %v1703
          %v1713 = vpack.c.bf16 %v1704, %v1704
          %v1714 = vpack.c.bf16 %v1705, %v1705
          %v1715 = vpack.c.bf16 %v1706, %v1706
          %v1716 = vpack.c.bf16 %v1707, %v1707
          %v1717 = vld [vmem:[%s249] sm:$0x1]
          %v1719 = vlaneseq
          %v1720 = vshrl.u32 %v1719, 7
          %v1721 = vsub.s32 0, %v1720
          %v1722 = vrot.slane %v1717, %v1721
          %v1727 = vunpack.c.l.b16 %v1708
          %v1728 = vunpack.c.h.b16 %v1708
          %v1729 = vunpack.c.l.b16 %v1709
          %v1730 = vunpack.c.h.b16 %v1709
          %v1731 = vunpack.c.l.b16 %v1710
          %v1732 = vunpack.c.h.b16 %v1710
          %v1733 = vpack.c.b16 %v1727, %v1727
          %v1734 = vpack.c.b16 %v1728, %v1728
          %v1735 = vpack.c.b16 %v1729, %v1729
          %v1736 = vpack.c.b16 %v1730, %v1730
          %v1737 = vpack.c.b16 %v1731, %v1731
          %v1738 = vpack.c.b16 %v1732, %v1732
          %1745 = vmatprep.subr.bf16.mxu0 %v1734
          %1746 = vmatpush1.bf16.xpose.msra.mxu0 %v1733
          %1747 = vmatprep.subr.bf16.mxu0 0
          %1748 = vmatpush1.bf16.xpose.msra.mxu0 0
          %1749 = vmatprep.subr.bf16.mxu0 0
          %1750 = vmatpush1.bf16.xpose.msra.mxu0 0
          %1751 = vmatprep.subr.bf16.mxu0 0
          %1752 = vmatpush1.bf16.xpose.msra.mxu0 0
          %1753 = vmatprep.subr.bf16.mxu0 0
          %1754 = vmatpush1.bf16.xpose.msra.mxu0 0
          %1755 = vmatprep.subr.bf16.mxu0 0
          %1756 = vmatpush1.bf16.xpose.msra.mxu0 0
          %1757 = vmatprep.subr.bf16.mxu0 0
          %1758 = vmatpush1.bf16.xpose.msra.mxu0 0
          %1759 = vmatprep.subr.bf16.mxu0 0
          %1760 = vmatpush1.bf16.xpose.msra.mxu0 0
          %1761 = vmatprep.subr.bf16.mxu0 0
          %1762 = vmatpush1.bf16.xpose.msra.mxu0 0
          %1763 = vmatprep.subr.bf16.mxu0 0
          %1764 = vmatpush1.bf16.xpose.msra.mxu0 0
          %1765 = vmatprep.subr.bf16.mxu0 0
          %1766 = vmatpush1.bf16.xpose.msra.mxu0 0
          %1767 = vmatprep.subr.bf16.mxu0 0
          %1768 = vmatpush1.bf16.xpose.msra.mxu0 0
          %1769 = vmatprep.subr.bf16.mxu0 0
          %1770 = vmatpush1.bf16.xpose.msra.mxu0 0
          %1771 = vmatprep.subr.bf16.mxu0 0
          %1772 = vmatpush1.bf16.xpose.msra.mxu0 0
          %1773 = vmatprep.subr.bf16.mxu0 0
          %1774 = vmatpush1.bf16.xpose.msra.mxu0 0
          %1775 = vmatprep.subr.bf16.mxu0 0
          %1776 = vmatpush1.bf16.xpose.msra.mxu0 0
          %1777 = vmatprep.mubr.bf16.mxu0 %v1712
          %1778 = vmatmul.mubr.bf16.gmra.mrb[0].mxu0 %v1711
          %v1779 = vpop.f32.mrb[0].mxu0
          %v1780 = vadd.f32 %v1722, %v1779
          %v1781 = vpop.f32.mrb[0].mxu0
          %v1782 = vpop.f32.mrb[0].mxu0
          %v1783 = vpop.f32.mrb[0].mxu0
          %1784 = vdwg.mxu0
          %1785 = vmatprep.subr.bf16.mxu0 %v1736
          %1786 = vmatpush1.bf16.xpose.msra.mxu0 %v1735
          %1787 = vmatprep.subr.bf16.mxu0 0
          %1788 = vmatpush1.bf16.xpose.msra.mxu0 0
          %1789 = vmatprep.subr.bf16.mxu0 0
          %1790 = vmatpush1.bf16.xpose.msra.mxu0 0
          %1791 = vmatprep.subr.bf16.mxu0 0
          %1792 = vmatpush1.bf16.xpose.msra.mxu0 0
          %1793 = vmatprep.subr.bf16.mxu0 0
          %1794 = vmatpush1.bf16.xpose.msra.mxu0 0
          %1795 = vmatprep.subr.bf16.mxu0 0
          %1796 = vmatpush1.bf16.xpose.msra.mxu0 0
          %1797 = vmatprep.subr.bf16.mxu0 0
          %1798 = vmatpush1.bf16.xpose.msra.mxu0 0
          %1799 = vmatprep.subr.bf16.mxu0 0
          %1800 = vmatpush1.bf16.xpose.msra.mxu0 0
          %1801 = vmatprep.subr.bf16.mxu0 0
          %1802 = vmatpush1.bf16.xpose.msra.mxu0 0
          %1803 = vmatprep.subr.bf16.mxu0 0
          %1804 = vmatpush1.bf16.xpose.msra.mxu0 0
          %1805 = vmatprep.subr.bf16.mxu0 0
          %1806 = vmatpush1.bf16.xpose.msra.mxu0 0
          %1807 = vmatprep.subr.bf16.mxu0 0
          %1808 = vmatpush1.bf16.xpose.msra.mxu0 0
          %1809 = vmatprep.subr.bf16.mxu0 0
          %1810 = vmatpush1.bf16.xpose.msra.mxu0 0
          %1811 = vmatprep.subr.bf16.mxu0 0
          %1812 = vmatpush1.bf16.xpose.msra.mxu0 0
          %1813 = vmatprep.subr.bf16.mxu0 0
          %1814 = vmatpush1.bf16.xpose.msra.mxu0 0
          %1815 = vmatprep.subr.bf16.mxu0 0
          %1816 = vmatpush1.bf16.xpose.msra.mxu0 0
          %1817 = vmatprep.mubr.bf16.mxu0 %v1714
          %1818 = vmatmul.mubr.bf16.gmra.mrb[0].mxu0 %v1713
          %v1819 = vpop.f32.mrb[0].mxu0
          %v1820 = vadd.f32 %v1780, %v1819
          %v1821 = vpop.f32.mrb[0].mxu0
          %v1822 = vpop.f32.mrb[0].mxu0
          %v1823 = vpop.f32.mrb[0].mxu0
          %1824 = vdwg.mxu0
          %1825 = vmatprep.subr.bf16.mxu0 %v1738
          %1826 = vmatpush1.bf16.xpose.msra.mxu0 %v1737
          %1827 = vmatprep.subr.bf16.mxu0 0
          %1828 = vmatpush1.bf16.xpose.msra.mxu0 0
          %1829 = vmatprep.subr.bf16.mxu0 0
          %1830 = vmatpush1.bf16.xpose.msra.mxu0 0
          %1831 = vmatprep.subr.bf16.mxu0 0
          %1832 = vmatpush1.bf16.xpose.msra.mxu0 0
          %1833 = vmatprep.subr.bf16.mxu0 0
          %1834 = vmatpush1.bf16.xpose.msra.mxu0 0
          %1835 = vmatprep.subr.bf16.mxu0 0
          %1836 = vmatpush1.bf16.xpose.msra.mxu0 0
          %1837 = vmatprep.subr.bf16.mxu0 0
          %1838 = vmatpush1.bf16.xpose.msra.mxu0 0
          %1839 = vmatprep.subr.bf16.mxu0 0
          %1840 = vmatpush1.bf16.xpose.msra.mxu0 0
          %1841 = vmatprep.subr.bf16.mxu0 0
          %1842 = vmatpush1.bf16.xpose.msra.mxu0 0
          %1843 = vmatprep.subr.bf16.mxu0 0
          %1844 = vmatpush1.bf16.xpose.msra.mxu0 0
          %1845 = vmatprep.subr.bf16.mxu0 0
          %1846 = vmatpush1.bf16.xpose.msra.mxu0 0
          %1847 = vmatprep.subr.bf16.mxu0 0
          %1848 = vmatpush1.bf16.xpose.msra.mxu0 0
          %1849 = vmatprep.subr.bf16.mxu0 0
          %1850 = vmatpush1.bf16.xpose.msra.mxu0 0
          %1851 = vmatprep.subr.bf16.mxu0 0
          %1852 = vmatpush1.bf16.xpose.msra.mxu0 0
          %1853 = vmatprep.subr.bf16.mxu0 0
          %1854 = vmatpush1.bf16.xpose.msra.mxu0 0
          %1855 = vmatprep.subr.bf16.mxu0 0
          %1856 = vmatpush1.bf16.xpose.msra.mxu0 0
          %1857 = vmatprep.mubr.bf16.mxu0 %v1716
          %1858 = vmatmul.mubr.bf16.gmra.mrb[0].mxu0 %v1715
          %v1859 = vpop.f32.mrb[0].mxu0
          %v1860 = vadd.f32 %v1820, %v1859
          %v1861 = vpop.f32.mrb[0].mxu0
          %v1862 = vpop.f32.mrb[0].mxu0
          %v1863 = vpop.f32.mrb[0].mxu0
          %1864 = vdwg.mxu0
          %vm1865 = vcmask 64512
          %1866 = vst.msk [vmem:[%s285] sm:$0xff] %vm1865, %v1860
        $region56: #{msc_forward.1} parent=35 // pred_fallthru
          _
        %p1867 = scmp.eq.s32.totalorder %s24, 2
        // Predicated region
        $region57: #{msc_forward.1} parent=35 // pred_check
          %p1868 = pneg %p1867
        $region58: #{msc_forward.1} parent=35 // pred_check_branch
          %1870 = sbr.rel (%p1868) target = $region60
        $region59: #{msc_forward.1} parent=35 // pred_region
          #allocation22 [shape = 'u32[9]{0}', space=smem, size = 0x24, scoped, tag = 'DMA stride descriptor']
          #allocation24 [shape = 'u32[9]{0}', space=smem, size = 0x24, scoped, tag = 'DMA stride descriptor']
          #allocation26 [shape = 'u32[9]{0}', space=smem, size = 0x24, scoped, tag = 'DMA stride descriptor']
          #allocation28 [shape = 'u32[9]{0}', space=smem, size = 0x24, scoped, tag = 'DMA stride descriptor']
          %s1872 = sshll.u32 1, 14
          %s1873 = sxor.u32 4294967295, %s1872
          %s1875 = sld [smem:[#allocation0]]
          %s1876 = sadd.s32 2, %s1875
          %s1878 = sshll.u32 7, 26
          %s1879 = sxor.u32 4294967295, %s1878
          %s1880 = sand.u32 0, %s1879
          %s1881 = sshll.u32 %s1876, 26
          %s1882 = sor.u32 %s1880, %s1881
          %s1883 = sshll.u32 [#allocation4], 4
          %s1884 = int_to_ptr.vmem [resolvable:$true] %s1883
          %1887 = sst [smem:[#allocation22]] 1024
          %s1888 = scalar_lea.smem [#allocation22], 1
          %1889 = sst [smem:[%s1888]] 1024
          %s1890 = scalar_lea.smem [#allocation22], 2
          %1891 = sst [smem:[%s1890]] 8
          %s1892 = scalar_lea.smem [#allocation22], 3
          %1893 = sst [smem:[%s1892]] 64
          %s1894 = scalar_lea.smem [#allocation22], 4
          %1895 = sst [smem:[%s1894]] 128
          %s1896 = scalar_lea.smem [#allocation22], 5
          %1897 = sst [smem:[%s1896]] 2
          %s1898 = scalar_lea.smem [#allocation22], 6
          %1899 = sst [smem:[%s1898]] 512
          %s1900 = scalar_lea.smem [#allocation22], 7
          %1901 = sst [smem:[%s1900]] 64
          %s1902 = scalar_lea.smem [#allocation22], 8
          %1903 = sst [smem:[%s1902]] 4
          %1905 = dma.general %s3, 16384, %s1884, [#allocation5], [#allocation21], [#allocation22], %s1882, 0
          %s1906 = scalar_lea.hbm %s3, 16384
          %s1907 = scalar_lea.vmem [#allocation4], 1024
          %s1908 = scalar_lea.sflag [#allocation5], 1
          %s1910 = sshll.u32 1, 14
          %s1911 = sxor.u32 4294967295, %s1910
          %s1913 = sadd.s32 2, %s1875
          %s1915 = sshll.u32 7, 26
          %s1916 = sxor.u32 4294967295, %s1915
          %s1917 = sand.u32 0, %s1916
          %s1918 = sshll.u32 %s1913, 26
          %s1919 = sor.u32 %s1917, %s1918
          %s1920 = sshll.u32 %s1907, 4
          %s1921 = int_to_ptr.vmem [resolvable:$true] %s1920
          %1924 = sst [smem:[#allocation24]] 1024
          %s1925 = scalar_lea.smem [#allocation24], 1
          %1926 = sst [smem:[%s1925]] 1024
          %s1927 = scalar_lea.smem [#allocation24], 2
          %1928 = sst [smem:[%s1927]] 8
          %s1929 = scalar_lea.smem [#allocation24], 3
          %1930 = sst [smem:[%s1929]] 64
          %s1931 = scalar_lea.smem [#allocation24], 4
          %1932 = sst [smem:[%s1931]] 128
          %s1933 = scalar_lea.smem [#allocation24], 5
          %1934 = sst [smem:[%s1933]] 2
          %s1935 = scalar_lea.smem [#allocation24], 6
          %1936 = sst [smem:[%s1935]] 512
          %s1937 = scalar_lea.smem [#allocation24], 7
          %1938 = sst [smem:[%s1937]] 64
          %s1939 = scalar_lea.smem [#allocation24], 8
          %1940 = sst [smem:[%s1939]] 4
          %1942 = dma.general %s1906, 16384, %s1921, %s1908, [#allocation23], [#allocation24], %s1919, 0
          %s1943 = scalar_lea.hbm %s3, 32768
          %s1944 = scalar_lea.vmem [#allocation4], 2048
          %s1945 = scalar_lea.sflag [#allocation5], 2
          %s1947 = sshll.u32 1, 14
          %s1948 = sxor.u32 4294967295, %s1947
          %s1950 = sadd.s32 2, %s1875
          %s1952 = sshll.u32 7, 26
          %s1953 = sxor.u32 4294967295, %s1952
          %s1954 = sand.u32 0, %s1953
          %s1955 = sshll.u32 %s1950, 26
          %s1956 = sor.u32 %s1954, %s1955
          %s1957 = sshll.u32 %s1944, 4
          %s1958 = int_to_ptr.vmem [resolvable:$true] %s1957
          %1961 = sst [smem:[#allocation26]] 1024
          %s1962 = scalar_lea.smem [#allocation26], 1
          %1963 = sst [smem:[%s1962]] 1024
          %s1964 = scalar_lea.smem [#allocation26], 2
          %1965 = sst [smem:[%s1964]] 8
          %s1966 = scalar_lea.smem [#allocation26], 3
          %1967 = sst [smem:[%s1966]] 64
          %s1968 = scalar_lea.smem [#allocation26], 4
          %1969 = sst [smem:[%s1968]] 128
          %s1970 = scalar_lea.smem [#allocation26], 5
          %1971 = sst [smem:[%s1970]] 2
          %s1972 = scalar_lea.smem [#allocation26], 6
          %1973 = sst [smem:[%s1972]] 512
          %s1974 = scalar_lea.smem [#allocation26], 7
          %1975 = sst [smem:[%s1974]] 64
          %s1976 = scalar_lea.smem [#allocation26], 8
          %1977 = sst [smem:[%s1976]] 4
          %1979 = dma.general %s1943, 16384, %s1958, %s1945, [#allocation25], [#allocation26], %s1956, 0
          %s1980 = scalar_lea.hbm %s3, 49152
          %s1981 = scalar_lea.vmem [#allocation4], 3072
          %s1982 = scalar_lea.sflag [#allocation5], 3
          %s1984 = sshll.u32 1, 14
          %s1985 = sxor.u32 4294967295, %s1984
          %s1987 = sadd.s32 2, %s1875
          %s1989 = sshll.u32 7, 26
          %s1990 = sxor.u32 4294967295, %s1989
          %s1991 = sand.u32 0, %s1990
          %s1992 = sshll.u32 %s1987, 26
          %s1993 = sor.u32 %s1991, %s1992
          %s1994 = sshll.u32 %s1981, 4
          %s1995 = int_to_ptr.vmem [resolvable:$true] %s1994
          %1998 = sst [smem:[#allocation28]] 1024
          %s1999 = scalar_lea.smem [#allocation28], 1
          %2000 = sst [smem:[%s1999]] 1024
          %s2001 = scalar_lea.smem [#allocation28], 2
          %2002 = sst [smem:[%s2001]] 8
          %s2003 = scalar_lea.smem [#allocation28], 3
          %2004 = sst [smem:[%s2003]] 64
          %s2005 = scalar_lea.smem [#allocation28], 4
          %2006 = sst [smem:[%s2005]] 128
          %s2007 = scalar_lea.smem [#allocation28], 5
          %2008 = sst [smem:[%s2007]] 2
          %s2009 = scalar_lea.smem [#allocation28], 6
          %2010 = sst [smem:[%s2009]] 512
          %s2011 = scalar_lea.smem [#allocation28], 7
          %2012 = sst [smem:[%s2011]] 64
          %s2013 = scalar_lea.smem [#allocation28], 8
          %2014 = sst [smem:[%s2013]] 4
          %2016 = dma.general %s1980, 16384, %s1995, %s1982, [#allocation27], [#allocation28], %s1993, 0
          %s2017 = smul.u32 4, 32
          %s2018 = smul.u32 %s2017, 8
          %s2019 = sshll.u32 %s2018, 4
          %2020 = dma.done [#allocation5], %s2019
          %v2021 = vld [vmem:[%s0] sm:$0xff]
          %v2022 = vld [vmem:[#allocation4] sm:$0xff]
          %v2023 = vld [vmem:[#allocation4 + $0x8] sm:$0xff]
          %v2024 = vld [vmem:[#allocation4 + $0x10] sm:$0xff]
          %v2025 = vld [vmem:[#allocation4 + $0x18] sm:$0xff]
          %v2026 = vld [vmem:[#allocation4 + $0x20] sm:$0xff]
          %v2027 = vld [vmem:[#allocation4 + $0x28] sm:$0xff]
          %v2028 = vld [vmem:[#allocation4 + $0x30] sm:$0xff]
          %v2029 = vld [vmem:[#allocation4 + $0x38] sm:$0xff]
          %v2030 = vld [vmem:[#allocation4 + $0x40] sm:$0xff]
          %v2031 = vld [vmem:[#allocation4 + $0x48] sm:$0xff]
          %v2032 = vld [vmem:[#allocation4 + $0x50] sm:$0xff]
          %v2033 = vld [vmem:[#allocation4 + $0x58] sm:$0xff]
          %v2034 = vld [vmem:[#allocation4 + $0x60] sm:$0xff]
          %v2035 = vld [vmem:[#allocation4 + $0x68] sm:$0xff]
          %v2036 = vld [vmem:[#allocation4 + $0x70] sm:$0xff]
          %v2037 = vld [vmem:[#allocation4 + $0x78] sm:$0xff]
          %v2038 = vld [vmem:[#allocation4 + $0x80] sm:$0xff]
          %v2039 = vld [vmem:[#allocation4 + $0x88] sm:$0xff]
          %v2040 = vld [vmem:[#allocation4 + $0x90] sm:$0xff]
          %v2041 = vld [vmem:[#allocation4 + $0x98] sm:$0xff]
          %v2042 = vld [vmem:[#allocation4 + $0xa0] sm:$0xff]
          %v2043 = vld [vmem:[#allocation4 + $0xa8] sm:$0xff]
          %v2044 = vld [vmem:[#allocation4 + $0xb0] sm:$0xff]
          %v2045 = vld [vmem:[#allocation4 + $0xb8] sm:$0xff]
          %v2046 = vld [vmem:[#allocation4 + $0xc0] sm:$0xff]
          %v2047 = vld [vmem:[#allocation4 + $0xc8] sm:$0xff]
          %v2048 = vld [vmem:[#allocation4 + $0xd0] sm:$0xff]
          %v2049 = vld [vmem:[#allocation4 + $0xd8] sm:$0xff]
          %v2050 = vld [vmem:[#allocation4 + $0xe0] sm:$0xff]
          %v2051 = vld [vmem:[#allocation4 + $0xe8] sm:$0xff]
          %v2052 = vld [vmem:[#allocation4 + $0xf0] sm:$0xff]
          %v2053 = vld [vmem:[#allocation4 + $0xf8] sm:$0xff]
          %v2054 = vld [vmem:[#allocation4 + $0x100] sm:$0xff]
          %v2055 = vld [vmem:[#allocation4 + $0x108] sm:$0xff]
          %v2056 = vld [vmem:[#allocation4 + $0x110] sm:$0xff]
          %v2057 = vld [vmem:[#allocation4 + $0x118] sm:$0xff]
          %v2058 = vld [vmem:[#allocation4 + $0x120] sm:$0xff]
          %v2059 = vld [vmem:[#allocation4 + $0x128] sm:$0xff]
          %v2060 = vld [vmem:[#allocation4 + $0x130] sm:$0xff]
          %v2061 = vld [vmem:[#allocation4 + $0x138] sm:$0xff]
          %v2062 = vld [vmem:[#allocation4 + $0x140] sm:$0xff]
          %v2063 = vld [vmem:[#allocation4 + $0x148] sm:$0xff]
          %v2064 = vld [vmem:[#allocation4 + $0x150] sm:$0xff]
          %v2065 = vld [vmem:[#allocation4 + $0x158] sm:$0xff]
          %v2066 = vld [vmem:[#allocation4 + $0x160] sm:$0xff]
          %v2067 = vld [vmem:[#allocation4 + $0x168] sm:$0xff]
          %v2068 = vld [vmem:[#allocation4 + $0x170] sm:$0xff]
          %v2069 = vld [vmem:[#allocation4 + $0x178] sm:$0xff]
          %v2070 = vld [vmem:[#allocation4 + $0x180] sm:$0xff]
          %v2071 = vld [vmem:[#allocation4 + $0x188] sm:$0xff]
          %v2072 = vld [vmem:[#allocation4 + $0x190] sm:$0xff]
          %v2073 = vld [vmem:[#allocation4 + $0x198] sm:$0xff]
          %v2074 = vld [vmem:[#allocation4 + $0x1a0] sm:$0xff]
          %v2075 = vld [vmem:[#allocation4 + $0x1a8] sm:$0xff]
          %v2076 = vld [vmem:[#allocation4 + $0x1b0] sm:$0xff]
          %v2077 = vld [vmem:[#allocation4 + $0x1b8] sm:$0xff]
          %v2078 = vld [vmem:[#allocation4 + $0x1c0] sm:$0xff]
          %v2079 = vld [vmem:[#allocation4 + $0x1c8] sm:$0xff]
          %v2080 = vld [vmem:[#allocation4 + $0x1d0] sm:$0xff]
          %v2081 = vld [vmem:[#allocation4 + $0x1d8] sm:$0xff]
          %v2082 = vld [vmem:[#allocation4 + $0x1e0] sm:$0xff]
          %v2083 = vld [vmem:[#allocation4 + $0x1e8] sm:$0xff]
          %v2084 = vld [vmem:[#allocation4 + $0x1f0] sm:$0xff]
          %v2085 = vld [vmem:[#allocation4 + $0x1f8] sm:$0xff]
          %v2086 = vld [vmem:[#allocation4 + $0x200] sm:$0xff]
          %v2087 = vld [vmem:[#allocation4 + $0x208] sm:$0xff]
          %v2088 = vld [vmem:[#allocation4 + $0x210] sm:$0xff]
          %v2089 = vld [vmem:[#allocation4 + $0x218] sm:$0xff]
          %v2090 = vld [vmem:[#allocation4 + $0x220] sm:$0xff]
          %v2091 = vld [vmem:[#allocation4 + $0x228] sm:$0xff]
          %v2092 = vld [vmem:[#allocation4 + $0x230] sm:$0xff]
          %v2093 = vld [vmem:[#allocation4 + $0x238] sm:$0xff]
          %v2094 = vld [vmem:[#allocation4 + $0x240] sm:$0xff]
          %v2095 = vld [vmem:[#allocation4 + $0x248] sm:$0xff]
          %v2096 = vld [vmem:[#allocation4 + $0x250] sm:$0xff]
          %v2097 = vld [vmem:[#allocation4 + $0x258] sm:$0xff]
          %v2098 = vld [vmem:[#allocation4 + $0x260] sm:$0xff]
          %v2099 = vld [vmem:[#allocation4 + $0x268] sm:$0xff]
          %v2100 = vld [vmem:[#allocation4 + $0x270] sm:$0xff]
          %v2101 = vld [vmem:[#allocation4 + $0x278] sm:$0xff]
          %v2102 = vld [vmem:[#allocation4 + $0x280] sm:$0xff]
          %v2103 = vld [vmem:[#allocation4 + $0x288] sm:$0xff]
          %v2104 = vld [vmem:[#allocation4 + $0x290] sm:$0xff]
          %v2105 = vld [vmem:[#allocation4 + $0x298] sm:$0xff]
          %v2106 = vld [vmem:[#allocation4 + $0x2a0] sm:$0xff]
          %v2107 = vld [vmem:[#allocation4 + $0x2a8] sm:$0xff]
          %v2108 = vld [vmem:[#allocation4 + $0x2b0] sm:$0xff]
          %v2109 = vld [vmem:[#allocation4 + $0x2b8] sm:$0xff]
          %v2110 = vld [vmem:[#allocation4 + $0x2c0] sm:$0xff]
          %v2111 = vld [vmem:[#allocation4 + $0x2c8] sm:$0xff]
          %v2112 = vld [vmem:[#allocation4 + $0x2d0] sm:$0xff]
          %v2113 = vld [vmem:[#allocation4 + $0x2d8] sm:$0xff]
          %v2114 = vld [vmem:[#allocation4 + $0x2e0] sm:$0xff]
          %v2115 = vld [vmem:[#allocation4 + $0x2e8] sm:$0xff]
          %v2116 = vld [vmem:[#allocation4 + $0x2f0] sm:$0xff]
          %v2117 = vld [vmem:[#allocation4 + $0x2f8] sm:$0xff]
          %v2118 = vld [vmem:[#allocation4 + $0x300] sm:$0xff]
          %v2119 = vld [vmem:[#allocation4 + $0x308] sm:$0xff]
          %v2120 = vld [vmem:[#allocation4 + $0x310] sm:$0xff]
          %v2121 = vld [vmem:[#allocation4 + $0x318] sm:$0xff]
          %v2122 = vld [vmem:[#allocation4 + $0x320] sm:$0xff]
          %v2123 = vld [vmem:[#allocation4 + $0x328] sm:$0xff]
          %v2124 = vld [vmem:[#allocation4 + $0x330] sm:$0xff]
          %v2125 = vld [vmem:[#allocation4 + $0x338] sm:$0xff]
          %v2126 = vld [vmem:[#allocation4 + $0x340] sm:$0xff]
          %v2127 = vld [vmem:[#allocation4 + $0x348] sm:$0xff]
          %v2128 = vld [vmem:[#allocation4 + $0x350] sm:$0xff]
          %v2129 = vld [vmem:[#allocation4 + $0x358] sm:$0xff]
          %v2130 = vld [vmem:[#allocation4 + $0x360] sm:$0xff]
          %v2131 = vld [vmem:[#allocation4 + $0x368] sm:$0xff]
          %v2132 = vld [vmem:[#allocation4 + $0x370] sm:$0xff]
          %v2133 = vld [vmem:[#allocation4 + $0x378] sm:$0xff]
          %v2134 = vld [vmem:[#allocation4 + $0x380] sm:$0xff]
          %v2135 = vld [vmem:[#allocation4 + $0x388] sm:$0xff]
          %v2136 = vld [vmem:[#allocation4 + $0x390] sm:$0xff]
          %v2137 = vld [vmem:[#allocation4 + $0x398] sm:$0xff]
          %v2138 = vld [vmem:[#allocation4 + $0x3a0] sm:$0xff]
          %v2139 = vld [vmem:[#allocation4 + $0x3a8] sm:$0xff]
          %v2140 = vld [vmem:[#allocation4 + $0x3b0] sm:$0xff]
          %v2141 = vld [vmem:[#allocation4 + $0x3b8] sm:$0xff]
          %v2142 = vld [vmem:[#allocation4 + $0x3c0] sm:$0xff]
          %v2143 = vld [vmem:[#allocation4 + $0x3c8] sm:$0xff]
          %v2144 = vld [vmem:[#allocation4 + $0x3d0] sm:$0xff]
          %v2145 = vld [vmem:[#allocation4 + $0x3d8] sm:$0xff]
          %v2146 = vld [vmem:[#allocation4 + $0x3e0] sm:$0xff]
          %v2147 = vld [vmem:[#allocation4 + $0x3e8] sm:$0xff]
          %v2148 = vld [vmem:[#allocation4 + $0x3f0] sm:$0xff]
          %v2149 = vld [vmem:[#allocation4 + $0x3f8] sm:$0xff]
          %s2150 = sshll.u32 %s2018, 4
          %2151 = dma.done %s1908, %s2150
          %v2152 = vld [vmem:[%s0 + $0x8] sm:$0xff]
          %v2153 = vld [vmem:[%s1907] sm:$0xff]
          %v2154 = vld [vmem:[%s1907 + $0x8] sm:$0xff]
          %v2155 = vld [vmem:[%s1907 + $0x10] sm:$0xff]
          %v2156 = vld [vmem:[%s1907 + $0x18] sm:$0xff]
          %v2157 = vld [vmem:[%s1907 + $0x20] sm:$0xff]
          %v2158 = vld [vmem:[%s1907 + $0x28] sm:$0xff]
          %v2159 = vld [vmem:[%s1907 + $0x30] sm:$0xff]
          %v2160 = vld [vmem:[%s1907 + $0x38] sm:$0xff]
          %v2161 = vld [vmem:[%s1907 + $0x40] sm:$0xff]
          %v2162 = vld [vmem:[%s1907 + $0x48] sm:$0xff]
          %v2163 = vld [vmem:[%s1907 + $0x50] sm:$0xff]
          %v2164 = vld [vmem:[%s1907 + $0x58] sm:$0xff]
          %v2165 = vld [vmem:[%s1907 + $0x60] sm:$0xff]
          %v2166 = vld [vmem:[%s1907 + $0x68] sm:$0xff]
          %v2167 = vld [vmem:[%s1907 + $0x70] sm:$0xff]
          %v2168 = vld [vmem:[%s1907 + $0x78] sm:$0xff]
          %v2169 = vld [vmem:[%s1907 + $0x80] sm:$0xff]
          %v2170 = vld [vmem:[%s1907 + $0x88] sm:$0xff]
          %v2171 = vld [vmem:[%s1907 + $0x90] sm:$0xff]
          %v2172 = vld [vmem:[%s1907 + $0x98] sm:$0xff]
          %v2173 = vld [vmem:[%s1907 + $0xa0] sm:$0xff]
          %v2174 = vld [vmem:[%s1907 + $0xa8] sm:$0xff]
          %v2175 = vld [vmem:[%s1907 + $0xb0] sm:$0xff]
          %v2176 = vld [vmem:[%s1907 + $0xb8] sm:$0xff]
          %v2177 = vld [vmem:[%s1907 + $0xc0] sm:$0xff]
          %v2178 = vld [vmem:[%s1907 + $0xc8] sm:$0xff]
          %v2179 = vld [vmem:[%s1907 + $0xd0] sm:$0xff]
          %v2180 = vld [vmem:[%s1907 + $0xd8] sm:$0xff]
          %v2181 = vld [vmem:[%s1907 + $0xe0] sm:$0xff]
          %v2182 = vld [vmem:[%s1907 + $0xe8] sm:$0xff]
          %v2183 = vld [vmem:[%s1907 + $0xf0] sm:$0xff]
          %v2184 = vld [vmem:[%s1907 + $0xf8] sm:$0xff]
          %v2185 = vld [vmem:[%s1907 + $0x100] sm:$0xff]
          %v2186 = vld [vmem:[%s1907 + $0x108] sm:$0xff]
          %v2187 = vld [vmem:[%s1907 + $0x110] sm:$0xff]
          %v2188 = vld [vmem:[%s1907 + $0x118] sm:$0xff]
          %v2189 = vld [vmem:[%s1907 + $0x120] sm:$0xff]
          %v2190 = vld [vmem:[%s1907 + $0x128] sm:$0xff]
          %v2191 = vld [vmem:[%s1907 + $0x130] sm:$0xff]
          %v2192 = vld [vmem:[%s1907 + $0x138] sm:$0xff]
          %v2193 = vld [vmem:[%s1907 + $0x140] sm:$0xff]
          %v2194 = vld [vmem:[%s1907 + $0x148] sm:$0xff]
          %v2195 = vld [vmem:[%s1907 + $0x150] sm:$0xff]
          %v2196 = vld [vmem:[%s1907 + $0x158] sm:$0xff]
          %v2197 = vld [vmem:[%s1907 + $0x160] sm:$0xff]
          %v2198 = vld [vmem:[%s1907 + $0x168] sm:$0xff]
          %v2199 = vld [vmem:[%s1907 + $0x170] sm:$0xff]
          %v2200 = vld [vmem:[%s1907 + $0x178] sm:$0xff]
          %v2201 = vld [vmem:[%s1907 + $0x180] sm:$0xff]
          %v2202 = vld [vmem:[%s1907 + $0x188] sm:$0xff]
          %v2203 = vld [vmem:[%s1907 + $0x190] sm:$0xff]
          %v2204 = vld [vmem:[%s1907 + $0x198] sm:$0xff]
          %v2205 = vld [vmem:[%s1907 + $0x1a0] sm:$0xff]
          %v2206 = vld [vmem:[%s1907 + $0x1a8] sm:$0xff]
          %v2207 = vld [vmem:[%s1907 + $0x1b0] sm:$0xff]
          %v2208 = vld [vmem:[%s1907 + $0x1b8] sm:$0xff]
          %v2209 = vld [vmem:[%s1907 + $0x1c0] sm:$0xff]
          %v2210 = vld [vmem:[%s1907 + $0x1c8] sm:$0xff]
          %v2211 = vld [vmem:[%s1907 + $0x1d0] sm:$0xff]
          %v2212 = vld [vmem:[%s1907 + $0x1d8] sm:$0xff]
          %v2213 = vld [vmem:[%s1907 + $0x1e0] sm:$0xff]
          %v2214 = vld [vmem:[%s1907 + $0x1e8] sm:$0xff]
          %v2215 = vld [vmem:[%s1907 + $0x1f0] sm:$0xff]
          %v2216 = vld [vmem:[%s1907 + $0x1f8] sm:$0xff]
          %v2217 = vld [vmem:[%s1907 + $0x200] sm:$0xff]
          %v2218 = vld [vmem:[%s1907 + $0x208] sm:$0xff]
          %v2219 = vld [vmem:[%s1907 + $0x210] sm:$0xff]
          %v2220 = vld [vmem:[%s1907 + $0x218] sm:$0xff]
          %v2221 = vld [vmem:[%s1907 + $0x220] sm:$0xff]
          %v2222 = vld [vmem:[%s1907 + $0x228] sm:$0xff]
          %v2223 = vld [vmem:[%s1907 + $0x230] sm:$0xff]
          %v2224 = vld [vmem:[%s1907 + $0x238] sm:$0xff]
          %v2225 = vld [vmem:[%s1907 + $0x240] sm:$0xff]
          %v2226 = vld [vmem:[%s1907 + $0x248] sm:$0xff]
          %v2227 = vld [vmem:[%s1907 + $0x250] sm:$0xff]
          %v2228 = vld [vmem:[%s1907 + $0x258] sm:$0xff]
          %v2229 = vld [vmem:[%s1907 + $0x260] sm:$0xff]
          %v2230 = vld [vmem:[%s1907 + $0x268] sm:$0xff]
          %v2231 = vld [vmem:[%s1907 + $0x270] sm:$0xff]
          %v2232 = vld [vmem:[%s1907 + $0x278] sm:$0xff]
          %v2233 = vld [vmem:[%s1907 + $0x280] sm:$0xff]
          %v2234 = vld [vmem:[%s1907 + $0x288] sm:$0xff]
          %v2235 = vld [vmem:[%s1907 + $0x290] sm:$0xff]
          %v2236 = vld [vmem:[%s1907 + $0x298] sm:$0xff]
          %v2237 = vld [vmem:[%s1907 + $0x2a0] sm:$0xff]
          %v2238 = vld [vmem:[%s1907 + $0x2a8] sm:$0xff]
          %v2239 = vld [vmem:[%s1907 + $0x2b0] sm:$0xff]
          %v2240 = vld [vmem:[%s1907 + $0x2b8] sm:$0xff]
          %v2241 = vld [vmem:[%s1907 + $0x2c0] sm:$0xff]
          %v2242 = vld [vmem:[%s1907 + $0x2c8] sm:$0xff]
          %v2243 = vld [vmem:[%s1907 + $0x2d0] sm:$0xff]
          %v2244 = vld [vmem:[%s1907 + $0x2d8] sm:$0xff]
          %v2245 = vld [vmem:[%s1907 + $0x2e0] sm:$0xff]
          %v2246 = vld [vmem:[%s1907 + $0x2e8] sm:$0xff]
          %v2247 = vld [vmem:[%s1907 + $0x2f0] sm:$0xff]
          %v2248 = vld [vmem:[%s1907 + $0x2f8] sm:$0xff]
          %v2249 = vld [vmem:[%s1907 + $0x300] sm:$0xff]
          %v2250 = vld [vmem:[%s1907 + $0x308] sm:$0xff]
          %v2251 = vld [vmem:[%s1907 + $0x310] sm:$0xff]
          %v2252 = vld [vmem:[%s1907 + $0x318] sm:$0xff]
          %v2253 = vld [vmem:[%s1907 + $0x320] sm:$0xff]
          %v2254 = vld [vmem:[%s1907 + $0x328] sm:$0xff]
          %v2255 = vld [vmem:[%s1907 + $0x330] sm:$0xff]
          %v2256 = vld [vmem:[%s1907 + $0x338] sm:$0xff]
          %v2257 = vld [vmem:[%s1907 + $0x340] sm:$0xff]
          %v2258 = vld [vmem:[%s1907 + $0x348] sm:$0xff]
          %v2259 = vld [vmem:[%s1907 + $0x350] sm:$0xff]
          %v2260 = vld [vmem:[%s1907 + $0x358] sm:$0xff]
          %v2261 = vld [vmem:[%s1907 + $0x360] sm:$0xff]
          %v2262 = vld [vmem:[%s1907 + $0x368] sm:$0xff]
          %v2263 = vld [vmem:[%s1907 + $0x370] sm:$0xff]
          %v2264 = vld [vmem:[%s1907 + $0x378] sm:$0xff]
          %v2265 = vld [vmem:[%s1907 + $0x380] sm:$0xff]
          %v2266 = vld [vmem:[%s1907 + $0x388] sm:$0xff]
          %v2267 = vld [vmem:[%s1907 + $0x390] sm:$0xff]
          %v2268 = vld [vmem:[%s1907 + $0x398] sm:$0xff]
          %v2269 = vld [vmem:[%s1907 + $0x3a0] sm:$0xff]
          %v2270 = vld [vmem:[%s1907 + $0x3a8] sm:$0xff]
          %v2271 = vld [vmem:[%s1907 + $0x3b0] sm:$0xff]
          %v2272 = vld [vmem:[%s1907 + $0x3b8] sm:$0xff]
          %v2273 = vld [vmem:[%s1907 + $0x3c0] sm:$0xff]
          %v2274 = vld [vmem:[%s1907 + $0x3c8] sm:$0xff]
          %v2275 = vld [vmem:[%s1907 + $0x3d0] sm:$0xff]
          %v2276 = vld [vmem:[%s1907 + $0x3d8] sm:$0xff]
          %v2277 = vld [vmem:[%s1907 + $0x3e0] sm:$0xff]
          %v2278 = vld [vmem:[%s1907 + $0x3e8] sm:$0xff]
          %v2279 = vld [vmem:[%s1907 + $0x3f0] sm:$0xff]
          %v2280 = vld [vmem:[%s1907 + $0x3f8] sm:$0xff]
          %v2282 = vunpack.c.l.b16 %v2152
          %v2283 = vunpack.c.h.b16 %v2152
          %v2284 = vpack.c.b16 %v2282, %v2282
          %v2285 = vpack.c.b16 %v2283, %v2283
          %2288 = vmatprep.subr.bf16.mxu0 %v2154
          %2289 = vmatpush1.bf16.msra.mxu0 %v2153
          %2290 = vmatprep.subr.bf16.mxu0 %v2162
          %2291 = vmatpush1.bf16.msra.mxu0 %v2161
          %2292 = vmatprep.subr.bf16.mxu0 %v2170
          %2293 = vmatpush1.bf16.msra.mxu0 %v2169
          %2294 = vmatprep.subr.bf16.mxu0 %v2178
          %2295 = vmatpush1.bf16.msra.mxu0 %v2177
          %2296 = vmatprep.subr.bf16.mxu0 %v2186
          %2297 = vmatpush1.bf16.msra.mxu0 %v2185
          %2298 = vmatprep.subr.bf16.mxu0 %v2194
          %2299 = vmatpush1.bf16.msra.mxu0 %v2193
          %2300 = vmatprep.subr.bf16.mxu0 %v2202
          %2301 = vmatpush1.bf16.msra.mxu0 %v2201
          %2302 = vmatprep.subr.bf16.mxu0 %v2210
          %2303 = vmatpush1.bf16.msra.mxu0 %v2209
          %2304 = vmatprep.subr.bf16.mxu0 %v2218
          %2305 = vmatpush1.bf16.msra.mxu0 %v2217
          %2306 = vmatprep.subr.bf16.mxu0 %v2226
          %2307 = vmatpush1.bf16.msra.mxu0 %v2225
          %2308 = vmatprep.subr.bf16.mxu0 %v2234
          %2309 = vmatpush1.bf16.msra.mxu0 %v2233
          %2310 = vmatprep.subr.bf16.mxu0 %v2242
          %2311 = vmatpush1.bf16.msra.mxu0 %v2241
          %2312 = vmatprep.subr.bf16.mxu0 %v2250
          %2313 = vmatpush1.bf16.msra.mxu0 %v2249
          %2314 = vmatprep.subr.bf16.mxu0 %v2258
          %2315 = vmatpush1.bf16.msra.mxu0 %v2257
          %2316 = vmatprep.subr.bf16.mxu0 %v2266
          %2317 = vmatpush1.bf16.msra.mxu0 %v2265
          %2318 = vmatprep.subr.bf16.mxu0 %v2274
          %2319 = vmatpush1.bf16.msra.mxu0 %v2273
          %2320 = vmatprep.mubr.bf16.mxu0 %v2285
          %2321 = vmatmul.mubr.bf16.gmra.mrb[0].mxu0 %v2284
          %v2322 = vpop.f32.mrb[0].mxu0
          %v2323 = vadd.f32 0.0, %v2322
          %v2324 = vpop.f32.mrb[0].mxu0
          %v2325 = vadd.f32 0.0, %v2324
          %v2326 = vpop.f32.mrb[0].mxu0
          %v2327 = vpop.f32.mrb[0].mxu0
          %2328 = vdwg.mxu0
          %2329 = vmatprep.subr.bf16.mxu0 %v2156
          %2330 = vmatpush1.bf16.msra.mxu0 %v2155
          %2331 = vmatprep.subr.bf16.mxu0 %v2164
          %2332 = vmatpush1.bf16.msra.mxu0 %v2163
          %2333 = vmatprep.subr.bf16.mxu0 %v2172
          %2334 = vmatpush1.bf16.msra.mxu0 %v2171
          %2335 = vmatprep.subr.bf16.mxu0 %v2180
          %2336 = vmatpush1.bf16.msra.mxu0 %v2179
          %2337 = vmatprep.subr.bf16.mxu0 %v2188
          %2338 = vmatpush1.bf16.msra.mxu0 %v2187
          %2339 = vmatprep.subr.bf16.mxu0 %v2196
          %2340 = vmatpush1.bf16.msra.mxu0 %v2195
          %2341 = vmatprep.subr.bf16.mxu0 %v2204
          %2342 = vmatpush1.bf16.msra.mxu0 %v2203
          %2343 = vmatprep.subr.bf16.mxu0 %v2212
          %2344 = vmatpush1.bf16.msra.mxu0 %v2211
          %2345 = vmatprep.subr.bf16.mxu0 %v2220
          %2346 = vmatpush1.bf16.msra.mxu0 %v2219
          %2347 = vmatprep.subr.bf16.mxu0 %v2228
          %2348 = vmatpush1.bf16.msra.mxu0 %v2227
          %2349 = vmatprep.subr.bf16.mxu0 %v2236
          %2350 = vmatpush1.bf16.msra.mxu0 %v2235
          %2351 = vmatprep.subr.bf16.mxu0 %v2244
          %2352 = vmatpush1.bf16.msra.mxu0 %v2243
          %2353 = vmatprep.subr.bf16.mxu0 %v2252
          %2354 = vmatpush1.bf16.msra.mxu0 %v2251
          %2355 = vmatprep.subr.bf16.mxu0 %v2260
          %2356 = vmatpush1.bf16.msra.mxu0 %v2259
          %2357 = vmatprep.subr.bf16.mxu0 %v2268
          %2358 = vmatpush1.bf16.msra.mxu0 %v2267
          %2359 = vmatprep.subr.bf16.mxu0 %v2276
          %2360 = vmatpush1.bf16.msra.mxu0 %v2275
          %2361 = vmatprep.mubr.bf16.mxu0 %v2285
          %2362 = vmatmul.mubr.bf16.gmra.mrb[0].mxu0 %v2284
          %v2363 = vpop.f32.mrb[0].mxu0
          %v2364 = vadd.f32 0.0, %v2363
          %v2365 = vpop.f32.mrb[0].mxu0
          %v2366 = vadd.f32 0.0, %v2365
          %v2367 = vpop.f32.mrb[0].mxu0
          %v2368 = vpop.f32.mrb[0].mxu0
          %2369 = vdwg.mxu0
          %2370 = vmatprep.subr.bf16.mxu0 %v2158
          %2371 = vmatpush1.bf16.msra.mxu0 %v2157
          %2372 = vmatprep.subr.bf16.mxu0 %v2166
          %2373 = vmatpush1.bf16.msra.mxu0 %v2165
          %2374 = vmatprep.subr.bf16.mxu0 %v2174
          %2375 = vmatpush1.bf16.msra.mxu0 %v2173
          %2376 = vmatprep.subr.bf16.mxu0 %v2182
          %2377 = vmatpush1.bf16.msra.mxu0 %v2181
          %2378 = vmatprep.subr.bf16.mxu0 %v2190
          %2379 = vmatpush1.bf16.msra.mxu0 %v2189
          %2380 = vmatprep.subr.bf16.mxu0 %v2198
          %2381 = vmatpush1.bf16.msra.mxu0 %v2197
          %2382 = vmatprep.subr.bf16.mxu0 %v2206
          %2383 = vmatpush1.bf16.msra.mxu0 %v2205
          %2384 = vmatprep.subr.bf16.mxu0 %v2214
          %2385 = vmatpush1.bf16.msra.mxu0 %v2213
          %2386 = vmatprep.subr.bf16.mxu0 %v2222
          %2387 = vmatpush1.bf16.msra.mxu0 %v2221
          %2388 = vmatprep.subr.bf16.mxu0 %v2230
          %2389 = vmatpush1.bf16.msra.mxu0 %v2229
          %2390 = vmatprep.subr.bf16.mxu0 %v2238
          %2391 = vmatpush1.bf16.msra.mxu0 %v2237
          %2392 = vmatprep.subr.bf16.mxu0 %v2246
          %2393 = vmatpush1.bf16.msra.mxu0 %v2245
          %2394 = vmatprep.subr.bf16.mxu0 %v2254
          %2395 = vmatpush1.bf16.msra.mxu0 %v2253
          %2396 = vmatprep.subr.bf16.mxu0 %v2262
          %2397 = vmatpush1.bf16.msra.mxu0 %v2261
          %2398 = vmatprep.subr.bf16.mxu0 %v2270
          %2399 = vmatpush1.bf16.msra.mxu0 %v2269
          %2400 = vmatprep.subr.bf16.mxu0 %v2278
          %2401 = vmatpush1.bf16.msra.mxu0 %v2277
          %2402 = vmatprep.mubr.bf16.mxu0 %v2285
          %2403 = vmatmul.mubr.bf16.gmra.mrb[0].mxu0 %v2284
          %v2404 = vpop.f32.mrb[0].mxu0
          %v2405 = vadd.f32 0.0, %v2404
          %v2406 = vpop.f32.mrb[0].mxu0
          %v2407 = vadd.f32 0.0, %v2406
          %v2408 = vpop.f32.mrb[0].mxu0
          %v2409 = vpop.f32.mrb[0].mxu0
          %2410 = vdwg.mxu0
          %2411 = vmatprep.subr.bf16.mxu0 %v2160
          %2412 = vmatpush1.bf16.msra.mxu0 %v2159
          %2413 = vmatprep.subr.bf16.mxu0 %v2168
          %2414 = vmatpush1.bf16.msra.mxu0 %v2167
          %2415 = vmatprep.subr.bf16.mxu0 %v2176
          %2416 = vmatpush1.bf16.msra.mxu0 %v2175
          %2417 = vmatprep.subr.bf16.mxu0 %v2184
          %2418 = vmatpush1.bf16.msra.mxu0 %v2183
          %2419 = vmatprep.subr.bf16.mxu0 %v2192
          %2420 = vmatpush1.bf16.msra.mxu0 %v2191
          %2421 = vmatprep.subr.bf16.mxu0 %v2200
          %2422 = vmatpush1.bf16.msra.mxu0 %v2199
          %2423 = vmatprep.subr.bf16.mxu0 %v2208
          %2424 = vmatpush1.bf16.msra.mxu0 %v2207
          %2425 = vmatprep.subr.bf16.mxu0 %v2216
          %2426 = vmatpush1.bf16.msra.mxu0 %v2215
          %2427 = vmatprep.subr.bf16.mxu0 %v2224
          %2428 = vmatpush1.bf16.msra.mxu0 %v2223
          %2429 = vmatprep.subr.bf16.mxu0 %v2232
          %2430 = vmatpush1.bf16.msra.mxu0 %v2231
          %2431 = vmatprep.subr.bf16.mxu0 %v2240
          %2432 = vmatpush1.bf16.msra.mxu0 %v2239
          %2433 = vmatprep.subr.bf16.mxu0 %v2248
          %2434 = vmatpush1.bf16.msra.mxu0 %v2247
          %2435 = vmatprep.subr.bf16.mxu0 %v2256
          %2436 = vmatpush1.bf16.msra.mxu0 %v2255
          %2437 = vmatprep.subr.bf16.mxu0 %v2264
          %2438 = vmatpush1.bf16.msra.mxu0 %v2263
          %2439 = vmatprep.subr.bf16.mxu0 %v2272
          %2440 = vmatpush1.bf16.msra.mxu0 %v2271
          %2441 = vmatprep.subr.bf16.mxu0 %v2280
          %2442 = vmatpush1.bf16.msra.mxu0 %v2279
          %2443 = vmatprep.mubr.bf16.mxu0 %v2285
          %2444 = vmatmul.mubr.bf16.gmra.mrb[0].mxu0 %v2284
          %v2445 = vpop.f32.mrb[0].mxu0
          %v2446 = vadd.f32 0.0, %v2445
          %v2447 = vpop.f32.mrb[0].mxu0
          %v2448 = vadd.f32 0.0, %v2447
          %v2449 = vpop.f32.mrb[0].mxu0
          %v2450 = vpop.f32.mrb[0].mxu0
          %2451 = vdwg.mxu0
          %v2453 = vunpack.c.l.b16 %v2021
          %v2454 = vunpack.c.h.b16 %v2021
          %v2455 = vpack.c.b16 %v2453, %v2453
          %v2456 = vpack.c.b16 %v2454, %v2454
          %2459 = vmatprep.subr.bf16.mxu0 %v2023
          %2460 = vmatpush1.bf16.msra.mxu0 %v2022
          %2461 = vmatprep.subr.bf16.mxu0 %v2031
          %2462 = vmatpush1.bf16.msra.mxu0 %v2030
          %2463 = vmatprep.subr.bf16.mxu0 %v2039
          %2464 = vmatpush1.bf16.msra.mxu0 %v2038
          %2465 = vmatprep.subr.bf16.mxu0 %v2047
          %2466 = vmatpush1.bf16.msra.mxu0 %v2046
          %2467 = vmatprep.subr.bf16.mxu0 %v2055
          %2468 = vmatpush1.bf16.msra.mxu0 %v2054
          %2469 = vmatprep.subr.bf16.mxu0 %v2063
          %2470 = vmatpush1.bf16.msra.mxu0 %v2062
          %2471 = vmatprep.subr.bf16.mxu0 %v2071
          %2472 = vmatpush1.bf16.msra.mxu0 %v2070
          %2473 = vmatprep.subr.bf16.mxu0 %v2079
          %2474 = vmatpush1.bf16.msra.mxu0 %v2078
          %2475 = vmatprep.subr.bf16.mxu0 %v2087
          %2476 = vmatpush1.bf16.msra.mxu0 %v2086
          %2477 = vmatprep.subr.bf16.mxu0 %v2095
          %2478 = vmatpush1.bf16.msra.mxu0 %v2094
          %2479 = vmatprep.subr.bf16.mxu0 %v2103
          %2480 = vmatpush1.bf16.msra.mxu0 %v2102
          %2481 = vmatprep.subr.bf16.mxu0 %v2111
          %2482 = vmatpush1.bf16.msra.mxu0 %v2110
          %2483 = vmatprep.subr.bf16.mxu0 %v2119
          %2484 = vmatpush1.bf16.msra.mxu0 %v2118
          %2485 = vmatprep.subr.bf16.mxu0 %v2127
          %2486 = vmatpush1.bf16.msra.mxu0 %v2126
          %2487 = vmatprep.subr.bf16.mxu0 %v2135
          %2488 = vmatpush1.bf16.msra.mxu0 %v2134
          %2489 = vmatprep.subr.bf16.mxu0 %v2143
          %2490 = vmatpush1.bf16.msra.mxu0 %v2142
          %2491 = vmatprep.mubr.bf16.mxu0 %v2456
          %2492 = vmatmul.mubr.bf16.gmra.mrb[0].mxu0 %v2455
          %v2493 = vpop.f32.mrb[0].mxu0
          %v2494 = vadd.f32 %v2323, %v2493
          %v2495 = vpop.f32.mrb[0].mxu0
          %v2496 = vadd.f32 %v2325, %v2495
          %v2497 = vpop.f32.mrb[0].mxu0
          %v2498 = vpop.f32.mrb[0].mxu0
          %2499 = vdwg.mxu0
          %2500 = vmatprep.subr.bf16.mxu0 %v2025
          %2501 = vmatpush1.bf16.msra.mxu0 %v2024
          %2502 = vmatprep.subr.bf16.mxu0 %v2033
          %2503 = vmatpush1.bf16.msra.mxu0 %v2032
          %2504 = vmatprep.subr.bf16.mxu0 %v2041
          %2505 = vmatpush1.bf16.msra.mxu0 %v2040
          %2506 = vmatprep.subr.bf16.mxu0 %v2049
          %2507 = vmatpush1.bf16.msra.mxu0 %v2048
          %2508 = vmatprep.subr.bf16.mxu0 %v2057
          %2509 = vmatpush1.bf16.msra.mxu0 %v2056
          %2510 = vmatprep.subr.bf16.mxu0 %v2065
          %2511 = vmatpush1.bf16.msra.mxu0 %v2064
          %2512 = vmatprep.subr.bf16.mxu0 %v2073
          %2513 = vmatpush1.bf16.msra.mxu0 %v2072
          %2514 = vmatprep.subr.bf16.mxu0 %v2081
          %2515 = vmatpush1.bf16.msra.mxu0 %v2080
          %2516 = vmatprep.subr.bf16.mxu0 %v2089
          %2517 = vmatpush1.bf16.msra.mxu0 %v2088
          %2518 = vmatprep.subr.bf16.mxu0 %v2097
          %2519 = vmatpush1.bf16.msra.mxu0 %v2096
          %2520 = vmatprep.subr.bf16.mxu0 %v2105
          %2521 = vmatpush1.bf16.msra.mxu0 %v2104
          %2522 = vmatprep.subr.bf16.mxu0 %v2113
          %2523 = vmatpush1.bf16.msra.mxu0 %v2112
          %2524 = vmatprep.subr.bf16.mxu0 %v2121
          %2525 = vmatpush1.bf16.msra.mxu0 %v2120
          %2526 = vmatprep.subr.bf16.mxu0 %v2129
          %2527 = vmatpush1.bf16.msra.mxu0 %v2128
          %2528 = vmatprep.subr.bf16.mxu0 %v2137
          %2529 = vmatpush1.bf16.msra.mxu0 %v2136
          %2530 = vmatprep.subr.bf16.mxu0 %v2145
          %2531 = vmatpush1.bf16.msra.mxu0 %v2144
          %2532 = vmatprep.mubr.bf16.mxu0 %v2456
          %2533 = vmatmul.mubr.bf16.gmra.mrb[0].mxu0 %v2455
          %v2534 = vpop.f32.mrb[0].mxu0
          %v2535 = vadd.f32 %v2364, %v2534
          %v2536 = vpop.f32.mrb[0].mxu0
          %v2537 = vadd.f32 %v2366, %v2536
          %v2538 = vpop.f32.mrb[0].mxu0
          %v2539 = vpop.f32.mrb[0].mxu0
          %2540 = vdwg.mxu0
          %2541 = vmatprep.subr.bf16.mxu0 %v2027
          %2542 = vmatpush1.bf16.msra.mxu0 %v2026
          %2543 = vmatprep.subr.bf16.mxu0 %v2035
          %2544 = vmatpush1.bf16.msra.mxu0 %v2034
          %2545 = vmatprep.subr.bf16.mxu0 %v2043
          %2546 = vmatpush1.bf16.msra.mxu0 %v2042
          %2547 = vmatprep.subr.bf16.mxu0 %v2051
          %2548 = vmatpush1.bf16.msra.mxu0 %v2050
          %2549 = vmatprep.subr.bf16.mxu0 %v2059
          %2550 = vmatpush1.bf16.msra.mxu0 %v2058
          %2551 = vmatprep.subr.bf16.mxu0 %v2067
          %2552 = vmatpush1.bf16.msra.mxu0 %v2066
          %2553 = vmatprep.subr.bf16.mxu0 %v2075
          %2554 = vmatpush1.bf16.msra.mxu0 %v2074
          %2555 = vmatprep.subr.bf16.mxu0 %v2083
          %2556 = vmatpush1.bf16.msra.mxu0 %v2082
          %2557 = vmatprep.subr.bf16.mxu0 %v2091
          %2558 = vmatpush1.bf16.msra.mxu0 %v2090
          %2559 = vmatprep.subr.bf16.mxu0 %v2099
          %2560 = vmatpush1.bf16.msra.mxu0 %v2098
          %2561 = vmatprep.subr.bf16.mxu0 %v2107
          %2562 = vmatpush1.bf16.msra.mxu0 %v2106
          %2563 = vmatprep.subr.bf16.mxu0 %v2115
          %2564 = vmatpush1.bf16.msra.mxu0 %v2114
          %2565 = vmatprep.subr.bf16.mxu0 %v2123
          %2566 = vmatpush1.bf16.msra.mxu0 %v2122
          %2567 = vmatprep.subr.bf16.mxu0 %v2131
          %2568 = vmatpush1.bf16.msra.mxu0 %v2130
          %2569 = vmatprep.subr.bf16.mxu0 %v2139
          %2570 = vmatpush1.bf16.msra.mxu0 %v2138
          %2571 = vmatprep.subr.bf16.mxu0 %v2147
          %2572 = vmatpush1.bf16.msra.mxu0 %v2146
          %2573 = vmatprep.mubr.bf16.mxu0 %v2456
          %2574 = vmatmul.mubr.bf16.gmra.mrb[0].mxu0 %v2455
          %v2575 = vpop.f32.mrb[0].mxu0
          %v2576 = vadd.f32 %v2405, %v2575
          %v2577 = vpop.f32.mrb[0].mxu0
          %v2578 = vadd.f32 %v2407, %v2577
          %v2579 = vpop.f32.mrb[0].mxu0
          %v2580 = vpop.f32.mrb[0].mxu0
          %2581 = vdwg.mxu0
          %2582 = vmatprep.subr.bf16.mxu0 %v2029
          %2583 = vmatpush1.bf16.msra.mxu0 %v2028
          %2584 = vmatprep.subr.bf16.mxu0 %v2037
          %2585 = vmatpush1.bf16.msra.mxu0 %v2036
          %2586 = vmatprep.subr.bf16.mxu0 %v2045
          %2587 = vmatpush1.bf16.msra.mxu0 %v2044
          %2588 = vmatprep.subr.bf16.mxu0 %v2053
          %2589 = vmatpush1.bf16.msra.mxu0 %v2052
          %2590 = vmatprep.subr.bf16.mxu0 %v2061
          %2591 = vmatpush1.bf16.msra.mxu0 %v2060
          %2592 = vmatprep.subr.bf16.mxu0 %v2069
          %2593 = vmatpush1.bf16.msra.mxu0 %v2068
          %2594 = vmatprep.subr.bf16.mxu0 %v2077
          %2595 = vmatpush1.bf16.msra.mxu0 %v2076
          %2596 = vmatprep.subr.bf16.mxu0 %v2085
          %2597 = vmatpush1.bf16.msra.mxu0 %v2084
          %2598 = vmatprep.subr.bf16.mxu0 %v2093
          %2599 = vmatpush1.bf16.msra.mxu0 %v2092
          %2600 = vmatprep.subr.bf16.mxu0 %v2101
          %2601 = vmatpush1.bf16.msra.mxu0 %v2100
          %2602 = vmatprep.subr.bf16.mxu0 %v2109
          %2603 = vmatpush1.bf16.msra.mxu0 %v2108
          %2604 = vmatprep.subr.bf16.mxu0 %v2117
          %2605 = vmatpush1.bf16.msra.mxu0 %v2116
          %2606 = vmatprep.subr.bf16.mxu0 %v2125
          %2607 = vmatpush1.bf16.msra.mxu0 %v2124
          %2608 = vmatprep.subr.bf16.mxu0 %v2133
          %2609 = vmatpush1.bf16.msra.mxu0 %v2132
          %2610 = vmatprep.subr.bf16.mxu0 %v2141
          %2611 = vmatpush1.bf16.msra.mxu0 %v2140
          %2612 = vmatprep.subr.bf16.mxu0 %v2149
          %2613 = vmatpush1.bf16.msra.mxu0 %v2148
          %2614 = vmatprep.mubr.bf16.mxu0 %v2456
          %2615 = vmatmul.mubr.bf16.gmra.mrb[0].mxu0 %v2455
          %v2616 = vpop.f32.mrb[0].mxu0
          %v2617 = vadd.f32 %v2446, %v2616
          %v2618 = vpop.f32.mrb[0].mxu0
          %v2619 = vadd.f32 %v2448, %v2618
          %v2620 = vpop.f32.mrb[0].mxu0
          %v2621 = vpop.f32.mrb[0].mxu0
          %2622 = vdwg.mxu0
          %s2623 = sshll.u32 %s2018, 4
          %2624 = dma.done %s1945, %s2623
          %v2625 = vld [vmem:[%s0 + $0x10] sm:$0xff]
          %v2626 = vld [vmem:[%s1944] sm:$0xff]
          %v2627 = vld [vmem:[%s1944 + $0x8] sm:$0xff]
          %v2628 = vld [vmem:[%s1944 + $0x10] sm:$0xff]
          %v2629 = vld [vmem:[%s1944 + $0x18] sm:$0xff]
          %v2630 = vld [vmem:[%s1944 + $0x20] sm:$0xff]
          %v2631 = vld [vmem:[%s1944 + $0x28] sm:$0xff]
          %v2632 = vld [vmem:[%s1944 + $0x30] sm:$0xff]
          %v2633 = vld [vmem:[%s1944 + $0x38] sm:$0xff]
          %v2634 = vld [vmem:[%s1944 + $0x40] sm:$0xff]
          %v2635 = vld [vmem:[%s1944 + $0x48] sm:$0xff]
          %v2636 = vld [vmem:[%s1944 + $0x50] sm:$0xff]
          %v2637 = vld [vmem:[%s1944 + $0x58] sm:$0xff]
          %v2638 = vld [vmem:[%s1944 + $0x60] sm:$0xff]
          %v2639 = vld [vmem:[%s1944 + $0x68] sm:$0xff]
          %v2640 = vld [vmem:[%s1944 + $0x70] sm:$0xff]
          %v2641 = vld [vmem:[%s1944 + $0x78] sm:$0xff]
          %v2642 = vld [vmem:[%s1944 + $0x80] sm:$0xff]
          %v2643 = vld [vmem:[%s1944 + $0x88] sm:$0xff]
          %v2644 = vld [vmem:[%s1944 + $0x90] sm:$0xff]
          %v2645 = vld [vmem:[%s1944 + $0x98] sm:$0xff]
          %v2646 = vld [vmem:[%s1944 + $0xa0] sm:$0xff]
          %v2647 = vld [vmem:[%s1944 + $0xa8] sm:$0xff]
          %v2648 = vld [vmem:[%s1944 + $0xb0] sm:$0xff]
          %v2649 = vld [vmem:[%s1944 + $0xb8] sm:$0xff]
          %v2650 = vld [vmem:[%s1944 + $0xc0] sm:$0xff]
          %v2651 = vld [vmem:[%s1944 + $0xc8] sm:$0xff]
          %v2652 = vld [vmem:[%s1944 + $0xd0] sm:$0xff]
          %v2653 = vld [vmem:[%s1944 + $0xd8] sm:$0xff]
          %v2654 = vld [vmem:[%s1944 + $0xe0] sm:$0xff]
          %v2655 = vld [vmem:[%s1944 + $0xe8] sm:$0xff]
          %v2656 = vld [vmem:[%s1944 + $0xf0] sm:$0xff]
          %v2657 = vld [vmem:[%s1944 + $0xf8] sm:$0xff]
          %v2658 = vld [vmem:[%s1944 + $0x100] sm:$0xff]
          %v2659 = vld [vmem:[%s1944 + $0x108] sm:$0xff]
          %v2660 = vld [vmem:[%s1944 + $0x110] sm:$0xff]
          %v2661 = vld [vmem:[%s1944 + $0x118] sm:$0xff]
          %v2662 = vld [vmem:[%s1944 + $0x120] sm:$0xff]
          %v2663 = vld [vmem:[%s1944 + $0x128] sm:$0xff]
          %v2664 = vld [vmem:[%s1944 + $0x130] sm:$0xff]
          %v2665 = vld [vmem:[%s1944 + $0x138] sm:$0xff]
          %v2666 = vld [vmem:[%s1944 + $0x140] sm:$0xff]
          %v2667 = vld [vmem:[%s1944 + $0x148] sm:$0xff]
          %v2668 = vld [vmem:[%s1944 + $0x150] sm:$0xff]
          %v2669 = vld [vmem:[%s1944 + $0x158] sm:$0xff]
          %v2670 = vld [vmem:[%s1944 + $0x160] sm:$0xff]
          %v2671 = vld [vmem:[%s1944 + $0x168] sm:$0xff]
          %v2672 = vld [vmem:[%s1944 + $0x170] sm:$0xff]
          %v2673 = vld [vmem:[%s1944 + $0x178] sm:$0xff]
          %v2674 = vld [vmem:[%s1944 + $0x180] sm:$0xff]
          %v2675 = vld [vmem:[%s1944 + $0x188] sm:$0xff]
          %v2676 = vld [vmem:[%s1944 + $0x190] sm:$0xff]
          %v2677 = vld [vmem:[%s1944 + $0x198] sm:$0xff]
          %v2678 = vld [vmem:[%s1944 + $0x1a0] sm:$0xff]
          %v2679 = vld [vmem:[%s1944 + $0x1a8] sm:$0xff]
          %v2680 = vld [vmem:[%s1944 + $0x1b0] sm:$0xff]
          %v2681 = vld [vmem:[%s1944 + $0x1b8] sm:$0xff]
          %v2682 = vld [vmem:[%s1944 + $0x1c0] sm:$0xff]
          %v2683 = vld [vmem:[%s1944 + $0x1c8] sm:$0xff]
          %v2684 = vld [vmem:[%s1944 + $0x1d0] sm:$0xff]
          %v2685 = vld [vmem:[%s1944 + $0x1d8] sm:$0xff]
          %v2686 = vld [vmem:[%s1944 + $0x1e0] sm:$0xff]
          %v2687 = vld [vmem:[%s1944 + $0x1e8] sm:$0xff]
          %v2688 = vld [vmem:[%s1944 + $0x1f0] sm:$0xff]
          %v2689 = vld [vmem:[%s1944 + $0x1f8] sm:$0xff]
          %v2690 = vld [vmem:[%s1944 + $0x200] sm:$0xff]
          %v2691 = vld [vmem:[%s1944 + $0x208] sm:$0xff]
          %v2692 = vld [vmem:[%s1944 + $0x210] sm:$0xff]
          %v2693 = vld [vmem:[%s1944 + $0x218] sm:$0xff]
          %v2694 = vld [vmem:[%s1944 + $0x220] sm:$0xff]
          %v2695 = vld [vmem:[%s1944 + $0x228] sm:$0xff]
          %v2696 = vld [vmem:[%s1944 + $0x230] sm:$0xff]
          %v2697 = vld [vmem:[%s1944 + $0x238] sm:$0xff]
          %v2698 = vld [vmem:[%s1944 + $0x240] sm:$0xff]
          %v2699 = vld [vmem:[%s1944 + $0x248] sm:$0xff]
          %v2700 = vld [vmem:[%s1944 + $0x250] sm:$0xff]
          %v2701 = vld [vmem:[%s1944 + $0x258] sm:$0xff]
          %v2702 = vld [vmem:[%s1944 + $0x260] sm:$0xff]
          %v2703 = vld [vmem:[%s1944 + $0x268] sm:$0xff]
          %v2704 = vld [vmem:[%s1944 + $0x270] sm:$0xff]
          %v2705 = vld [vmem:[%s1944 + $0x278] sm:$0xff]
          %v2706 = vld [vmem:[%s1944 + $0x280] sm:$0xff]
          %v2707 = vld [vmem:[%s1944 + $0x288] sm:$0xff]
          %v2708 = vld [vmem:[%s1944 + $0x290] sm:$0xff]
          %v2709 = vld [vmem:[%s1944 + $0x298] sm:$0xff]
          %v2710 = vld [vmem:[%s1944 + $0x2a0] sm:$0xff]
          %v2711 = vld [vmem:[%s1944 + $0x2a8] sm:$0xff]
          %v2712 = vld [vmem:[%s1944 + $0x2b0] sm:$0xff]
          %v2713 = vld [vmem:[%s1944 + $0x2b8] sm:$0xff]
          %v2714 = vld [vmem:[%s1944 + $0x2c0] sm:$0xff]
          %v2715 = vld [vmem:[%s1944 + $0x2c8] sm:$0xff]
          %v2716 = vld [vmem:[%s1944 + $0x2d0] sm:$0xff]
          %v2717 = vld [vmem:[%s1944 + $0x2d8] sm:$0xff]
          %v2718 = vld [vmem:[%s1944 + $0x2e0] sm:$0xff]
          %v2719 = vld [vmem:[%s1944 + $0x2e8] sm:$0xff]
          %v2720 = vld [vmem:[%s1944 + $0x2f0] sm:$0xff]
          %v2721 = vld [vmem:[%s1944 + $0x2f8] sm:$0xff]
          %v2722 = vld [vmem:[%s1944 + $0x300] sm:$0xff]
          %v2723 = vld [vmem:[%s1944 + $0x308] sm:$0xff]
          %v2724 = vld [vmem:[%s1944 + $0x310] sm:$0xff]
          %v2725 = vld [vmem:[%s1944 + $0x318] sm:$0xff]
          %v2726 = vld [vmem:[%s1944 + $0x320] sm:$0xff]
          %v2727 = vld [vmem:[%s1944 + $0x328] sm:$0xff]
          %v2728 = vld [vmem:[%s1944 + $0x330] sm:$0xff]
          %v2729 = vld [vmem:[%s1944 + $0x338] sm:$0xff]
          %v2730 = vld [vmem:[%s1944 + $0x340] sm:$0xff]
          %v2731 = vld [vmem:[%s1944 + $0x348] sm:$0xff]
          %v2732 = vld [vmem:[%s1944 + $0x350] sm:$0xff]
          %v2733 = vld [vmem:[%s1944 + $0x358] sm:$0xff]
          %v2734 = vld [vmem:[%s1944 + $0x360] sm:$0xff]
          %v2735 = vld [vmem:[%s1944 + $0x368] sm:$0xff]
          %v2736 = vld [vmem:[%s1944 + $0x370] sm:$0xff]
          %v2737 = vld [vmem:[%s1944 + $0x378] sm:$0xff]
          %v2738 = vld [vmem:[%s1944 + $0x380] sm:$0xff]
          %v2739 = vld [vmem:[%s1944 + $0x388] sm:$0xff]
          %v2740 = vld [vmem:[%s1944 + $0x390] sm:$0xff]
          %v2741 = vld [vmem:[%s1944 + $0x398] sm:$0xff]
          %v2742 = vld [vmem:[%s1944 + $0x3a0] sm:$0xff]
          %v2743 = vld [vmem:[%s1944 + $0x3a8] sm:$0xff]
          %v2744 = vld [vmem:[%s1944 + $0x3b0] sm:$0xff]
          %v2745 = vld [vmem:[%s1944 + $0x3b8] sm:$0xff]
          %v2746 = vld [vmem:[%s1944 + $0x3c0] sm:$0xff]
          %v2747 = vld [vmem:[%s1944 + $0x3c8] sm:$0xff]
          %v2748 = vld [vmem:[%s1944 + $0x3d0] sm:$0xff]
          %v2749 = vld [vmem:[%s1944 + $0x3d8] sm:$0xff]
          %v2750 = vld [vmem:[%s1944 + $0x3e0] sm:$0xff]
          %v2751 = vld [vmem:[%s1944 + $0x3e8] sm:$0xff]
          %v2752 = vld [vmem:[%s1944 + $0x3f0] sm:$0xff]
          %v2753 = vld [vmem:[%s1944 + $0x3f8] sm:$0xff]
          %v2755 = vunpack.c.l.b16 %v2625
          %v2756 = vunpack.c.h.b16 %v2625
          %v2757 = vpack.c.b16 %v2755, %v2755
          %v2758 = vpack.c.b16 %v2756, %v2756
          %2761 = vmatprep.subr.bf16.mxu0 %v2627
          %2762 = vmatpush1.bf16.msra.mxu0 %v2626
          %2763 = vmatprep.subr.bf16.mxu0 %v2635
          %2764 = vmatpush1.bf16.msra.mxu0 %v2634
          %2765 = vmatprep.subr.bf16.mxu0 %v2643
          %2766 = vmatpush1.bf16.msra.mxu0 %v2642
          %2767 = vmatprep.subr.bf16.mxu0 %v2651
          %2768 = vmatpush1.bf16.msra.mxu0 %v2650
          %2769 = vmatprep.subr.bf16.mxu0 %v2659
          %2770 = vmatpush1.bf16.msra.mxu0 %v2658
          %2771 = vmatprep.subr.bf16.mxu0 %v2667
          %2772 = vmatpush1.bf16.msra.mxu0 %v2666
          %2773 = vmatprep.subr.bf16.mxu0 %v2675
          %2774 = vmatpush1.bf16.msra.mxu0 %v2674
          %2775 = vmatprep.subr.bf16.mxu0 %v2683
          %2776 = vmatpush1.bf16.msra.mxu0 %v2682
          %2777 = vmatprep.subr.bf16.mxu0 %v2691
          %2778 = vmatpush1.bf16.msra.mxu0 %v2690
          %2779 = vmatprep.subr.bf16.mxu0 %v2699
          %2780 = vmatpush1.bf16.msra.mxu0 %v2698
          %2781 = vmatprep.subr.bf16.mxu0 %v2707
          %2782 = vmatpush1.bf16.msra.mxu0 %v2706
          %2783 = vmatprep.subr.bf16.mxu0 %v2715
          %2784 = vmatpush1.bf16.msra.mxu0 %v2714
          %2785 = vmatprep.subr.bf16.mxu0 %v2723
          %2786 = vmatpush1.bf16.msra.mxu0 %v2722
          %2787 = vmatprep.subr.bf16.mxu0 %v2731
          %2788 = vmatpush1.bf16.msra.mxu0 %v2730
          %2789 = vmatprep.subr.bf16.mxu0 %v2739
          %2790 = vmatpush1.bf16.msra.mxu0 %v2738
          %2791 = vmatprep.subr.bf16.mxu0 %v2747
          %2792 = vmatpush1.bf16.msra.mxu0 %v2746
          %2793 = vmatprep.mubr.bf16.mxu0 %v2758
          %2794 = vmatmul.mubr.bf16.gmra.mrb[0].mxu0 %v2757
          %v2795 = vpop.f32.mrb[0].mxu0
          %v2796 = vadd.f32 0.0, %v2795
          %v2797 = vpop.f32.mrb[0].mxu0
          %v2798 = vadd.f32 0.0, %v2797
          %v2799 = vpop.f32.mrb[0].mxu0
          %v2800 = vpop.f32.mrb[0].mxu0
          %2801 = vdwg.mxu0
          %2802 = vmatprep.subr.bf16.mxu0 %v2629
          %2803 = vmatpush1.bf16.msra.mxu0 %v2628
          %2804 = vmatprep.subr.bf16.mxu0 %v2637
          %2805 = vmatpush1.bf16.msra.mxu0 %v2636
          %2806 = vmatprep.subr.bf16.mxu0 %v2645
          %2807 = vmatpush1.bf16.msra.mxu0 %v2644
          %2808 = vmatprep.subr.bf16.mxu0 %v2653
          %2809 = vmatpush1.bf16.msra.mxu0 %v2652
          %2810 = vmatprep.subr.bf16.mxu0 %v2661
          %2811 = vmatpush1.bf16.msra.mxu0 %v2660
          %2812 = vmatprep.subr.bf16.mxu0 %v2669
          %2813 = vmatpush1.bf16.msra.mxu0 %v2668
          %2814 = vmatprep.subr.bf16.mxu0 %v2677
          %2815 = vmatpush1.bf16.msra.mxu0 %v2676
          %2816 = vmatprep.subr.bf16.mxu0 %v2685
          %2817 = vmatpush1.bf16.msra.mxu0 %v2684
          %2818 = vmatprep.subr.bf16.mxu0 %v2693
          %2819 = vmatpush1.bf16.msra.mxu0 %v2692
          %2820 = vmatprep.subr.bf16.mxu0 %v2701
          %2821 = vmatpush1.bf16.msra.mxu0 %v2700
          %2822 = vmatprep.subr.bf16.mxu0 %v2709
          %2823 = vmatpush1.bf16.msra.mxu0 %v2708
          %2824 = vmatprep.subr.bf16.mxu0 %v2717
          %2825 = vmatpush1.bf16.msra.mxu0 %v2716
          %2826 = vmatprep.subr.bf16.mxu0 %v2725
          %2827 = vmatpush1.bf16.msra.mxu0 %v2724
          %2828 = vmatprep.subr.bf16.mxu0 %v2733
          %2829 = vmatpush1.bf16.msra.mxu0 %v2732
          %2830 = vmatprep.subr.bf16.mxu0 %v2741
          %2831 = vmatpush1.bf16.msra.mxu0 %v2740
          %2832 = vmatprep.subr.bf16.mxu0 %v2749
          %2833 = vmatpush1.bf16.msra.mxu0 %v2748
          %2834 = vmatprep.mubr.bf16.mxu0 %v2758
          %2835 = vmatmul.mubr.bf16.gmra.mrb[0].mxu0 %v2757
          %v2836 = vpop.f32.mrb[0].mxu0
          %v2837 = vadd.f32 0.0, %v2836
          %v2838 = vpop.f32.mrb[0].mxu0
          %v2839 = vadd.f32 0.0, %v2838
          %v2840 = vpop.f32.mrb[0].mxu0
          %v2841 = vpop.f32.mrb[0].mxu0
          %2842 = vdwg.mxu0
          %2843 = vmatprep.subr.bf16.mxu0 %v2631
          %2844 = vmatpush1.bf16.msra.mxu0 %v2630
          %2845 = vmatprep.subr.bf16.mxu0 %v2639
          %2846 = vmatpush1.bf16.msra.mxu0 %v2638
          %2847 = vmatprep.subr.bf16.mxu0 %v2647
          %2848 = vmatpush1.bf16.msra.mxu0 %v2646
          %2849 = vmatprep.subr.bf16.mxu0 %v2655
          %2850 = vmatpush1.bf16.msra.mxu0 %v2654
          %2851 = vmatprep.subr.bf16.mxu0 %v2663
          %2852 = vmatpush1.bf16.msra.mxu0 %v2662
          %2853 = vmatprep.subr.bf16.mxu0 %v2671
          %2854 = vmatpush1.bf16.msra.mxu0 %v2670
          %2855 = vmatprep.subr.bf16.mxu0 %v2679
          %2856 = vmatpush1.bf16.msra.mxu0 %v2678
          %2857 = vmatprep.subr.bf16.mxu0 %v2687
          %2858 = vmatpush1.bf16.msra.mxu0 %v2686
          %2859 = vmatprep.subr.bf16.mxu0 %v2695
          %2860 = vmatpush1.bf16.msra.mxu0 %v2694
          %2861 = vmatprep.subr.bf16.mxu0 %v2703
          %2862 = vmatpush1.bf16.msra.mxu0 %v2702
          %2863 = vmatprep.subr.bf16.mxu0 %v2711
          %2864 = vmatpush1.bf16.msra.mxu0 %v2710
          %2865 = vmatprep.subr.bf16.mxu0 %v2719
          %2866 = vmatpush1.bf16.msra.mxu0 %v2718
          %2867 = vmatprep.subr.bf16.mxu0 %v2727
          %2868 = vmatpush1.bf16.msra.mxu0 %v2726
          %2869 = vmatprep.subr.bf16.mxu0 %v2735
          %2870 = vmatpush1.bf16.msra.mxu0 %v2734
          %2871 = vmatprep.subr.bf16.mxu0 %v2743
          %2872 = vmatpush1.bf16.msra.mxu0 %v2742
          %2873 = vmatprep.subr.bf16.mxu0 %v2751
          %2874 = vmatpush1.bf16.msra.mxu0 %v2750
          %2875 = vmatprep.mubr.bf16.mxu0 %v2758
          %2876 = vmatmul.mubr.bf16.gmra.mrb[0].mxu0 %v2757
          %v2877 = vpop.f32.mrb[0].mxu0
          %v2878 = vadd.f32 0.0, %v2877
          %v2879 = vpop.f32.mrb[0].mxu0
          %v2880 = vadd.f32 0.0, %v2879
          %v2881 = vpop.f32.mrb[0].mxu0
          %v2882 = vpop.f32.mrb[0].mxu0
          %2883 = vdwg.mxu0
          %2884 = vmatprep.subr.bf16.mxu0 %v2633
          %2885 = vmatpush1.bf16.msra.mxu0 %v2632
          %2886 = vmatprep.subr.bf16.mxu0 %v2641
          %2887 = vmatpush1.bf16.msra.mxu0 %v2640
          %2888 = vmatprep.subr.bf16.mxu0 %v2649
          %2889 = vmatpush1.bf16.msra.mxu0 %v2648
          %2890 = vmatprep.subr.bf16.mxu0 %v2657
          %2891 = vmatpush1.bf16.msra.mxu0 %v2656
          %2892 = vmatprep.subr.bf16.mxu0 %v2665
          %2893 = vmatpush1.bf16.msra.mxu0 %v2664
          %2894 = vmatprep.subr.bf16.mxu0 %v2673
          %2895 = vmatpush1.bf16.msra.mxu0 %v2672
          %2896 = vmatprep.subr.bf16.mxu0 %v2681
          %2897 = vmatpush1.bf16.msra.mxu0 %v2680
          %2898 = vmatprep.subr.bf16.mxu0 %v2689
          %2899 = vmatpush1.bf16.msra.mxu0 %v2688
          %2900 = vmatprep.subr.bf16.mxu0 %v2697
          %2901 = vmatpush1.bf16.msra.mxu0 %v2696
          %2902 = vmatprep.subr.bf16.mxu0 %v2705
          %2903 = vmatpush1.bf16.msra.mxu0 %v2704
          %2904 = vmatprep.subr.bf16.mxu0 %v2713
          %2905 = vmatpush1.bf16.msra.mxu0 %v2712
          %2906 = vmatprep.subr.bf16.mxu0 %v2721
          %2907 = vmatpush1.bf16.msra.mxu0 %v2720
          %2908 = vmatprep.subr.bf16.mxu0 %v2729
          %2909 = vmatpush1.bf16.msra.mxu0 %v2728
          %2910 = vmatprep.subr.bf16.mxu0 %v2737
          %2911 = vmatpush1.bf16.msra.mxu0 %v2736
          %2912 = vmatprep.subr.bf16.mxu0 %v2745
          %2913 = vmatpush1.bf16.msra.mxu0 %v2744
          %2914 = vmatprep.subr.bf16.mxu0 %v2753
          %2915 = vmatpush1.bf16.msra.mxu0 %v2752
          %2916 = vmatprep.mubr.bf16.mxu0 %v2758
          %2917 = vmatmul.mubr.bf16.gmra.mrb[0].mxu0 %v2757
          %v2918 = vpop.f32.mrb[0].mxu0
          %v2919 = vadd.f32 0.0, %v2918
          %v2920 = vpop.f32.mrb[0].mxu0
          %v2921 = vadd.f32 0.0, %v2920
          %v2922 = vpop.f32.mrb[0].mxu0
          %v2923 = vpop.f32.mrb[0].mxu0
          %2924 = vdwg.mxu0
          %v2925 = vadd.f32 %v2494, %v2796
          %v2926 = vadd.f32 %v2496, %v2798
          %v2927 = vadd.f32 %v2535, %v2837
          %v2928 = vadd.f32 %v2537, %v2839
          %v2929 = vadd.f32 %v2576, %v2878
          %v2930 = vadd.f32 %v2578, %v2880
          %v2931 = vadd.f32 %v2617, %v2919
          %v2932 = vadd.f32 %v2619, %v2921
          %s2933 = sshll.u32 %s2018, 4
          %2934 = dma.done %s1982, %s2933
          %v2935 = vld [vmem:[%s0 + $0x18] sm:$0xff]
          %v2936 = vld [vmem:[%s1981] sm:$0xff]
          %v2937 = vld [vmem:[%s1981 + $0x8] sm:$0xff]
          %v2938 = vld [vmem:[%s1981 + $0x10] sm:$0xff]
          %v2939 = vld [vmem:[%s1981 + $0x18] sm:$0xff]
          %v2940 = vld [vmem:[%s1981 + $0x20] sm:$0xff]
          %v2941 = vld [vmem:[%s1981 + $0x28] sm:$0xff]
          %v2942 = vld [vmem:[%s1981 + $0x30] sm:$0xff]
          %v2943 = vld [vmem:[%s1981 + $0x38] sm:$0xff]
          %v2944 = vld [vmem:[%s1981 + $0x40] sm:$0xff]
          %v2945 = vld [vmem:[%s1981 + $0x48] sm:$0xff]
          %v2946 = vld [vmem:[%s1981 + $0x50] sm:$0xff]
          %v2947 = vld [vmem:[%s1981 + $0x58] sm:$0xff]
          %v2948 = vld [vmem:[%s1981 + $0x60] sm:$0xff]
          %v2949 = vld [vmem:[%s1981 + $0x68] sm:$0xff]
          %v2950 = vld [vmem:[%s1981 + $0x70] sm:$0xff]
          %v2951 = vld [vmem:[%s1981 + $0x78] sm:$0xff]
          %v2952 = vld [vmem:[%s1981 + $0x80] sm:$0xff]
          %v2953 = vld [vmem:[%s1981 + $0x88] sm:$0xff]
          %v2954 = vld [vmem:[%s1981 + $0x90] sm:$0xff]
          %v2955 = vld [vmem:[%s1981 + $0x98] sm:$0xff]
          %v2956 = vld [vmem:[%s1981 + $0xa0] sm:$0xff]
          %v2957 = vld [vmem:[%s1981 + $0xa8] sm:$0xff]
          %v2958 = vld [vmem:[%s1981 + $0xb0] sm:$0xff]
          %v2959 = vld [vmem:[%s1981 + $0xb8] sm:$0xff]
          %v2960 = vld [vmem:[%s1981 + $0xc0] sm:$0xff]
          %v2961 = vld [vmem:[%s1981 + $0xc8] sm:$0xff]
          %v2962 = vld [vmem:[%s1981 + $0xd0] sm:$0xff]
          %v2963 = vld [vmem:[%s1981 + $0xd8] sm:$0xff]
          %v2964 = vld [vmem:[%s1981 + $0xe0] sm:$0xff]
          %v2965 = vld [vmem:[%s1981 + $0xe8] sm:$0xff]
          %v2966 = vld [vmem:[%s1981 + $0xf0] sm:$0xff]
          %v2967 = vld [vmem:[%s1981 + $0xf8] sm:$0xff]
          %v2968 = vld [vmem:[%s1981 + $0x100] sm:$0xff]
          %v2969 = vld [vmem:[%s1981 + $0x108] sm:$0xff]
          %v2970 = vld [vmem:[%s1981 + $0x110] sm:$0xff]
          %v2971 = vld [vmem:[%s1981 + $0x118] sm:$0xff]
          %v2972 = vld [vmem:[%s1981 + $0x120] sm:$0xff]
          %v2973 = vld [vmem:[%s1981 + $0x128] sm:$0xff]
          %v2974 = vld [vmem:[%s1981 + $0x130] sm:$0xff]
          %v2975 = vld [vmem:[%s1981 + $0x138] sm:$0xff]
          %v2976 = vld [vmem:[%s1981 + $0x140] sm:$0xff]
          %v2977 = vld [vmem:[%s1981 + $0x148] sm:$0xff]
          %v2978 = vld [vmem:[%s1981 + $0x150] sm:$0xff]
          %v2979 = vld [vmem:[%s1981 + $0x158] sm:$0xff]
          %v2980 = vld [vmem:[%s1981 + $0x160] sm:$0xff]
          %v2981 = vld [vmem:[%s1981 + $0x168] sm:$0xff]
          %v2982 = vld [vmem:[%s1981 + $0x170] sm:$0xff]
          %v2983 = vld [vmem:[%s1981 + $0x178] sm:$0xff]
          %v2984 = vld [vmem:[%s1981 + $0x180] sm:$0xff]
          %v2985 = vld [vmem:[%s1981 + $0x188] sm:$0xff]
          %v2986 = vld [vmem:[%s1981 + $0x190] sm:$0xff]
          %v2987 = vld [vmem:[%s1981 + $0x198] sm:$0xff]
          %v2988 = vld [vmem:[%s1981 + $0x1a0] sm:$0xff]
          %v2989 = vld [vmem:[%s1981 + $0x1a8] sm:$0xff]
          %v2990 = vld [vmem:[%s1981 + $0x1b0] sm:$0xff]
          %v2991 = vld [vmem:[%s1981 + $0x1b8] sm:$0xff]
          %v2992 = vld [vmem:[%s1981 + $0x1c0] sm:$0xff]
          %v2993 = vld [vmem:[%s1981 + $0x1c8] sm:$0xff]
          %v2994 = vld [vmem:[%s1981 + $0x1d0] sm:$0xff]
          %v2995 = vld [vmem:[%s1981 + $0x1d8] sm:$0xff]
          %v2996 = vld [vmem:[%s1981 + $0x1e0] sm:$0xff]
          %v2997 = vld [vmem:[%s1981 + $0x1e8] sm:$0xff]
          %v2998 = vld [vmem:[%s1981 + $0x1f0] sm:$0xff]
          %v2999 = vld [vmem:[%s1981 + $0x1f8] sm:$0xff]
          %v3000 = vld [vmem:[%s1981 + $0x200] sm:$0xff]
          %v3001 = vld [vmem:[%s1981 + $0x208] sm:$0xff]
          %v3002 = vld [vmem:[%s1981 + $0x210] sm:$0xff]
          %v3003 = vld [vmem:[%s1981 + $0x218] sm:$0xff]
          %v3004 = vld [vmem:[%s1981 + $0x220] sm:$0xff]
          %v3005 = vld [vmem:[%s1981 + $0x228] sm:$0xff]
          %v3006 = vld [vmem:[%s1981 + $0x230] sm:$0xff]
          %v3007 = vld [vmem:[%s1981 + $0x238] sm:$0xff]
          %v3008 = vld [vmem:[%s1981 + $0x240] sm:$0xff]
          %v3009 = vld [vmem:[%s1981 + $0x248] sm:$0xff]
          %v3010 = vld [vmem:[%s1981 + $0x250] sm:$0xff]
          %v3011 = vld [vmem:[%s1981 + $0x258] sm:$0xff]
          %v3012 = vld [vmem:[%s1981 + $0x260] sm:$0xff]
          %v3013 = vld [vmem:[%s1981 + $0x268] sm:$0xff]
          %v3014 = vld [vmem:[%s1981 + $0x270] sm:$0xff]
          %v3015 = vld [vmem:[%s1981 + $0x278] sm:$0xff]
          %v3016 = vld [vmem:[%s1981 + $0x280] sm:$0xff]
          %v3017 = vld [vmem:[%s1981 + $0x288] sm:$0xff]
          %v3018 = vld [vmem:[%s1981 + $0x290] sm:$0xff]
          %v3019 = vld [vmem:[%s1981 + $0x298] sm:$0xff]
          %v3020 = vld [vmem:[%s1981 + $0x2a0] sm:$0xff]
          %v3021 = vld [vmem:[%s1981 + $0x2a8] sm:$0xff]
          %v3022 = vld [vmem:[%s1981 + $0x2b0] sm:$0xff]
          %v3023 = vld [vmem:[%s1981 + $0x2b8] sm:$0xff]
          %v3024 = vld [vmem:[%s1981 + $0x2c0] sm:$0xff]
          %v3025 = vld [vmem:[%s1981 + $0x2c8] sm:$0xff]
          %v3026 = vld [vmem:[%s1981 + $0x2d0] sm:$0xff]
          %v3027 = vld [vmem:[%s1981 + $0x2d8] sm:$0xff]
          %v3028 = vld [vmem:[%s1981 + $0x2e0] sm:$0xff]
          %v3029 = vld [vmem:[%s1981 + $0x2e8] sm:$0xff]
          %v3030 = vld [vmem:[%s1981 + $0x2f0] sm:$0xff]
          %v3031 = vld [vmem:[%s1981 + $0x2f8] sm:$0xff]
          %v3032 = vld [vmem:[%s1981 + $0x300] sm:$0xff]
          %v3033 = vld [vmem:[%s1981 + $0x308] sm:$0xff]
          %v3034 = vld [vmem:[%s1981 + $0x310] sm:$0xff]
          %v3035 = vld [vmem:[%s1981 + $0x318] sm:$0xff]
          %v3036 = vld [vmem:[%s1981 + $0x320] sm:$0xff]
          %v3037 = vld [vmem:[%s1981 + $0x328] sm:$0xff]
          %v3038 = vld [vmem:[%s1981 + $0x330] sm:$0xff]
          %v3039 = vld [vmem:[%s1981 + $0x338] sm:$0xff]
          %v3040 = vld [vmem:[%s1981 + $0x340] sm:$0xff]
          %v3041 = vld [vmem:[%s1981 + $0x348] sm:$0xff]
          %v3042 = vld [vmem:[%s1981 + $0x350] sm:$0xff]
          %v3043 = vld [vmem:[%s1981 + $0x358] sm:$0xff]
          %v3044 = vld [vmem:[%s1981 + $0x360] sm:$0xff]
          %v3045 = vld [vmem:[%s1981 + $0x368] sm:$0xff]
          %v3046 = vld [vmem:[%s1981 + $0x370] sm:$0xff]
          %v3047 = vld [vmem:[%s1981 + $0x378] sm:$0xff]
          %v3048 = vld [vmem:[%s1981 + $0x380] sm:$0xff]
          %v3049 = vld [vmem:[%s1981 + $0x388] sm:$0xff]
          %v3050 = vld [vmem:[%s1981 + $0x390] sm:$0xff]
          %v3051 = vld [vmem:[%s1981 + $0x398] sm:$0xff]
          %v3052 = vld [vmem:[%s1981 + $0x3a0] sm:$0xff]
          %v3053 = vld [vmem:[%s1981 + $0x3a8] sm:$0xff]
          %v3054 = vld [vmem:[%s1981 + $0x3b0] sm:$0xff]
          %v3055 = vld [vmem:[%s1981 + $0x3b8] sm:$0xff]
          %v3056 = vld [vmem:[%s1981 + $0x3c0] sm:$0xff]
          %v3057 = vld [vmem:[%s1981 + $0x3c8] sm:$0xff]
          %v3058 = vld [vmem:[%s1981 + $0x3d0] sm:$0xff]
          %v3059 = vld [vmem:[%s1981 + $0x3d8] sm:$0xff]
          %v3060 = vld [vmem:[%s1981 + $0x3e0] sm:$0xff]
          %v3061 = vld [vmem:[%s1981 + $0x3e8] sm:$0xff]
          %v3062 = vld [vmem:[%s1981 + $0x3f0] sm:$0xff]
          %v3063 = vld [vmem:[%s1981 + $0x3f8] sm:$0xff]
          %v3065 = vunpack.c.l.b16 %v2935
          %v3066 = vunpack.c.h.b16 %v2935
          %v3067 = vpack.c.b16 %v3065, %v3065
          %v3068 = vpack.c.b16 %v3066, %v3066
          %3071 = vmatprep.subr.bf16.mxu0 %v2937
          %3072 = vmatpush1.bf16.msra.mxu0 %v2936
          %3073 = vmatprep.subr.bf16.mxu0 %v2945
          %3074 = vmatpush1.bf16.msra.mxu0 %v2944
          %3075 = vmatprep.subr.bf16.mxu0 %v2953
          %3076 = vmatpush1.bf16.msra.mxu0 %v2952
          %3077 = vmatprep.subr.bf16.mxu0 %v2961
          %3078 = vmatpush1.bf16.msra.mxu0 %v2960
          %3079 = vmatprep.subr.bf16.mxu0 %v2969
          %3080 = vmatpush1.bf16.msra.mxu0 %v2968
          %3081 = vmatprep.subr.bf16.mxu0 %v2977
          %3082 = vmatpush1.bf16.msra.mxu0 %v2976
          %3083 = vmatprep.subr.bf16.mxu0 %v2985
          %3084 = vmatpush1.bf16.msra.mxu0 %v2984
          %3085 = vmatprep.subr.bf16.mxu0 %v2993
          %3086 = vmatpush1.bf16.msra.mxu0 %v2992
          %3087 = vmatprep.subr.bf16.mxu0 %v3001
          %3088 = vmatpush1.bf16.msra.mxu0 %v3000
          %3089 = vmatprep.subr.bf16.mxu0 %v3009
          %3090 = vmatpush1.bf16.msra.mxu0 %v3008
          %3091 = vmatprep.subr.bf16.mxu0 %v3017
          %3092 = vmatpush1.bf16.msra.mxu0 %v3016
          %3093 = vmatprep.subr.bf16.mxu0 %v3025
          %3094 = vmatpush1.bf16.msra.mxu0 %v3024
          %3095 = vmatprep.subr.bf16.mxu0 %v3033
          %3096 = vmatpush1.bf16.msra.mxu0 %v3032
          %3097 = vmatprep.subr.bf16.mxu0 %v3041
          %3098 = vmatpush1.bf16.msra.mxu0 %v3040
          %3099 = vmatprep.subr.bf16.mxu0 %v3049
          %3100 = vmatpush1.bf16.msra.mxu0 %v3048
          %3101 = vmatprep.subr.bf16.mxu0 %v3057
          %3102 = vmatpush1.bf16.msra.mxu0 %v3056
          %3103 = vmatprep.mubr.bf16.mxu0 %v3068
          %3104 = vmatmul.mubr.bf16.gmra.mrb[0].mxu0 %v3067
          %v3105 = vpop.f32.mrb[0].mxu0
          %v3106 = vadd.f32 0.0, %v3105
          %v3107 = vpop.f32.mrb[0].mxu0
          %v3108 = vadd.f32 0.0, %v3107
          %v3109 = vpop.f32.mrb[0].mxu0
          %v3110 = vpop.f32.mrb[0].mxu0
          %3111 = vdwg.mxu0
          %3112 = vmatprep.subr.bf16.mxu0 %v2939
          %3113 = vmatpush1.bf16.msra.mxu0 %v2938
          %3114 = vmatprep.subr.bf16.mxu0 %v2947
          %3115 = vmatpush1.bf16.msra.mxu0 %v2946
          %3116 = vmatprep.subr.bf16.mxu0 %v2955
          %3117 = vmatpush1.bf16.msra.mxu0 %v2954
          %3118 = vmatprep.subr.bf16.mxu0 %v2963
          %3119 = vmatpush1.bf16.msra.mxu0 %v2962
          %3120 = vmatprep.subr.bf16.mxu0 %v2971
          %3121 = vmatpush1.bf16.msra.mxu0 %v2970
          %3122 = vmatprep.subr.bf16.mxu0 %v2979
          %3123 = vmatpush1.bf16.msra.mxu0 %v2978
          %3124 = vmatprep.subr.bf16.mxu0 %v2987
          %3125 = vmatpush1.bf16.msra.mxu0 %v2986
          %3126 = vmatprep.subr.bf16.mxu0 %v2995
          %3127 = vmatpush1.bf16.msra.mxu0 %v2994
          %3128 = vmatprep.subr.bf16.mxu0 %v3003
          %3129 = vmatpush1.bf16.msra.mxu0 %v3002
          %3130 = vmatprep.subr.bf16.mxu0 %v3011
          %3131 = vmatpush1.bf16.msra.mxu0 %v3010
          %3132 = vmatprep.subr.bf16.mxu0 %v3019
          %3133 = vmatpush1.bf16.msra.mxu0 %v3018
          %3134 = vmatprep.subr.bf16.mxu0 %v3027
          %3135 = vmatpush1.bf16.msra.mxu0 %v3026
          %3136 = vmatprep.subr.bf16.mxu0 %v3035
          %3137 = vmatpush1.bf16.msra.mxu0 %v3034
          %3138 = vmatprep.subr.bf16.mxu0 %v3043
          %3139 = vmatpush1.bf16.msra.mxu0 %v3042
          %3140 = vmatprep.subr.bf16.mxu0 %v3051
          %3141 = vmatpush1.bf16.msra.mxu0 %v3050
          %3142 = vmatprep.subr.bf16.mxu0 %v3059
          %3143 = vmatpush1.bf16.msra.mxu0 %v3058
          %3144 = vmatprep.mubr.bf16.mxu0 %v3068
          %3145 = vmatmul.mubr.bf16.gmra.mrb[0].mxu0 %v3067
          %v3146 = vpop.f32.mrb[0].mxu0
          %v3147 = vadd.f32 0.0, %v3146
          %v3148 = vpop.f32.mrb[0].mxu0
          %v3149 = vadd.f32 0.0, %v3148
          %v3150 = vpop.f32.mrb[0].mxu0
          %v3151 = vpop.f32.mrb[0].mxu0
          %3152 = vdwg.mxu0
          %3153 = vmatprep.subr.bf16.mxu0 %v2941
          %3154 = vmatpush1.bf16.msra.mxu0 %v2940
          %3155 = vmatprep.subr.bf16.mxu0 %v2949
          %3156 = vmatpush1.bf16.msra.mxu0 %v2948
          %3157 = vmatprep.subr.bf16.mxu0 %v2957
          %3158 = vmatpush1.bf16.msra.mxu0 %v2956
          %3159 = vmatprep.subr.bf16.mxu0 %v2965
          %3160 = vmatpush1.bf16.msra.mxu0 %v2964
          %3161 = vmatprep.subr.bf16.mxu0 %v2973
          %3162 = vmatpush1.bf16.msra.mxu0 %v2972
          %3163 = vmatprep.subr.bf16.mxu0 %v2981
          %3164 = vmatpush1.bf16.msra.mxu0 %v2980
          %3165 = vmatprep.subr.bf16.mxu0 %v2989
          %3166 = vmatpush1.bf16.msra.mxu0 %v2988
          %3167 = vmatprep.subr.bf16.mxu0 %v2997
          %3168 = vmatpush1.bf16.msra.mxu0 %v2996
          %3169 = vmatprep.subr.bf16.mxu0 %v3005
          %3170 = vmatpush1.bf16.msra.mxu0 %v3004
          %3171 = vmatprep.subr.bf16.mxu0 %v3013
          %3172 = vmatpush1.bf16.msra.mxu0 %v3012
          %3173 = vmatprep.subr.bf16.mxu0 %v3021
          %3174 = vmatpush1.bf16.msra.mxu0 %v3020
          %3175 = vmatprep.subr.bf16.mxu0 %v3029
          %3176 = vmatpush1.bf16.msra.mxu0 %v3028
          %3177 = vmatprep.subr.bf16.mxu0 %v3037
          %3178 = vmatpush1.bf16.msra.mxu0 %v3036
          %3179 = vmatprep.subr.bf16.mxu0 %v3045
          %3180 = vmatpush1.bf16.msra.mxu0 %v3044
          %3181 = vmatprep.subr.bf16.mxu0 %v3053
          %3182 = vmatpush1.bf16.msra.mxu0 %v3052
          %3183 = vmatprep.subr.bf16.mxu0 %v3061
          %3184 = vmatpush1.bf16.msra.mxu0 %v3060
          %3185 = vmatprep.mubr.bf16.mxu0 %v3068
          %3186 = vmatmul.mubr.bf16.gmra.mrb[0].mxu0 %v3067
          %v3187 = vpop.f32.mrb[0].mxu0
          %v3188 = vadd.f32 0.0, %v3187
          %v3189 = vpop.f32.mrb[0].mxu0
          %v3190 = vadd.f32 0.0, %v3189
          %v3191 = vpop.f32.mrb[0].mxu0
          %v3192 = vpop.f32.mrb[0].mxu0
          %3193 = vdwg.mxu0
          %3194 = vmatprep.subr.bf16.mxu0 %v2943
          %3195 = vmatpush1.bf16.msra.mxu0 %v2942
          %3196 = vmatprep.subr.bf16.mxu0 %v2951
          %3197 = vmatpush1.bf16.msra.mxu0 %v2950
          %3198 = vmatprep.subr.bf16.mxu0 %v2959
          %3199 = vmatpush1.bf16.msra.mxu0 %v2958
          %3200 = vmatprep.subr.bf16.mxu0 %v2967
          %3201 = vmatpush1.bf16.msra.mxu0 %v2966
          %3202 = vmatprep.subr.bf16.mxu0 %v2975
          %3203 = vmatpush1.bf16.msra.mxu0 %v2974
          %3204 = vmatprep.subr.bf16.mxu0 %v2983
          %3205 = vmatpush1.bf16.msra.mxu0 %v2982
          %3206 = vmatprep.subr.bf16.mxu0 %v2991
          %3207 = vmatpush1.bf16.msra.mxu0 %v2990
          %3208 = vmatprep.subr.bf16.mxu0 %v2999
          %3209 = vmatpush1.bf16.msra.mxu0 %v2998
          %3210 = vmatprep.subr.bf16.mxu0 %v3007
          %3211 = vmatpush1.bf16.msra.mxu0 %v3006
          %3212 = vmatprep.subr.bf16.mxu0 %v3015
          %3213 = vmatpush1.bf16.msra.mxu0 %v3014
          %3214 = vmatprep.subr.bf16.mxu0 %v3023
          %3215 = vmatpush1.bf16.msra.mxu0 %v3022
          %3216 = vmatprep.subr.bf16.mxu0 %v3031
          %3217 = vmatpush1.bf16.msra.mxu0 %v3030
          %3218 = vmatprep.subr.bf16.mxu0 %v3039
          %3219 = vmatpush1.bf16.msra.mxu0 %v3038
          %3220 = vmatprep.subr.bf16.mxu0 %v3047
          %3221 = vmatpush1.bf16.msra.mxu0 %v3046
          %3222 = vmatprep.subr.bf16.mxu0 %v3055
          %3223 = vmatpush1.bf16.msra.mxu0 %v3054
          %3224 = vmatprep.subr.bf16.mxu0 %v3063
          %3225 = vmatpush1.bf16.msra.mxu0 %v3062
          %3226 = vmatprep.mubr.bf16.mxu0 %v3068
          %3227 = vmatmul.mubr.bf16.gmra.mrb[0].mxu0 %v3067
          %v3228 = vpop.f32.mrb[0].mxu0
          %v3229 = vadd.f32 0.0, %v3228
          %v3230 = vpop.f32.mrb[0].mxu0
          %v3231 = vadd.f32 0.0, %v3230
          %v3232 = vpop.f32.mrb[0].mxu0
          %v3233 = vpop.f32.mrb[0].mxu0
          %3234 = vdwg.mxu0
          %v3235 = vadd.f32 %v2925, %v3106
          %v3236 = vadd.f32 %v2926, %v3108
          %v3237 = vadd.f32 %v2927, %v3147
          %v3238 = vadd.f32 %v2928, %v3149
          %v3239 = vadd.f32 %v2929, %v3188
          %v3240 = vadd.f32 %v2930, %v3190
          %v3241 = vadd.f32 %v2931, %v3229
          %v3242 = vadd.f32 %v2932, %v3231
          %v3243 = vld [vmem:[%s232] sm:$0xff]
          %v3245 = vlaneseq
          %v3246 = vshrl.u32 %v3245, 7
          %v3247 = vsub.s32 0, %v3246
          %v3248 = vrot.slane %v3243, %v3247
          %v3249 = vlaneseq
          %v3250 = vshrl.u32 %v3249, 7
          %v3251 = vsub.s32 1, %v3250
          %v3252 = vrot.slane %v3243, %v3251
          %v3253 = vlaneseq
          %v3254 = vshrl.u32 %v3253, 7
          %v3255 = vsub.s32 2, %v3254
          %v3256 = vrot.slane %v3243, %v3255
          %v3257 = vlaneseq
          %v3258 = vshrl.u32 %v3257, 7
          %v3259 = vsub.s32 3, %v3258
          %v3260 = vrot.slane %v3243, %v3259
          %v3261 = vlaneseq
          %v3262 = vshrl.u32 %v3261, 7
          %v3263 = vsub.s32 4, %v3262
          %v3264 = vrot.slane %v3243, %v3263
          %v3265 = vlaneseq
          %v3266 = vshrl.u32 %v3265, 7
          %v3267 = vsub.s32 5, %v3266
          %v3268 = vrot.slane %v3243, %v3267
          %v3269 = vlaneseq
          %v3270 = vshrl.u32 %v3269, 7
          %v3271 = vsub.s32 6, %v3270
          %v3272 = vrot.slane %v3243, %v3271
          %v3273 = vlaneseq
          %v3274 = vshrl.u32 %v3273, 7
          %v3275 = vsub.s32 7, %v3274
          %v3276 = vrot.slane %v3243, %v3275
          %v3285 = vadd.f32 %v3235, %v3248
          %v3286 = vadd.f32 %v3236, %v3252
          %v3287 = vadd.f32 %v3237, %v3256
          %v3288 = vadd.f32 %v3238, %v3260
          %v3289 = vadd.f32 %v3239, %v3264
          %v3290 = vadd.f32 %v3240, %v3268
          %v3291 = vadd.f32 %v3241, %v3272
          %v3292 = vadd.f32 %v3242, %v3276
          %v3293 = vmul.f32 %v3285, 0.5
          %v3294 = vmul.f32 %v3286, 0.5
          %v3295 = vmul.f32 %v3287, 0.5
          %v3296 = vmul.f32 %v3288, 0.5
          %v3297 = vmul.f32 %v3289, 0.5
          %v3298 = vmul.f32 %v3290, 0.5
          %v3299 = vmul.f32 %v3291, 0.5
          %v3300 = vmul.f32 %v3292, 0.5
          %v3301 = vmul.f32 %v3285, 0.70710677
          %v3302 = vmul.f32 %v3286, 0.70710677
          %v3303 = vmul.f32 %v3287, 0.70710677
          %v3304 = vmul.f32 %v3288, 0.70710677
          %v3305 = vmul.f32 %v3289, 0.70710677
          %v3306 = vmul.f32 %v3290, 0.70710677
          %v3307 = vmul.f32 %v3291, 0.70710677
          %v3308 = vmul.f32 %v3292, 0.70710677
          %v3309 = verf.f32.pop %v3301
          %v3310 = verf.f32.pop %v3302
          %v3311 = verf.f32.pop %v3303
          %v3312 = verf.f32.pop %v3304
          %v3313 = verf.f32.pop %v3305
          %v3314 = verf.f32.pop %v3306
          %v3315 = verf.f32.pop %v3307
          %v3316 = verf.f32.pop %v3308
          %v3317 = vadd.f32 %v3309, 1.0
          %v3318 = vadd.f32 %v3310, 1.0
          %v3319 = vadd.f32 %v3311, 1.0
          %v3320 = vadd.f32 %v3312, 1.0
          %v3321 = vadd.f32 %v3313, 1.0
          %v3322 = vadd.f32 %v3314, 1.0
          %v3323 = vadd.f32 %v3315, 1.0
          %v3324 = vadd.f32 %v3316, 1.0
          %v3325 = vmul.f32 %v3293, %v3317
          %v3326 = vmul.f32 %v3294, %v3318
          %v3327 = vmul.f32 %v3295, %v3319
          %v3328 = vmul.f32 %v3296, %v3320
          %v3329 = vmul.f32 %v3297, %v3321
          %v3330 = vmul.f32 %v3298, %v3322
          %v3331 = vmul.f32 %v3299, %v3323
          %v3332 = vmul.f32 %v3300, %v3324
          %v3333 = vld [vmem:[%s241] sm:$0xff]
          %v3334 = vld [vmem:[%s241 + $0x8] sm:$0xff]
          %v3335 = vld [vmem:[%s241 + $0x10] sm:$0xff]
          %v3336 = vld [vmem:[%s241 + $0x18] sm:$0xff]
          %v3337 = vpack.c.bf16 %v3325, %v3325
          %v3338 = vpack.c.bf16 %v3326, %v3326
          %v3339 = vpack.c.bf16 %v3327, %v3327
          %v3340 = vpack.c.bf16 %v3328, %v3328
          %v3341 = vpack.c.bf16 %v3329, %v3329
          %v3342 = vpack.c.bf16 %v3330, %v3330
          %v3343 = vpack.c.bf16 %v3331, %v3331
          %v3344 = vpack.c.bf16 %v3332, %v3332
          %v3345 = vld [vmem:[%s249] sm:$0x1]
          %v3347 = vlaneseq
          %v3348 = vshrl.u32 %v3347, 7
          %v3349 = vsub.s32 0, %v3348
          %v3350 = vrot.slane %v3345, %v3349
          %v3356 = vunpack.c.l.b16 %v3333
          %v3357 = vunpack.c.h.b16 %v3333
          %v3358 = vunpack.c.l.b16 %v3334
          %v3359 = vunpack.c.h.b16 %v3334
          %v3360 = vunpack.c.l.b16 %v3335
          %v3361 = vunpack.c.h.b16 %v3335
          %v3362 = vunpack.c.l.b16 %v3336
          %v3363 = vunpack.c.h.b16 %v3336
          %v3364 = vpack.c.b16 %v3356, %v3356
          %v3365 = vpack.c.b16 %v3357, %v3357
          %v3366 = vpack.c.b16 %v3358, %v3358
          %v3367 = vpack.c.b16 %v3359, %v3359
          %v3368 = vpack.c.b16 %v3360, %v3360
          %v3369 = vpack.c.b16 %v3361, %v3361
          %v3370 = vpack.c.b16 %v3362, %v3362
          %v3371 = vpack.c.b16 %v3363, %v3363
          %3380 = vmatprep.subr.bf16.mxu0 %v3365
          %3381 = vmatpush1.bf16.xpose.msra.mxu0 %v3364
          %3382 = vmatprep.subr.bf16.mxu0 0
          %3383 = vmatpush1.bf16.xpose.msra.mxu0 0
          %3384 = vmatprep.subr.bf16.mxu0 0
          %3385 = vmatpush1.bf16.xpose.msra.mxu0 0
          %3386 = vmatprep.subr.bf16.mxu0 0
          %3387 = vmatpush1.bf16.xpose.msra.mxu0 0
          %3388 = vmatprep.subr.bf16.mxu0 0
          %3389 = vmatpush1.bf16.xpose.msra.mxu0 0
          %3390 = vmatprep.subr.bf16.mxu0 0
          %3391 = vmatpush1.bf16.xpose.msra.mxu0 0
          %3392 = vmatprep.subr.bf16.mxu0 0
          %3393 = vmatpush1.bf16.xpose.msra.mxu0 0
          %3394 = vmatprep.subr.bf16.mxu0 0
          %3395 = vmatpush1.bf16.xpose.msra.mxu0 0
          %3396 = vmatprep.subr.bf16.mxu0 0
          %3397 = vmatpush1.bf16.xpose.msra.mxu0 0
          %3398 = vmatprep.subr.bf16.mxu0 0
          %3399 = vmatpush1.bf16.xpose.msra.mxu0 0
          %3400 = vmatprep.subr.bf16.mxu0 0
          %3401 = vmatpush1.bf16.xpose.msra.mxu0 0
          %3402 = vmatprep.subr.bf16.mxu0 0
          %3403 = vmatpush1.bf16.xpose.msra.mxu0 0
          %3404 = vmatprep.subr.bf16.mxu0 0
          %3405 = vmatpush1.bf16.xpose.msra.mxu0 0
          %3406 = vmatprep.subr.bf16.mxu0 0
          %3407 = vmatpush1.bf16.xpose.msra.mxu0 0
          %3408 = vmatprep.subr.bf16.mxu0 0
          %3409 = vmatpush1.bf16.xpose.msra.mxu0 0
          %3410 = vmatprep.subr.bf16.mxu0 0
          %3411 = vmatpush1.bf16.xpose.msra.mxu0 0
          %3412 = vmatprep.mubr.bf16.mxu0 %v3338
          %3413 = vmatmul.mubr.bf16.gmra.mrb[0].mxu0 %v3337
          %v3414 = vpop.f32.mrb[0].mxu0
          %v3415 = vadd.f32 %v3350, %v3414
          %v3416 = vpop.f32.mrb[0].mxu0
          %v3417 = vpop.f32.mrb[0].mxu0
          %v3418 = vpop.f32.mrb[0].mxu0
          %3419 = vdwg.mxu0
          %3420 = vmatprep.subr.bf16.mxu0 %v3367
          %3421 = vmatpush1.bf16.xpose.msra.mxu0 %v3366
          %3422 = vmatprep.subr.bf16.mxu0 0
          %3423 = vmatpush1.bf16.xpose.msra.mxu0 0
          %3424 = vmatprep.subr.bf16.mxu0 0
          %3425 = vmatpush1.bf16.xpose.msra.mxu0 0
          %3426 = vmatprep.subr.bf16.mxu0 0
          %3427 = vmatpush1.bf16.xpose.msra.mxu0 0
          %3428 = vmatprep.subr.bf16.mxu0 0
          %3429 = vmatpush1.bf16.xpose.msra.mxu0 0
          %3430 = vmatprep.subr.bf16.mxu0 0
          %3431 = vmatpush1.bf16.xpose.msra.mxu0 0
          %3432 = vmatprep.subr.bf16.mxu0 0
          %3433 = vmatpush1.bf16.xpose.msra.mxu0 0
          %3434 = vmatprep.subr.bf16.mxu0 0
          %3435 = vmatpush1.bf16.xpose.msra.mxu0 0
          %3436 = vmatprep.subr.bf16.mxu0 0
          %3437 = vmatpush1.bf16.xpose.msra.mxu0 0
          %3438 = vmatprep.subr.bf16.mxu0 0
          %3439 = vmatpush1.bf16.xpose.msra.mxu0 0
          %3440 = vmatprep.subr.bf16.mxu0 0
          %3441 = vmatpush1.bf16.xpose.msra.mxu0 0
          %3442 = vmatprep.subr.bf16.mxu0 0
          %3443 = vmatpush1.bf16.xpose.msra.mxu0 0
          %3444 = vmatprep.subr.bf16.mxu0 0
          %3445 = vmatpush1.bf16.xpose.msra.mxu0 0
          %3446 = vmatprep.subr.bf16.mxu0 0
          %3447 = vmatpush1.bf16.xpose.msra.mxu0 0
          %3448 = vmatprep.subr.bf16.mxu0 0
          %3449 = vmatpush1.bf16.xpose.msra.mxu0 0
          %3450 = vmatprep.subr.bf16.mxu0 0
          %3451 = vmatpush1.bf16.xpose.msra.mxu0 0
          %3452 = vmatprep.mubr.bf16.mxu0 %v3340
          %3453 = vmatmul.mubr.bf16.gmra.mrb[0].mxu0 %v3339
          %v3454 = vpop.f32.mrb[0].mxu0
          %v3455 = vadd.f32 %v3415, %v3454
          %v3456 = vpop.f32.mrb[0].mxu0
          %v3457 = vpop.f32.mrb[0].mxu0
          %v3458 = vpop.f32.mrb[0].mxu0
          %3459 = vdwg.mxu0
          %3460 = vmatprep.subr.bf16.mxu0 %v3369
          %3461 = vmatpush1.bf16.xpose.msra.mxu0 %v3368
          %3462 = vmatprep.subr.bf16.mxu0 0
          %3463 = vmatpush1.bf16.xpose.msra.mxu0 0
          %3464 = vmatprep.subr.bf16.mxu0 0
          %3465 = vmatpush1.bf16.xpose.msra.mxu0 0
          %3466 = vmatprep.subr.bf16.mxu0 0
          %3467 = vmatpush1.bf16.xpose.msra.mxu0 0
          %3468 = vmatprep.subr.bf16.mxu0 0
          %3469 = vmatpush1.bf16.xpose.msra.mxu0 0
          %3470 = vmatprep.subr.bf16.mxu0 0
          %3471 = vmatpush1.bf16.xpose.msra.mxu0 0
          %3472 = vmatprep.subr.bf16.mxu0 0
          %3473 = vmatpush1.bf16.xpose.msra.mxu0 0
          %3474 = vmatprep.subr.bf16.mxu0 0
          %3475 = vmatpush1.bf16.xpose.msra.mxu0 0
          %3476 = vmatprep.subr.bf16.mxu0 0
          %3477 = vmatpush1.bf16.xpose.msra.mxu0 0
          %3478 = vmatprep.subr.bf16.mxu0 0
          %3479 = vmatpush1.bf16.xpose.msra.mxu0 0
          %3480 = vmatprep.subr.bf16.mxu0 0
          %3481 = vmatpush1.bf16.xpose.msra.mxu0 0
          %3482 = vmatprep.subr.bf16.mxu0 0
          %3483 = vmatpush1.bf16.xpose.msra.mxu0 0
          %3484 = vmatprep.subr.bf16.mxu0 0
          %3485 = vmatpush1.bf16.xpose.msra.mxu0 0
          %3486 = vmatprep.subr.bf16.mxu0 0
          %3487 = vmatpush1.bf16.xpose.msra.mxu0 0
          %3488 = vmatprep.subr.bf16.mxu0 0
          %3489 = vmatpush1.bf16.xpose.msra.mxu0 0
          %3490 = vmatprep.subr.bf16.mxu0 0
          %3491 = vmatpush1.bf16.xpose.msra.mxu0 0
          %3492 = vmatprep.mubr.bf16.mxu0 %v3342
          %3493 = vmatmul.mubr.bf16.gmra.mrb[0].mxu0 %v3341
          %v3494 = vpop.f32.mrb[0].mxu0
          %v3495 = vadd.f32 %v3455, %v3494
          %v3496 = vpop.f32.mrb[0].mxu0
          %v3497 = vpop.f32.mrb[0].mxu0
          %v3498 = vpop.f32.mrb[0].mxu0
          %3499 = vdwg.mxu0
          %3500 = vmatprep.subr.bf16.mxu0 %v3371
          %3501 = vmatpush1.bf16.xpose.msra.mxu0 %v3370
          %3502 = vmatprep.subr.bf16.mxu0 0
          %3503 = vmatpush1.bf16.xpose.msra.mxu0 0
          %3504 = vmatprep.subr.bf16.mxu0 0
          %3505 = vmatpush1.bf16.xpose.msra.mxu0 0
          %3506 = vmatprep.subr.bf16.mxu0 0
          %3507 = vmatpush1.bf16.xpose.msra.mxu0 0
          %3508 = vmatprep.subr.bf16.mxu0 0
          %3509 = vmatpush1.bf16.xpose.msra.mxu0 0
          %3510 = vmatprep.subr.bf16.mxu0 0
          %3511 = vmatpush1.bf16.xpose.msra.mxu0 0
          %3512 = vmatprep.subr.bf16.mxu0 0
          %3513 = vmatpush1.bf16.xpose.msra.mxu0 0
          %3514 = vmatprep.subr.bf16.mxu0 0
          %3515 = vmatpush1.bf16.xpose.msra.mxu0 0
          %3516 = vmatprep.subr.bf16.mxu0 0
          %3517 = vmatpush1.bf16.xpose.msra.mxu0 0
          %3518 = vmatprep.subr.bf16.mxu0 0
          %3519 = vmatpush1.bf16.xpose.msra.mxu0 0
          %3520 = vmatprep.subr.bf16.mxu0 0
          %3521 = vmatpush1.bf16.xpose.msra.mxu0 0
          %3522 = vmatprep.subr.bf16.mxu0 0
          %3523 = vmatpush1.bf16.xpose.msra.mxu0 0
          %3524 = vmatprep.subr.bf16.mxu0 0
          %3525 = vmatpush1.bf16.xpose.msra.mxu0 0
          %3526 = vmatprep.subr.bf16.mxu0 0
          %3527 = vmatpush1.bf16.xpose.msra.mxu0 0
          %3528 = vmatprep.subr.bf16.mxu0 0
          %3529 = vmatpush1.bf16.xpose.msra.mxu0 0
          %3530 = vmatprep.subr.bf16.mxu0 0
          %3531 = vmatpush1.bf16.xpose.msra.mxu0 0
          %3532 = vmatprep.mubr.bf16.mxu0 %v3344
          %3533 = vmatmul.mubr.bf16.gmra.mrb[0].mxu0 %v3343
          %v3534 = vpop.f32.mrb[0].mxu0
          %v3535 = vadd.f32 %v3495, %v3534
          %v3536 = vpop.f32.mrb[0].mxu0
          %v3537 = vpop.f32.mrb[0].mxu0
          %v3538 = vpop.f32.mrb[0].mxu0
          %3539 = vdwg.mxu0
          %vm3540 = vcmask 64512
          %3541 = vst.msk [vmem:[%s285] sm:$0xff] %vm3540, %v3535
        $region60: #{msc_forward.1} parent=35 // pred_fallthru
          _
        %p3542 = scmp.lt.s32.totalorder %s24, 2
        %s3543 = scalar_select %p3542, %s24, 2
        %s3544 = smul.addr %s3543, 8
        %s3545 = scalar_lea.vmem %s7, %s3544
        // Predicated region
        $region61: #{msc_forward.1} parent=35 // pred_check
          %p3546 = pneg %p141
        $region62: #{msc_forward.1} parent=35 // pred_check_branch
          %3548 = sbr.rel (%p3546) target = $region64
        $region63: #{msc_forward.1} parent=35 // pred_region
          _
        $region64: #{msc_forward.1} parent=35 // pred_fallthru
          _
      $region36: #{msc_forward.1} parent=5 // pred_fallthru
        _
      %p3549 = scmp.le.s32.totalorder 2, %s19
      // Predicated region
      $region65: #{msc_forward.1} parent=5 // pred_check
        %p3550 = pneg %p3549
      $region66: #{msc_forward.1} parent=5 // pred_check_branch
        %3552 = sbr.rel (%p3550) target = $region68
      $region67: #{msc_forward.1} parent=5 // pred_region
        %s3553 = ssub.s32 %s19, 2
        // Predicated region
        $region69: #{msc_forward.1} parent=67 // pred_check
          %p3554 = pneg %p147
        $region70: #{msc_forward.1} parent=67 // pred_check_branch
          %3556 = sbr.rel (%p3554) target = $region72
        $region71: #{msc_forward.1} parent=67 // pred_region
          %p3557 = scmp.lt.s32.totalorder %s25, 2
          %s3558 = scalar_select %p3557, %s25, 2
          %s3559 = smul.addr %s3558, 8
          %s3560 = scalar_lea.vmem %s7, %s3559
        $region72: #{msc_forward.1} parent=67 // pred_fallthru
          _
      $region68: #{msc_forward.1} parent=5 // pred_fallthru
        _
    $region6: #{msc_forward.1} parent=1 // loop_footer
      %s23 = sadd.s32 1, %s19
    $region7: #{msc_forward.1} parent=1 // loop_footer_branch
      %18 = sbr.rel target = $region3
    $region8: #{msc_forward.1} parent=1 // loop_exit
      _
    %3561 = vsyncpa [#allocation7], 1
    %s3562 = scalar_lea.sflag [#allocation7], 1
    %3563 = vsyncpa %s3562, 1
    %3564 = vsyncpa [#allocation9], 1
    %s3565 = scalar_lea.sflag [#allocation9], 1
    %3566 = vsyncpa %s3565, 1
  %3567 = vsyncmov [#allocation5]
  %s3568 = vpop.sfrf %3567
  %p3569 = scmp.eq.s32.totalorder %s3568, 0
  %p3570 = pneg %p3569
  %3572 = shalt.err (%p3570)
  %s3573 = scalar_lea.sflag [#allocation5], 1
  %3574 = vsyncmov %s3573
  %s3575 = vpop.sfrf %3574
  %p3576 = scmp.eq.s32.totalorder %s3575, 0
  %p3577 = pneg %p3576
  %3579 = shalt.err (%p3577)
  %s3580 = scalar_lea.sflag [#allocation5], 2
  %3581 = vsyncmov %s3580
  %s3582 = vpop.sfrf %3581
  %p3583 = scmp.eq.s32.totalorder %s3582, 0
  %p3584 = pneg %p3583
  %3586 = shalt.err (%p3584)
  %s3587 = scalar_lea.sflag [#allocation5], 3
  %3588 = vsyncmov %s3587
  %s3589 = vpop.sfrf %3588
  %p3590 = scmp.eq.s32.totalorder %s3589, 0
  %p3591 = pneg %p3590
  %3593 = shalt.err (%p3591)

</llo_original>
